<compile_context>
chip_gen: v5e
topology: v5e:2x2
jax: 0.10.0
libtpu: 0.0.40
codegen_flags: <defaults>
</compile_context>

<pallas_src>
import jax
import jax.numpy as jnp
import numpy as np
from jax.experimental import pallas as pl
from jax.experimental.pallas import tpu as pltpu

# --- small synthetic CoCa/ViT config (downsized from image_size=448, D=768) ---
IMG = 32          # image size
PATCH = 16        # patch size
CIN = 3           # RGB
D = 128           # hidden_size
HEADS = 4
DH = D // HEADS
DEPTH = 2         # transformer blocks
DMLP = 4 * D      # mlp_ratio=4
N = (IMG // PATCH) ** 2
T = N + 1         # cls token + patches
TP = 8            # token count padded to a sublane multiple of 8
PPC = CIN * PATCH * PATCH
LN_EPS = 1e-6     # timm ViT LayerNorm eps
NEG_INF = -1e30


def _ln(x, w, b):
    mu = jnp.mean(x, axis=-1, keepdims=True)
    var = jnp.mean((x - mu) ** 2, axis=-1, keepdims=True)
    return (x - mu) * jax.lax.rsqrt(var + LN_EPS) * w + b


def make_vit_kernel(bb):
    """Build the kernel for a batch-block of `bb` images per grid step."""
    mb = bb * TP  # rows fed to every dense matmul

    def vit_kernel(patches_ref, cls_ref, pos_ref, pe_w_ref, pe_b_ref,
                   ln1_w_ref, ln1_b_ref, qkv_w_ref, qkv_b_ref,
                   proj_w_ref, proj_b_ref, ls1_ref,
                   ln2_w_ref, ln2_b_ref, fc1_w_ref, fc1_b_ref,
                   fc2_w_ref, fc2_b_ref, ls2_ref,
                   fn_w_ref, fn_b_ref, out_ref, x_s):
        # --- patch embedding for all bb images at once (Conv2d as matmul) ---
        patches = patches_ref[...].reshape(bb * N, PPC)
        emb = jnp.dot(patches, pe_w_ref[...],
                      preferred_element_type=jnp.float32) + pe_b_ref[...]

        # assemble [cls, patch tokens, zero padding] per image, add pos embed.
        # padding rows must be finite (zero) so masked attention stays NaN-free.
        x_s[...] = jnp.zeros((mb, D), jnp.float32)
        for b in range(bb):
            base = b * TP
            x_s[base:base + 1, :] = cls_ref[...] + pos_ref[0:1, :]
            x_s[base + 1:base + 1 + N, :] = (emb[b * N:(b + 1) * N, :]
                                             + pos_ref[1:T, :])
        x = x_s[...]

        # padded key positions get -inf score so they receive zero attention
        key_pad = jax.lax.broadcasted_iota(jnp.int32, (1, 1, TP), 2) >= T
        mask_bias = jnp.where(key_pad, NEG_INF, 0.0).astype(jnp.float32)

        scale = 1.0 / (DH ** 0.5)
        for d in range(DEPTH):
            # ---- attention block ----
            h = _ln(x, ln1_w_ref[d], ln1_b_ref[d])
            qkv = jnp.dot(h, qkv_w_ref[d],
                          preferred_element_type=jnp.float32) + qkv_b_ref[d]
            pw = proj_w_ref[d]
            attn = None
            for hh in range(HEADS):
                lo = hh * DH
                q_h = qkv[:, lo:lo + DH].reshape(bb, TP, DH) * scale
                k_h = qkv[:, D + lo:D + lo + DH].reshape(bb, TP, DH)
                v_h = qkv[:, 2 * D + lo:2 * D + lo + DH].reshape(bb, TP, DH)
                # image-batched scores for this head: (bb, TP, TP)
                s = jnp.einsum('bqd,bkd->bqk', q_h, k_h,
                               preferred_element_type=jnp.float32) + mask_bias
                s = s - jnp.max(s, axis=-1, keepdims=True)
                p = jnp.exp(s)
                p = p * pl.reciprocal(jnp.sum(p, axis=-1, keepdims=True),
                                      approx=True)
                o_h = jnp.einsum('bqk,bkd->bqd', p, v_h,
                                 preferred_element_type=jnp.float32)
                # fold output projection per head: concat+matmul == sum of
                # per-head slab matmuls -> no jnp.concatenate / lane relayout.
                contrib = jnp.dot(o_h.reshape(mb, DH), pw[lo:lo + DH, :],
                                  preferred_element_type=jnp.float32)
                attn = contrib if attn is None else attn + contrib
            attn = attn + proj_b_ref[d]
            # LayerScale (init_values=1.0) + residual
            x = x + ls1_ref[d] * attn

            # ---- MLP block ----
            h = _ln(x, ln2_w_ref[d], ln2_b_ref[d])
            h = jnp.dot(h, fc1_w_ref[d],
                        preferred_element_type=jnp.float32) + fc1_b_ref[d]
            # TODO(synk): timm ViT uses exact-erf GELU; tanh approximation used for Mosaic compat.
            h = jax.nn.gelu(h, approximate=True)
            h = jnp.dot(h, fc2_w_ref[d],
                        preferred_element_type=jnp.float32) + fc2_b_ref[d]
            x = x + ls2_ref[d] * h

        # final norm (forward_features applies self.norm)
        out = _ln(x, fn_w_ref[...], fn_b_ref[...])
        out_ref[...] = out.reshape(bb, TP, D).astype(out_ref.dtype)

    return vit_kernel


def coca_vision_tower_forward(images, p, *, block_b=None):
    B = images.shape[0]
    if block_b is None:
        block_b = B
    assert B % block_b == 0, "batch must be divisible by block_b"
    bb = block_b

    # glue: NCHW -> (B, N, C*P*P), patch grid row-major, channel-major within
    # patch — exactly the contraction a stride-P Conv2d performs.
    x = images.reshape(B, CIN, IMG // PATCH, PATCH, IMG // PATCH, PATCH)
    patches = x.transpose(0, 2, 4, 1, 3, 5).reshape(B, N, PPC)

    def full(shape):
        return pl.BlockSpec(shape, lambda i, _n=len(shape): (0,) * _n)

    in_specs = [
        pl.BlockSpec((bb, N, PPC), lambda i: (i, 0, 0)),  # patches
        full((1, D)), full((T, D)),                       # cls, pos
        full((PPC, D)), full((1, D)),                     # patch-embed w, b
        full((DEPTH, 1, D)), full((DEPTH, 1, D)),         # ln1 w, b
        full((DEPTH, D, 3 * D)), full((DEPTH, 1, 3 * D)), # qkv w, b
        full((DEPTH, D, D)), full((DEPTH, 1, D)),         # proj w, b
        full((DEPTH, 1, D)),                              # layerscale 1
        full((DEPTH, 1, D)), full((DEPTH, 1, D)),         # ln2 w, b
        full((DEPTH, D, DMLP)), full((DEPTH, 1, DMLP)),   # fc1 w, b
        full((DEPTH, DMLP, D)), full((DEPTH, 1, D)),      # fc2 w, b
        full((DEPTH, 1, D)),                              # layerscale 2
        full((1, D)), full((1, D)),                       # final norm w, b
    ]

    out_padded = pl.pallas_call(
        make_vit_kernel(bb),
        out_shape=jax.ShapeDtypeStruct((B, TP, D), images.dtype),
        grid_spec=pltpu.PrefetchScalarGridSpec(
            num_scalar_prefetch=0,
            grid=(B // bb,),
            in_specs=in_specs,
            out_specs=pl.BlockSpec((bb, TP, D), lambda i: (i, 0, 0)),
            scratch_shapes=[pltpu.VMEM((bb * TP, D), jnp.float32)],
        ),
        compiler_params=pltpu.CompilerParams(
            dimension_semantics=("parallel",),        # batch steps -> both TCs on v7x
            vmem_limit_bytes=32 * 1024 * 1024),       # above v5e's 16 MiB default
    )(patches, p['cls'], p['pos'], p['pe_w'], p['pe_b'],
      p['ln1_w'], p['ln1_b'], p['qkv_w'], p['qkv_b'],
      p['proj_w'], p['proj_b'], p['ls1'],
      p['ln2_w'], p['ln2_b'], p['fc1_w'], p['fc1_b'],
      p['fc2_w'], p['fc2_b'], p['ls2'],
      p['fn_w'], p['fn_b'])

    # drop the padded token rows -> (B, 1+N, D), matching feature_select('patch')
    return out_padded[:, :T, :]


def reference_forward(images, p):
    """Pure-JAX reference of the same ViT forward_features."""
    B = images.shape[0]
    x = images.reshape(B, CIN, IMG // PATCH, PATCH, IMG // PATCH, PATCH)
    patches = x.transpose(0, 2, 4, 1, 3, 5).reshape(B, N, PPC)
    emb = patches @ p['pe_w'] + p['pe_b']
    cls = jnp.broadcast_to(p['cls'][None], (B, 1, D))
    xc = jnp.concatenate([cls, emb], axis=1) + p['pos'][None]

    def ln(x, w, b):
        mu = x.mean(-1, keepdims=True)
        var = ((x - mu) ** 2).mean(-1, keepdims=True)
        return (x - mu) / jnp.sqrt(var + LN_EPS) * w + b

    scale = 1.0 / (DH ** 0.5)
    for d in range(DEPTH):
        h = ln(xc, p['ln1_w'][d], p['ln1_b'][d])
        qkv = h @ p['qkv_w'][d] + p['qkv_b'][d]
        q, k, v = qkv[..., :D], qkv[..., D:2 * D], qkv[..., 2 * D:]
        q = q.reshape(B, T, HEADS, DH).transpose(0, 2, 1, 3) * scale
        k = k.reshape(B, T, HEADS, DH).transpose(0, 2, 1, 3)
        v = v.reshape(B, T, HEADS, DH).transpose(0, 2, 1, 3)
        s = q @ k.transpose(0, 1, 3, 2)
        a = jax.nn.softmax(s, axis=-1)
        o = (a @ v).transpose(0, 2, 1, 3).reshape(B, T, D)
        o = o @ p['proj_w'][d] + p['proj_b'][d]
        xc = xc + p['ls1'][d] * o
        h = ln(xc, p['ln2_w'][d], p['ln2_b'][d])
        h = jax.nn.gelu(h @ p['fc1_w'][d] + p['fc1_b'][d], approximate=True)
        h = h @ p['fc2_w'][d] + p['fc2_b'][d]
        xc = xc + p['ls2'][d] * h
    return ln(xc, p['fn_w'], p['fn_b'])


def init_params(key):
    ks = jax.random.split(key, 8)
    s = 0.02
    f32 = jnp.float32
    return {
        'cls':    s * jax.random.normal(ks[0], (1, D), f32),
        'pos':    s * jax.random.normal(ks[1], (T, D), f32),
        'pe_w':   s * jax.random.normal(ks[2], (PPC, D), f32),
        'pe_b':   jnp.zeros((1, D), f32),
        'ln1_w':  jnp.ones((DEPTH, 1, D), f32),
        'ln1_b':  jnp.zeros((DEPTH, 1, D), f32),
        'qkv_w':  s * jax.random.normal(ks[3], (DEPTH, D, 3 * D), f32),
        'qkv_b':  jnp.zeros((DEPTH, 1, 3 * D), f32),
        'proj_w': s * jax.random.normal(ks[4], (DEPTH, D, D), f32),
        'proj_b': jnp.zeros((DEPTH, 1, D), f32),
        'ls1':    jnp.ones((DEPTH, 1, D), f32),   # LayerScale init_values=1.0
        'ln2_w':  jnp.ones((DEPTH, 1, D), f32),
        'ln2_b':  jnp.zeros((DEPTH, 1, D), f32),
        'fc1_w':  s * jax.random.normal(ks[5], (DEPTH, D, DMLP), f32),
        'fc1_b':  jnp.zeros((DEPTH, 1, DMLP), f32),
        'fc2_w':  s * jax.random.normal(ks[6], (DEPTH, DMLP, D), f32),
        'fc2_b':  jnp.zeros((DEPTH, 1, D), f32),
        'ls2':    jnp.ones((DEPTH, 1, D), f32),   # LayerScale init_values=1.0
        'fn_w':   jnp.ones((1, D), f32),
        'fn_b':   jnp.zeros((1, D), f32),
    }


if __name__ == "__main__":
    key = jax.random.PRNGKey(0)
    k_img, k_par = jax.random.split(key)
    # images as they arrive at forward(): already preprocessed (CLIPImageProcessor
    # resize/crop/rescale/normalize happens outside the model), NCHW float32.
    B = 4
    images = jax.random.normal(k_img, (B, CIN, IMG, IMG), jnp.float32)
    params = init_params(k_par)

    out = coca_vision_tower_forward(images, params, block_b=2)
    out = jax.block_until_ready(out)

    ref = reference_forward(images, params)
    assert out.shape == (B, T, D) and out.dtype == images.dtype
    # tolerance covers the EUP approximate-reciprocal softmax normalization
    np.testing.assert_allclose(np.asarray(out), np.asarray(ref),
                               rtol=5e-3, atol=5e-3)
    print("KERNEL_OK")
</pallas_src>

<mosaic_0001>
module attributes {stable_mosaic.version = 11 : i64} {
  func.func @vit_kernel(%arg0: i32, %arg1: memref<2x4x768xf32, #tpu.memory_space<vmem>>, %arg2: memref<1x128xf32, #tpu.memory_space<vmem>>, %arg3: memref<5x128xf32, #tpu.memory_space<vmem>>, %arg4: memref<768x128xf32, #tpu.memory_space<vmem>>, %arg5: memref<1x128xf32, #tpu.memory_space<vmem>>, %arg6: memref<2x1x128xf32, #tpu.memory_space<vmem>>, %arg7: memref<2x1x128xf32, #tpu.memory_space<vmem>>, %arg8: memref<2x128x384xf32, #tpu.memory_space<vmem>>, %arg9: memref<2x1x384xf32, #tpu.memory_space<vmem>>, %arg10: memref<2x128x128xf32, #tpu.memory_space<vmem>>, %arg11: memref<2x1x128xf32, #tpu.memory_space<vmem>>, %arg12: memref<2x1x128xf32, #tpu.memory_space<vmem>>, %arg13: memref<2x1x128xf32, #tpu.memory_space<vmem>>, %arg14: memref<2x1x128xf32, #tpu.memory_space<vmem>>, %arg15: memref<2x128x512xf32, #tpu.memory_space<vmem>>, %arg16: memref<2x1x512xf32, #tpu.memory_space<vmem>>, %arg17: memref<2x512x128xf32, #tpu.memory_space<vmem>>, %arg18: memref<2x1x128xf32, #tpu.memory_space<vmem>>, %arg19: memref<2x1x128xf32, #tpu.memory_space<vmem>>, %arg20: memref<1x128xf32, #tpu.memory_space<vmem>>, %arg21: memref<1x128xf32, #tpu.memory_space<vmem>>, %arg22: memref<2x8x128xf32, #tpu.memory_space<vmem>>, %arg23: memref<16x128xf32, #tpu.memory_space<vmem>>) attributes {dimension_semantics = [#tpu.dimension_semantics<parallel>], iteration_bounds = array<i64: 2>, scalar_prefetch = 0 : i64, scratch_operands = 1 : i64, tpu.core_type = #tpu.core_type<tc>, window_params = [{transform_indices = @transform_0, window_bounds = array<i64: 2, 4, 768>}, {pipeline_mode = #tpu.pipeline_mode<synchronous>, transform_indices = @transform_1, window_bounds = array<i64: 1, 128>}, {pipeline_mode = #tpu.pipeline_mode<synchronous>, transform_indices = @transform_2, window_bounds = array<i64: 5, 128>}, {pipeline_mode = #tpu.pipeline_mode<synchronous>, transform_indices = @transform_3, window_bounds = array<i64: 768, 128>}, {pipeline_mode = #tpu.pipeline_mode<synchronous>, transform_indices = @transform_4, window_bounds = array<i64: 1, 128>}, {pipeline_mode = #tpu.pipeline_mode<synchronous>, transform_indices = @transform_5, window_bounds = array<i64: 2, 1, 128>}, {pipeline_mode = #tpu.pipeline_mode<synchronous>, transform_indices = @transform_6, window_bounds = array<i64: 2, 1, 128>}, {pipeline_mode = #tpu.pipeline_mode<synchronous>, transform_indices = @transform_7, window_bounds = array<i64: 2, 128, 384>}, {pipeline_mode = #tpu.pipeline_mode<synchronous>, transform_indices = @transform_8, window_bounds = array<i64: 2, 1, 384>}, {pipeline_mode = #tpu.pipeline_mode<synchronous>, transform_indices = @transform_9, window_bounds = array<i64: 2, 128, 128>}, {pipeline_mode = #tpu.pipeline_mode<synchronous>, transform_indices = @transform_10, window_bounds = array<i64: 2, 1, 128>}, {pipeline_mode = #tpu.pipeline_mode<synchronous>, transform_indices = @transform_11, window_bounds = array<i64: 2, 1, 128>}, {pipeline_mode = #tpu.pipeline_mode<synchronous>, transform_indices = @transform_12, window_bounds = array<i64: 2, 1, 128>}, {pipeline_mode = #tpu.pipeline_mode<synchronous>, transform_indices = @transform_13, window_bounds = array<i64: 2, 1, 128>}, {pipeline_mode = #tpu.pipeline_mode<synchronous>, transform_indices = @transform_14, window_bounds = array<i64: 2, 128, 512>}, {pipeline_mode = #tpu.pipeline_mode<synchronous>, transform_indices = @transform_15, window_bounds = array<i64: 2, 1, 512>}, {pipeline_mode = #tpu.pipeline_mode<synchronous>, transform_indices = @transform_16, window_bounds = array<i64: 2, 512, 128>}, {pipeline_mode = #tpu.pipeline_mode<synchronous>, transform_indices = @transform_17, window_bounds = array<i64: 2, 1, 128>}, {pipeline_mode = #tpu.pipeline_mode<synchronous>, transform_indices = @transform_18, window_bounds = array<i64: 2, 1, 128>}, {pipeline_mode = #tpu.pipeline_mode<synchronous>, transform_indices = @transform_19, window_bounds = array<i64: 1, 128>}, {pipeline_mode = #tpu.pipeline_mode<synchronous>, transform_indices = @transform_20, window_bounds = array<i64: 1, 128>}, {transform_indices = @transform_21, window_bounds = array<i64: 2, 8, 128>}]} {
    %c0 = arith.constant 0 : index
    %c0_0 = arith.constant 0 : index
    %c0_1 = arith.constant 0 : index
    %0 = vector.load %arg1[%c0, %c0_0, %c0_1] : memref<2x4x768xf32, #tpu.memory_space<vmem>>, vector<2x4x768xf32>
    %1 = vector.shape_cast %0 : vector<2x4x768xf32> to vector<8x768xf32>
    %c0_2 = arith.constant 0 : index
    %c0_3 = arith.constant 0 : index
    %2 = vector.load %arg4[%c0_2, %c0_3] : memref<768x128xf32, #tpu.memory_space<vmem>>, vector<768x128xf32>
    %cst = arith.constant dense<0.000000e+00> : vector<8x128xf32>
    %3 = tpu.matmul %1, %2, %cst {dimension_numbers = #tpu.dot_dimension_numbers<[1], [0], [0], [1], [0, 0, 1, 1], [], []>} : vector<8x768xf32>, vector<768x128xf32>, vector<8x128xf32> -> vector<8x128xf32>
    %c0_4 = arith.constant 0 : index
    %c0_5 = arith.constant 0 : index
    %4 = vector.load %arg5[%c0_4, %c0_5] : memref<1x128xf32, #tpu.memory_space<vmem>>, vector<1x128xf32>
    %5 = vector.broadcast %4 : vector<1x128xf32> to vector<8x128xf32>
    %6 = arith.addf %3, %5 : vector<8x128xf32>
    %cst_6 = arith.constant 0.000000e+00 : f32
    %7 = vector.broadcast %cst_6 : f32 to vector<16x128xf32>
    %c0_7 = arith.constant 0 : index
    %c0_8 = arith.constant 0 : index
    %8 = vector.load %arg23[%c0_7, %c0_8] : memref<16x128xf32, #tpu.memory_space<vmem>>, vector<16x128xf32>
    tpu.vector_store %arg23[%c0_7, %c0_8], %7 {strides = array<i32>} : memref<16x128xf32, #tpu.memory_space<vmem>>, vector<16x128xf32>,
    %c0_9 = arith.constant 0 : index
    %c0_10 = arith.constant 0 : index
    %9 = vector.load %arg2[%c0_9, %c0_10] : memref<1x128xf32, #tpu.memory_space<vmem>>, vector<1x128xf32>
    %c0_11 = arith.constant 0 : index
    %c0_12 = arith.constant 0 : index
    %10 = vector.load %arg3[%c0_11, %c0_12] : memref<5x128xf32, #tpu.memory_space<vmem>>, vector<1x128xf32>
    %11 = arith.addf %9, %10 : vector<1x128xf32>
    %c0_13 = arith.constant 0 : index
    %c0_14 = arith.constant 0 : index
    %12 = vector.load %arg23[%c0_13, %c0_14] : memref<16x128xf32, #tpu.memory_space<vmem>>, vector<1x128xf32>
    tpu.vector_store %arg23[%c0_13, %c0_14], %11 {strides = array<i32>} : memref<16x128xf32, #tpu.memory_space<vmem>>, vector<1x128xf32>,
    %13 = vector.extract_strided_slice %6 {offsets = [0, 0], sizes = [4, 128], strides = [1, 1]} : vector<8x128xf32> to vector<4x128xf32>
    %c1 = arith.constant 1 : index
    %c0_15 = arith.constant 0 : index
    %14 = vector.load %arg3[%c1, %c0_15] : memref<5x128xf32, #tpu.memory_space<vmem>>, vector<4x128xf32>
    %15 = arith.addf %13, %14 : vector<4x128xf32>
    %c1_16 = arith.constant 1 : index
    %c0_17 = arith.constant 0 : index
    %16 = vector.load %arg23[%c1_16, %c0_17] : memref<16x128xf32, #tpu.memory_space<vmem>>, vector<4x128xf32>
    tpu.vector_store %arg23[%c1_16, %c0_17], %15 {strides = array<i32>} : memref<16x128xf32, #tpu.memory_space<vmem>>, vector<4x128xf32>,
    %c0_18 = arith.constant 0 : index
    %c0_19 = arith.constant 0 : index
    %17 = vector.load %arg2[%c0_18, %c0_19] : memref<1x128xf32, #tpu.memory_space<vmem>>, vector<1x128xf32>
    %c0_20 = arith.constant 0 : index
    %c0_21 = arith.constant 0 : index
    %18 = vector.load %arg3[%c0_20, %c0_21] : memref<5x128xf32, #tpu.memory_space<vmem>>, vector<1x128xf32>
    %19 = arith.addf %17, %18 : vector<1x128xf32>
    %c8 = arith.constant 8 : index
    %c0_22 = arith.constant 0 : index
    %20 = vector.load %arg23[%c8, %c0_22] : memref<16x128xf32, #tpu.memory_space<vmem>>, vector<1x128xf32>
    tpu.vector_store %arg23[%c8, %c0_22], %19 {strides = array<i32>} : memref<16x128xf32, #tpu.memory_space<vmem>>, vector<1x128xf32>,
    %21 = vector.extract_strided_slice %6 {offsets = [4, 0], sizes = [4, 128], strides = [1, 1]} : vector<8x128xf32> to vector<4x128xf32>
    %c1_23 = arith.constant 1 : index
    %c0_24 = arith.constant 0 : index
    %22 = vector.load %arg3[%c1_23, %c0_24] : memref<5x128xf32, #tpu.memory_space<vmem>>, vector<4x128xf32>
    %23 = arith.addf %21, %22 : vector<4x128xf32>
    %c9 = arith.constant 9 : index
    %c0_25 = arith.constant 0 : index
    %24 = vector.load %arg23[%c9, %c0_25] : memref<16x128xf32, #tpu.memory_space<vmem>>, vector<4x128xf32>
    tpu.vector_store %arg23[%c9, %c0_25], %23 {strides = array<i32>} : memref<16x128xf32, #tpu.memory_space<vmem>>, vector<4x128xf32>,
    %c0_26 = arith.constant 0 : index
    %c0_27 = arith.constant 0 : index
    %25 = vector.load %arg23[%c0_26, %c0_27] : memref<16x128xf32, #tpu.memory_space<vmem>>, vector<16x128xf32>
    %26 = tpu.iota {dimensions = array<i32: 2>} : vector<1x1x8xi32>
    %c5_i32 = arith.constant 5 : i32
    %27 = vector.broadcast %c5_i32 : i32 to vector<1x1x8xi32>
    %28 = arith.cmpi sge, %26, %27 : vector<1x1x8xi32>
    %cst_28 = arith.constant -1.000000e+30 : f32
    %cst_29 = arith.constant 0.000000e+00 : f32
    %29 = vector.broadcast %cst_28 : f32 to vector<1x1x8xf32>
    %30 = vector.broadcast %cst_29 : f32 to vector<1x1x8xf32>
    %31 = arith.select %28, %29, %30 : vector<1x1x8xi1>, vector<1x1x8xf32>
    %c0_30 = arith.constant 0 : index
    %c0_31 = arith.constant 0 : index
    %c0_32 = arith.constant 0 : index
    %32 = vector.load %arg6[%c0_30, %c0_31, %c0_32] : memref<2x1x128xf32, #tpu.memory_space<vmem>>, vector<1x1x128xf32>
    %33 = vector.shape_cast %32 : vector<1x1x128xf32> to vector<1x128xf32>
    %c0_33 = arith.constant 0 : index
    %c0_34 = arith.constant 0 : index
    %c0_35 = arith.constant 0 : index
    %34 = vector.load %arg7[%c0_33, %c0_34, %c0_35] : memref<2x1x128xf32, #tpu.memory_space<vmem>>, vector<1x1x128xf32>
    %35 = vector.shape_cast %34 : vector<1x1x128xf32> to vector<1x128xf32>
    %cst_36 = arith.constant dense<0.000000e+00> : vector<16xf32>
    %36 = vector.multi_reduction <add>, %25, %cst_36 [1] : vector<16x128xf32> to vector<16xf32>
    %37 = vector.shape_cast %36 : vector<16xf32> to vector<16x1xf32>
    %cst_37 = arith.constant 1.280000e+02 : f32
    %38 = vector.broadcast %cst_37 : f32 to vector<16x1xf32>
    %39 = arith.divf %37, %38 : vector<16x1xf32>
    %40 = vector.broadcast %39 : vector<16x1xf32> to vector<16x128xf32>
    %41 = arith.subf %25, %40 : vector<16x128xf32>
    %42 = arith.mulf %41, %41 : vector<16x128xf32>
    %cst_38 = arith.constant dense<0.000000e+00> : vector<16xf32>
    %43 = vector.multi_reduction <add>, %42, %cst_38 [1] : vector<16x128xf32> to vector<16xf32>
    %44 = vector.shape_cast %43 : vector<16xf32> to vector<16x1xf32>
    %cst_39 = arith.constant 1.280000e+02 : f32
    %45 = vector.broadcast %cst_39 : f32 to vector<16x1xf32>
    %46 = arith.divf %44, %45 : vector<16x1xf32>
    %47 = vector.broadcast %39 : vector<16x1xf32> to vector<16x128xf32>
    %48 = arith.subf %25, %47 : vector<16x128xf32>
    %cst_40 = arith.constant 9.99999997E-7 : f32
    %49 = vector.broadcast %cst_40 : f32 to vector<16x1xf32>
    %50 = arith.addf %46, %49 : vector<16x1xf32>
    %51 = math.rsqrt %50 : vector<16x1xf32>
    %52 = vector.broadcast %51 : vector<16x1xf32> to vector<16x128xf32>
    %53 = arith.mulf %48, %52 : vector<16x128xf32>
    %54 = vector.broadcast %33 : vector<1x128xf32> to vector<16x128xf32>
    %55 = arith.mulf %53, %54 : vector<16x128xf32>
    %56 = vector.broadcast %35 : vector<1x128xf32> to vector<16x128xf32>
    %57 = arith.addf %55, %56 : vector<16x128xf32>
    %c0_41 = arith.constant 0 : index
    %c0_42 = arith.constant 0 : index
    %c0_43 = arith.constant 0 : index
    %58 = vector.load %arg8[%c0_41, %c0_42, %c0_43] : memref<2x128x384xf32, #tpu.memory_space<vmem>>, vector<1x128x384xf32>
    %59 = vector.shape_cast %58 : vector<1x128x384xf32> to vector<128x384xf32>
    %cst_44 = arith.constant dense<0.000000e+00> : vector<16x384xf32>
    %60 = tpu.matmul %57, %59, %cst_44 {dimension_numbers = #tpu.dot_dimension_numbers<[1], [0], [0], [1], [0, 0, 1, 1], [], []>} : vector<16x128xf32>, vector<128x384xf32>, vector<16x384xf32> -> vector<16x384xf32>
    %c0_45 = arith.constant 0 : index
    %c0_46 = arith.constant 0 : index
    %c0_47 = arith.constant 0 : index
    %61 = vector.load %arg9[%c0_45, %c0_46, %c0_47] : memref<2x1x384xf32, #tpu.memory_space<vmem>>, vector<1x1x384xf32>
    %62 = vector.shape_cast %61 : vector<1x1x384xf32> to vector<1x384xf32>
    %63 = vector.broadcast %62 : vector<1x384xf32> to vector<16x384xf32>
    %64 = arith.addf %60, %63 : vector<16x384xf32>
    %c0_48 = arith.constant 0 : index
    %c0_49 = arith.constant 0 : index
    %c0_50 = arith.constant 0 : index
    %65 = vector.load %arg10[%c0_48, %c0_49, %c0_50] : memref<2x128x128xf32, #tpu.memory_space<vmem>>, vector<1x128x128xf32>
    %66 = vector.shape_cast %65 : vector<1x128x128xf32> to vector<128x128xf32>
    %67 = vector.extract_strided_slice %64 {offsets = [0, 0], sizes = [16, 32], strides = [1, 1]} : vector<16x384xf32> to vector<16x32xf32>
    %68 = vector.shape_cast %67 : vector<16x32xf32> to vector<2x8x32xf32>
    %cst_51 = arith.constant 0.176776692 : f32
    %69 = vector.broadcast %cst_51 : f32 to vector<2x8x32xf32>
    %70 = arith.mulf %68, %69 : vector<2x8x32xf32>
    %71 = vector.extract_strided_slice %64 {offsets = [0, 128], sizes = [16, 32], strides = [1, 1]} : vector<16x384xf32> to vector<16x32xf32>
    %72 = vector.shape_cast %71 : vector<16x32xf32> to vector<2x8x32xf32>
    %73 = vector.extract_strided_slice %64 {offsets = [0, 256], sizes = [16, 32], strides = [1, 1]} : vector<16x384xf32> to vector<16x32xf32>
    %74 = vector.shape_cast %73 : vector<16x32xf32> to vector<2x8x32xf32>
    "tpu.trace_start"() <{level = 10 : i32, message = "bqd,bkd->bqk"}> : () -> ()
    %cst_52 = arith.constant dense<0.000000e+00> : vector<2x8x8xf32>
    %75 = tpu.matmul %70, %72, %cst_52 {dimension_numbers = #tpu.dot_dimension_numbers<[2], [2], [1], [1], [0, 0, 0, 1, 1, 1], [0], [0]>} : vector<2x8x32xf32>, vector<2x8x32xf32>, vector<2x8x8xf32> -> vector<2x8x8xf32>
    "tpu.trace_stop"() : () -> ()
    %76 = vector.broadcast %31 : vector<1x1x8xf32> to vector<2x8x8xf32>
    %77 = arith.addf %75, %76 : vector<2x8x8xf32>
    %cst_53 = arith.constant dense<0xFF800000> : vector<2x8xf32>
    %78 = vector.multi_reduction <maximumf>, %77, %cst_53 [2] : vector<2x8x8xf32> to vector<2x8xf32>
    %79 = vector.shape_cast %78 : vector<2x8xf32> to vector<2x8x1xf32>
    %80 = vector.broadcast %79 : vector<2x8x1xf32> to vector<2x8x8xf32>
    %81 = arith.subf %77, %80 : vector<2x8x8xf32>
    %82 = math.exp %81 : vector<2x8x8xf32>
    %cst_54 = arith.constant dense<0.000000e+00> : vector<2x8xf32>
    %83 = vector.multi_reduction <add>, %82, %cst_54 [2] : vector<2x8x8xf32> to vector<2x8xf32>
    %84 = vector.shape_cast %83 : vector<2x8xf32> to vector<2x8x1xf32>
    %85 = tpu.reciprocal %84 {approx = true} : vector<2x8x1xf32> -> vector<2x8x1xf32>
    %86 = vector.broadcast %85 : vector<2x8x1xf32> to vector<2x8x8xf32>
    %87 = arith.mulf %82, %86 : vector<2x8x8xf32>
    "tpu.trace_start"() <{level = 10 : i32, message = "bqk,bkd->bqd"}> : () -> ()
    %cst_55 = arith.constant dense<0.000000e+00> : vector<2x8x32xf32>
    %88 = tpu.matmul %87, %74, %cst_55 {dimension_numbers = #tpu.dot_dimension_numbers<[2], [1], [1], [2], [0, 0, 0, 1, 1, 2], [0], [0]>} : vector<2x8x8xf32>, vector<2x8x32xf32>, vector<2x8x32xf32> -> vector<2x8x32xf32>
    "tpu.trace_stop"() : () -> ()
    %89 = vector.shape_cast %88 : vector<2x8x32xf32> to vector<16x32xf32>
    %90 = vector.extract_strided_slice %66 {offsets = [0, 0], sizes = [32, 128], strides = [1, 1]} : vector<128x128xf32> to vector<32x128xf32>
    %cst_56 = arith.constant dense<0.000000e+00> : vector<16x128xf32>
    %91 = tpu.matmul %89, %90, %cst_56 {dimension_numbers = #tpu.dot_dimension_numbers<[1], [0], [0], [1], [0, 0, 1, 1], [], []>} : vector<16x32xf32>, vector<32x128xf32>, vector<16x128xf32> -> vector<16x128xf32>
    %92 = vector.extract_strided_slice %64 {offsets = [0, 32], sizes = [16, 32], strides = [1, 1]} : vector<16x384xf32> to vector<16x32xf32>
    %93 = vector.shape_cast %92 : vector<16x32xf32> to vector<2x8x32xf32>
    %cst_57 = arith.constant 0.176776692 : f32
    %94 = vector.broadcast %cst_57 : f32 to vector<2x8x32xf32>
    %95 = arith.mulf %93, %94 : vector<2x8x32xf32>
    %96 = vector.extract_strided_slice %64 {offsets = [0, 160], sizes = [16, 32], strides = [1, 1]} : vector<16x384xf32> to vector<16x32xf32>
    %97 = vector.shape_cast %96 : vector<16x32xf32> to vector<2x8x32xf32>
    %98 = vector.extract_strided_slice %64 {offsets = [0, 288], sizes = [16, 32], strides = [1, 1]} : vector<16x384xf32> to vector<16x32xf32>
    %99 = vector.shape_cast %98 : vector<16x32xf32> to vector<2x8x32xf32>
    "tpu.trace_start"() <{level = 10 : i32, message = "bqd,bkd->bqk"}> : () -> ()
    %cst_58 = arith.constant dense<0.000000e+00> : vector<2x8x8xf32>
    %100 = tpu.matmul %95, %97, %cst_58 {dimension_numbers = #tpu.dot_dimension_numbers<[2], [2], [1], [1], [0, 0, 0, 1, 1, 1], [0], [0]>} : vector<2x8x32xf32>, vector<2x8x32xf32>, vector<2x8x8xf32> -> vector<2x8x8xf32>
    "tpu.trace_stop"() : () -> ()
    %101 = vector.broadcast %31 : vector<1x1x8xf32> to vector<2x8x8xf32>
    %102 = arith.addf %100, %101 : vector<2x8x8xf32>
    %cst_59 = arith.constant dense<0xFF800000> : vector<2x8xf32>
    %103 = vector.multi_reduction <maximumf>, %102, %cst_59 [2] : vector<2x8x8xf32> to vector<2x8xf32>
    %104 = vector.shape_cast %103 : vector<2x8xf32> to vector<2x8x1xf32>
    %105 = vector.broadcast %104 : vector<2x8x1xf32> to vector<2x8x8xf32>
    %106 = arith.subf %102, %105 : vector<2x8x8xf32>
    %107 = math.exp %106 : vector<2x8x8xf32>
    %cst_60 = arith.constant dense<0.000000e+00> : vector<2x8xf32>
    %108 = vector.multi_reduction <add>, %107, %cst_60 [2] : vector<2x8x8xf32> to vector<2x8xf32>
    %109 = vector.shape_cast %108 : vector<2x8xf32> to vector<2x8x1xf32>
    %110 = tpu.reciprocal %109 {approx = true} : vector<2x8x1xf32> -> vector<2x8x1xf32>
    %111 = vector.broadcast %110 : vector<2x8x1xf32> to vector<2x8x8xf32>
    %112 = arith.mulf %107, %111 : vector<2x8x8xf32>
    "tpu.trace_start"() <{level = 10 : i32, message = "bqk,bkd->bqd"}> : () -> ()
    %cst_61 = arith.constant dense<0.000000e+00> : vector<2x8x32xf32>
    %113 = tpu.matmul %112, %99, %cst_61 {dimension_numbers = #tpu.dot_dimension_numbers<[2], [1], [1], [2], [0, 0, 0, 1, 1, 2], [0], [0]>} : vector<2x8x8xf32>, vector<2x8x32xf32>, vector<2x8x32xf32> -> vector<2x8x32xf32>
    "tpu.trace_stop"() : () -> ()
    %114 = vector.shape_cast %113 : vector<2x8x32xf32> to vector<16x32xf32>
    %115 = vector.extract_strided_slice %66 {offsets = [32, 0], sizes = [32, 128], strides = [1, 1]} : vector<128x128xf32> to vector<32x128xf32>
    %cst_62 = arith.constant dense<0.000000e+00> : vector<16x128xf32>
    %116 = tpu.matmul %114, %115, %cst_62 {dimension_numbers = #tpu.dot_dimension_numbers<[1], [0], [0], [1], [0, 0, 1, 1], [], []>} : vector<16x32xf32>, vector<32x128xf32>, vector<16x128xf32> -> vector<16x128xf32>
    %117 = arith.addf %91, %116 : vector<16x128xf32>
    %118 = vector.extract_strided_slice %64 {offsets = [0, 64], sizes = [16, 32], strides = [1, 1]} : vector<16x384xf32> to vector<16x32xf32>
    %119 = vector.shape_cast %118 : vector<16x32xf32> to vector<2x8x32xf32>
    %cst_63 = arith.constant 0.176776692 : f32
    %120 = vector.broadcast %cst_63 : f32 to vector<2x8x32xf32>
    %121 = arith.mulf %119, %120 : vector<2x8x32xf32>
    %122 = vector.extract_strided_slice %64 {offsets = [0, 192], sizes = [16, 32], strides = [1, 1]} : vector<16x384xf32> to vector<16x32xf32>
    %123 = vector.shape_cast %122 : vector<16x32xf32> to vector<2x8x32xf32>
    %124 = vector.extract_strided_slice %64 {offsets = [0, 320], sizes = [16, 32], strides = [1, 1]} : vector<16x384xf32> to vector<16x32xf32>
    %125 = vector.shape_cast %124 : vector<16x32xf32> to vector<2x8x32xf32>
    "tpu.trace_start"() <{level = 10 : i32, message = "bqd,bkd->bqk"}> : () -> ()
    %cst_64 = arith.constant dense<0.000000e+00> : vector<2x8x8xf32>
    %126 = tpu.matmul %121, %123, %cst_64 {dimension_numbers = #tpu.dot_dimension_numbers<[2], [2], [1], [1], [0, 0, 0, 1, 1, 1], [0], [0]>} : vector<2x8x32xf32>, vector<2x8x32xf32>, vector<2x8x8xf32> -> vector<2x8x8xf32>
    "tpu.trace_stop"() : () -> ()
    %127 = vector.broadcast %31 : vector<1x1x8xf32> to vector<2x8x8xf32>
    %128 = arith.addf %126, %127 : vector<2x8x8xf32>
    %cst_65 = arith.constant dense<0xFF800000> : vector<2x8xf32>
    %129 = vector.multi_reduction <maximumf>, %128, %cst_65 [2] : vector<2x8x8xf32> to vector<2x8xf32>
    %130 = vector.shape_cast %129 : vector<2x8xf32> to vector<2x8x1xf32>
    %131 = vector.broadcast %130 : vector<2x8x1xf32> to vector<2x8x8xf32>
    %132 = arith.subf %128, %131 : vector<2x8x8xf32>
    %133 = math.exp %132 : vector<2x8x8xf32>
    %cst_66 = arith.constant dense<0.000000e+00> : vector<2x8xf32>
    %134 = vector.multi_reduction <add>, %133, %cst_66 [2] : vector<2x8x8xf32> to vector<2x8xf32>
    %135 = vector.shape_cast %134 : vector<2x8xf32> to vector<2x8x1xf32>
    %136 = tpu.reciprocal %135 {approx = true} : vector<2x8x1xf32> -> vector<2x8x1xf32>
    %137 = vector.broadcast %136 : vector<2x8x1xf32> to vector<2x8x8xf32>
    %138 = arith.mulf %133, %137 : vector<2x8x8xf32>
    "tpu.trace_start"() <{level = 10 : i32, message = "bqk,bkd->bqd"}> : () -> ()
    %cst_67 = arith.constant dense<0.000000e+00> : vector<2x8x32xf32>
    %139 = tpu.matmul %138, %125, %cst_67 {dimension_numbers = #tpu.dot_dimension_numbers<[2], [1], [1], [2], [0, 0, 0, 1, 1, 2], [0], [0]>} : vector<2x8x8xf32>, vector<2x8x32xf32>, vector<2x8x32xf32> -> vector<2x8x32xf32>
    "tpu.trace_stop"() : () -> ()
    %140 = vector.shape_cast %139 : vector<2x8x32xf32> to vector<16x32xf32>
    %141 = vector.extract_strided_slice %66 {offsets = [64, 0], sizes = [32, 128], strides = [1, 1]} : vector<128x128xf32> to vector<32x128xf32>
    %cst_68 = arith.constant dense<0.000000e+00> : vector<16x128xf32>
    %142 = tpu.matmul %140, %141, %cst_68 {dimension_numbers = #tpu.dot_dimension_numbers<[1], [0], [0], [1], [0, 0, 1, 1], [], []>} : vector<16x32xf32>, vector<32x128xf32>, vector<16x128xf32> -> vector<16x128xf32>
    %143 = arith.addf %117, %142 : vector<16x128xf32>
    %144 = vector.extract_strided_slice %64 {offsets = [0, 96], sizes = [16, 32], strides = [1, 1]} : vector<16x384xf32> to vector<16x32xf32>
    %145 = vector.shape_cast %144 : vector<16x32xf32> to vector<2x8x32xf32>
    %cst_69 = arith.constant 0.176776692 : f32
    %146 = vector.broadcast %cst_69 : f32 to vector<2x8x32xf32>
    %147 = arith.mulf %145, %146 : vector<2x8x32xf32>
    %148 = vector.extract_strided_slice %64 {offsets = [0, 224], sizes = [16, 32], strides = [1, 1]} : vector<16x384xf32> to vector<16x32xf32>
    %149 = vector.shape_cast %148 : vector<16x32xf32> to vector<2x8x32xf32>
    %150 = vector.extract_strided_slice %64 {offsets = [0, 352], sizes = [16, 32], strides = [1, 1]} : vector<16x384xf32> to vector<16x32xf32>
    %151 = vector.shape_cast %150 : vector<16x32xf32> to vector<2x8x32xf32>
    "tpu.trace_start"() <{level = 10 : i32, message = "bqd,bkd->bqk"}> : () -> ()
    %cst_70 = arith.constant dense<0.000000e+00> : vector<2x8x8xf32>
    %152 = tpu.matmul %147, %149, %cst_70 {dimension_numbers = #tpu.dot_dimension_numbers<[2], [2], [1], [1], [0, 0, 0, 1, 1, 1], [0], [0]>} : vector<2x8x32xf32>, vector<2x8x32xf32>, vector<2x8x8xf32> -> vector<2x8x8xf32>
    "tpu.trace_stop"() : () -> ()
    %153 = vector.broadcast %31 : vector<1x1x8xf32> to vector<2x8x8xf32>
    %154 = arith.addf %152, %153 : vector<2x8x8xf32>
    %cst_71 = arith.constant dense<0xFF800000> : vector<2x8xf32>
    %155 = vector.multi_reduction <maximumf>, %154, %cst_71 [2] : vector<2x8x8xf32> to vector<2x8xf32>
    %156 = vector.shape_cast %155 : vector<2x8xf32> to vector<2x8x1xf32>
    %157 = vector.broadcast %156 : vector<2x8x1xf32> to vector<2x8x8xf32>
    %158 = arith.subf %154, %157 : vector<2x8x8xf32>
    %159 = math.exp %158 : vector<2x8x8xf32>
    %cst_72 = arith.constant dense<0.000000e+00> : vector<2x8xf32>
    %160 = vector.multi_reduction <add>, %159, %cst_72 [2] : vector<2x8x8xf32> to vector<2x8xf32>
    %161 = vector.shape_cast %160 : vector<2x8xf32> to vector<2x8x1xf32>
    %162 = tpu.reciprocal %161 {approx = true} : vector<2x8x1xf32> -> vector<2x8x1xf32>
    %163 = vector.broadcast %162 : vector<2x8x1xf32> to vector<2x8x8xf32>
    %164 = arith.mulf %159, %163 : vector<2x8x8xf32>
    "tpu.trace_start"() <{level = 10 : i32, message = "bqk,bkd->bqd"}> : () -> ()
    %cst_73 = arith.constant dense<0.000000e+00> : vector<2x8x32xf32>
    %165 = tpu.matmul %164, %151, %cst_73 {dimension_numbers = #tpu.dot_dimension_numbers<[2], [1], [1], [2], [0, 0, 0, 1, 1, 2], [0], [0]>} : vector<2x8x8xf32>, vector<2x8x32xf32>, vector<2x8x32xf32> -> vector<2x8x32xf32>
    "tpu.trace_stop"() : () -> ()
    %166 = vector.shape_cast %165 : vector<2x8x32xf32> to vector<16x32xf32>
    %167 = vector.extract_strided_slice %66 {offsets = [96, 0], sizes = [32, 128], strides = [1, 1]} : vector<128x128xf32> to vector<32x128xf32>
    %cst_74 = arith.constant dense<0.000000e+00> : vector<16x128xf32>
    %168 = tpu.matmul %166, %167, %cst_74 {dimension_numbers = #tpu.dot_dimension_numbers<[1], [0], [0], [1], [0, 0, 1, 1], [], []>} : vector<16x32xf32>, vector<32x128xf32>, vector<16x128xf32> -> vector<16x128xf32>
    %169 = arith.addf %143, %168 : vector<16x128xf32>
    %c0_75 = arith.constant 0 : index
    %c0_76 = arith.constant 0 : index
    %c0_77 = arith.constant 0 : index
    %170 = vector.load %arg11[%c0_75, %c0_76, %c0_77] : memref<2x1x128xf32, #tpu.memory_space<vmem>>, vector<1x1x128xf32>
    %171 = vector.shape_cast %170 : vector<1x1x128xf32> to vector<1x128xf32>
    %172 = vector.broadcast %171 : vector<1x128xf32> to vector<16x128xf32>
    %173 = arith.addf %169, %172 : vector<16x128xf32>
    %c0_78 = arith.constant 0 : index
    %c0_79 = arith.constant 0 : index
    %c0_80 = arith.constant 0 : index
    %174 = vector.load %arg12[%c0_78, %c0_79, %c0_80] : memref<2x1x128xf32, #tpu.memory_space<vmem>>, vector<1x1x128xf32>
    %175 = vector.shape_cast %174 : vector<1x1x128xf32> to vector<1x128xf32>
    %176 = vector.broadcast %175 : vector<1x128xf32> to vector<16x128xf32>
    %177 = arith.mulf %176, %173 : vector<16x128xf32>
    %178 = arith.addf %25, %177 : vector<16x128xf32>
    %c0_81 = arith.constant 0 : index
    %c0_82 = arith.constant 0 : index
    %c0_83 = arith.constant 0 : index
    %179 = vector.load %arg13[%c0_81, %c0_82, %c0_83] : memref<2x1x128xf32, #tpu.memory_space<vmem>>, vector<1x1x128xf32>
    %180 = vector.shape_cast %179 : vector<1x1x128xf32> to vector<1x128xf32>
    %c0_84 = arith.constant 0 : index
    %c0_85 = arith.constant 0 : index
    %c0_86 = arith.constant 0 : index
    %181 = vector.load %arg14[%c0_84, %c0_85, %c0_86] : memref<2x1x128xf32, #tpu.memory_space<vmem>>, vector<1x1x128xf32>
    %182 = vector.shape_cast %181 : vector<1x1x128xf32> to vector<1x128xf32>
    %cst_87 = arith.constant dense<0.000000e+00> : vector<16xf32>
    %183 = vector.multi_reduction <add>, %178, %cst_87 [1] : vector<16x128xf32> to vector<16xf32>
    %184 = vector.shape_cast %183 : vector<16xf32> to vector<16x1xf32>
    %cst_88 = arith.constant 1.280000e+02 : f32
    %185 = vector.broadcast %cst_88 : f32 to vector<16x1xf32>
    %186 = arith.divf %184, %185 : vector<16x1xf32>
    %187 = vector.broadcast %186 : vector<16x1xf32> to vector<16x128xf32>
    %188 = arith.subf %178, %187 : vector<16x128xf32>
    %189 = arith.mulf %188, %188 : vector<16x128xf32>
    %cst_89 = arith.constant dense<0.000000e+00> : vector<16xf32>
    %190 = vector.multi_reduction <add>, %189, %cst_89 [1] : vector<16x128xf32> to vector<16xf32>
    %191 = vector.shape_cast %190 : vector<16xf32> to vector<16x1xf32>
    %cst_90 = arith.constant 1.280000e+02 : f32
    %192 = vector.broadcast %cst_90 : f32 to vector<16x1xf32>
    %193 = arith.divf %191, %192 : vector<16x1xf32>
    %194 = vector.broadcast %186 : vector<16x1xf32> to vector<16x128xf32>
    %195 = arith.subf %178, %194 : vector<16x128xf32>
    %cst_91 = arith.constant 9.99999997E-7 : f32
    %196 = vector.broadcast %cst_91 : f32 to vector<16x1xf32>
    %197 = arith.addf %193, %196 : vector<16x1xf32>
    %198 = math.rsqrt %197 : vector<16x1xf32>
    %199 = vector.broadcast %198 : vector<16x1xf32> to vector<16x128xf32>
    %200 = arith.mulf %195, %199 : vector<16x128xf32>
    %201 = vector.broadcast %180 : vector<1x128xf32> to vector<16x128xf32>
    %202 = arith.mulf %200, %201 : vector<16x128xf32>
    %203 = vector.broadcast %182 : vector<1x128xf32> to vector<16x128xf32>
    %204 = arith.addf %202, %203 : vector<16x128xf32>
    %c0_92 = arith.constant 0 : index
    %c0_93 = arith.constant 0 : index
    %c0_94 = arith.constant 0 : index
    %205 = vector.load %arg15[%c0_92, %c0_93, %c0_94] : memref<2x128x512xf32, #tpu.memory_space<vmem>>, vector<1x128x512xf32>
    %206 = vector.shape_cast %205 : vector<1x128x512xf32> to vector<128x512xf32>
    %cst_95 = arith.constant dense<0.000000e+00> : vector<16x512xf32>
    %207 = tpu.matmul %204, %206, %cst_95 {dimension_numbers = #tpu.dot_dimension_numbers<[1], [0], [0], [1], [0, 0, 1, 1], [], []>} : vector<16x128xf32>, vector<128x512xf32>, vector<16x512xf32> -> vector<16x512xf32>
    %c0_96 = arith.constant 0 : index
    %c0_97 = arith.constant 0 : index
    %c0_98 = arith.constant 0 : index
    %208 = vector.load %arg16[%c0_96, %c0_97, %c0_98] : memref<2x1x512xf32, #tpu.memory_space<vmem>>, vector<1x1x512xf32>
    %209 = vector.shape_cast %208 : vector<1x1x512xf32> to vector<1x512xf32>
    %210 = vector.broadcast %209 : vector<1x512xf32> to vector<16x512xf32>
    %211 = arith.addf %207, %210 : vector<16x512xf32>
    %212 = arith.mulf %211, %211 : vector<16x512xf32>
    %213 = arith.mulf %211, %212 : vector<16x512xf32>
    %cst_99 = arith.constant 4.471500e-02 : f32
    %214 = vector.broadcast %cst_99 : f32 to vector<16x512xf32>
    %215 = arith.mulf %214, %213 : vector<16x512xf32>
    %216 = arith.addf %211, %215 : vector<16x512xf32>
    %cst_100 = arith.constant 0.797884583 : f32
    %217 = vector.broadcast %cst_100 : f32 to vector<16x512xf32>
    %218 = arith.mulf %217, %216 : vector<16x512xf32>
    %219 = math.tanh %218 : vector<16x512xf32>
    %cst_101 = arith.constant 1.000000e+00 : f32
    %220 = vector.broadcast %cst_101 : f32 to vector<16x512xf32>
    %221 = arith.addf %220, %219 : vector<16x512xf32>
    %cst_102 = arith.constant 5.000000e-01 : f32
    %222 = vector.broadcast %cst_102 : f32 to vector<16x512xf32>
    %223 = arith.mulf %222, %221 : vector<16x512xf32>
    %224 = arith.mulf %211, %223 : vector<16x512xf32>
    %c0_103 = arith.constant 0 : index
    %c0_104 = arith.constant 0 : index
    %c0_105 = arith.constant 0 : index
    %225 = vector.load %arg17[%c0_103, %c0_104, %c0_105] : memref<2x512x128xf32, #tpu.memory_space<vmem>>, vector<1x512x128xf32>
    %226 = vector.shape_cast %225 : vector<1x512x128xf32> to vector<512x128xf32>
    %cst_106 = arith.constant dense<0.000000e+00> : vector<16x128xf32>
    %227 = tpu.matmul %224, %226, %cst_106 {dimension_numbers = #tpu.dot_dimension_numbers<[1], [0], [0], [1], [0, 0, 1, 1], [], []>} : vector<16x512xf32>, vector<512x128xf32>, vector<16x128xf32> -> vector<16x128xf32>
    %c0_107 = arith.constant 0 : index
    %c0_108 = arith.constant 0 : index
    %c0_109 = arith.constant 0 : index
    %228 = vector.load %arg18[%c0_107, %c0_108, %c0_109] : memref<2x1x128xf32, #tpu.memory_space<vmem>>, vector<1x1x128xf32>
    %229 = vector.shape_cast %228 : vector<1x1x128xf32> to vector<1x128xf32>
    %230 = vector.broadcast %229 : vector<1x128xf32> to vector<16x128xf32>
    %231 = arith.addf %227, %230 : vector<16x128xf32>
    %c0_110 = arith.constant 0 : index
    %c0_111 = arith.constant 0 : index
    %c0_112 = arith.constant 0 : index
    %232 = vector.load %arg19[%c0_110, %c0_111, %c0_112] : memref<2x1x128xf32, #tpu.memory_space<vmem>>, vector<1x1x128xf32>
    %233 = vector.shape_cast %232 : vector<1x1x128xf32> to vector<1x128xf32>
    %234 = vector.broadcast %233 : vector<1x128xf32> to vector<16x128xf32>
    %235 = arith.mulf %234, %231 : vector<16x128xf32>
    %236 = arith.addf %178, %235 : vector<16x128xf32>
    %c1_113 = arith.constant 1 : index
    %c0_114 = arith.constant 0 : index
    %c0_115 = arith.constant 0 : index
    %237 = vector.load %arg6[%c1_113, %c0_114, %c0_115] : memref<2x1x128xf32, #tpu.memory_space<vmem>>, vector<1x1x128xf32>
    %238 = vector.shape_cast %237 : vector<1x1x128xf32> to vector<1x128xf32>
    %c1_116 = arith.constant 1 : index
    %c0_117 = arith.constant 0 : index
    %c0_118 = arith.constant 0 : index
    %239 = vector.load %arg7[%c1_116, %c0_117, %c0_118] : memref<2x1x128xf32, #tpu.memory_space<vmem>>, vector<1x1x128xf32>
    %240 = vector.shape_cast %239 : vector<1x1x128xf32> to vector<1x128xf32>
    %cst_119 = arith.constant dense<0.000000e+00> : vector<16xf32>
    %241 = vector.multi_reduction <add>, %236, %cst_119 [1] : vector<16x128xf32> to vector<16xf32>
    %242 = vector.shape_cast %241 : vector<16xf32> to vector<16x1xf32>
    %cst_120 = arith.constant 1.280000e+02 : f32
    %243 = vector.broadcast %cst_120 : f32 to vector<16x1xf32>
    %244 = arith.divf %242, %243 : vector<16x1xf32>
    %245 = vector.broadcast %244 : vector<16x1xf32> to vector<16x128xf32>
    %246 = arith.subf %236, %245 : vector<16x128xf32>
    %247 = arith.mulf %246, %246 : vector<16x128xf32>
    %cst_121 = arith.constant dense<0.000000e+00> : vector<16xf32>
    %248 = vector.multi_reduction <add>, %247, %cst_121 [1] : vector<16x128xf32> to vector<16xf32>
    %249 = vector.shape_cast %248 : vector<16xf32> to vector<16x1xf32>
    %cst_122 = arith.constant 1.280000e+02 : f32
    %250 = vector.broadcast %cst_122 : f32 to vector<16x1xf32>
    %251 = arith.divf %249, %250 : vector<16x1xf32>
    %252 = vector.broadcast %244 : vector<16x1xf32> to vector<16x128xf32>
    %253 = arith.subf %236, %252 : vector<16x128xf32>
    %cst_123 = arith.constant 9.99999997E-7 : f32
    %254 = vector.broadcast %cst_123 : f32 to vector<16x1xf32>
    %255 = arith.addf %251, %254 : vector<16x1xf32>
    %256 = math.rsqrt %255 : vector<16x1xf32>
    %257 = vector.broadcast %256 : vector<16x1xf32> to vector<16x128xf32>
    %258 = arith.mulf %253, %257 : vector<16x128xf32>
    %259 = vector.broadcast %238 : vector<1x128xf32> to vector<16x128xf32>
    %260 = arith.mulf %258, %259 : vector<16x128xf32>
    %261 = vector.broadcast %240 : vector<1x128xf32> to vector<16x128xf32>
    %262 = arith.addf %260, %261 : vector<16x128xf32>
    %c1_124 = arith.constant 1 : index
    %c0_125 = arith.constant 0 : index
    %c0_126 = arith.constant 0 : index
    %263 = vector.load %arg8[%c1_124, %c0_125, %c0_126] : memref<2x128x384xf32, #tpu.memory_space<vmem>>, vector<1x128x384xf32>
    %264 = vector.shape_cast %263 : vector<1x128x384xf32> to vector<128x384xf32>
    %cst_127 = arith.constant dense<0.000000e+00> : vector<16x384xf32>
    %265 = tpu.matmul %262, %264, %cst_127 {dimension_numbers = #tpu.dot_dimension_numbers<[1], [0], [0], [1], [0, 0, 1, 1], [], []>} : vector<16x128xf32>, vector<128x384xf32>, vector<16x384xf32> -> vector<16x384xf32>
    %c1_128 = arith.constant 1 : index
    %c0_129 = arith.constant 0 : index
    %c0_130 = arith.constant 0 : index
    %266 = vector.load %arg9[%c1_128, %c0_129, %c0_130] : memref<2x1x384xf32, #tpu.memory_space<vmem>>, vector<1x1x384xf32>
    %267 = vector.shape_cast %266 : vector<1x1x384xf32> to vector<1x384xf32>
    %268 = vector.broadcast %267 : vector<1x384xf32> to vector<16x384xf32>
    %269 = arith.addf %265, %268 : vector<16x384xf32>
    %c1_131 = arith.constant 1 : index
    %c0_132 = arith.constant 0 : index
    %c0_133 = arith.constant 0 : index
    %270 = vector.load %arg10[%c1_131, %c0_132, %c0_133] : memref<2x128x128xf32, #tpu.memory_space<vmem>>, vector<1x128x128xf32>
    %271 = vector.shape_cast %270 : vector<1x128x128xf32> to vector<128x128xf32>
    %272 = vector.extract_strided_slice %269 {offsets = [0, 0], sizes = [16, 32], strides = [1, 1]} : vector<16x384xf32> to vector<16x32xf32>
    %273 = vector.shape_cast %272 : vector<16x32xf32> to vector<2x8x32xf32>
    %cst_134 = arith.constant 0.176776692 : f32
    %274 = vector.broadcast %cst_134 : f32 to vector<2x8x32xf32>
    %275 = arith.mulf %273, %274 : vector<2x8x32xf32>
    %276 = vector.extract_strided_slice %269 {offsets = [0, 128], sizes = [16, 32], strides = [1, 1]} : vector<16x384xf32> to vector<16x32xf32>
    %277 = vector.shape_cast %276 : vector<16x32xf32> to vector<2x8x32xf32>
    %278 = vector.extract_strided_slice %269 {offsets = [0, 256], sizes = [16, 32], strides = [1, 1]} : vector<16x384xf32> to vector<16x32xf32>
    %279 = vector.shape_cast %278 : vector<16x32xf32> to vector<2x8x32xf32>
    "tpu.trace_start"() <{level = 10 : i32, message = "bqd,bkd->bqk"}> : () -> ()
    %cst_135 = arith.constant dense<0.000000e+00> : vector<2x8x8xf32>
    %280 = tpu.matmul %275, %277, %cst_135 {dimension_numbers = #tpu.dot_dimension_numbers<[2], [2], [1], [1], [0, 0, 0, 1, 1, 1], [0], [0]>} : vector<2x8x32xf32>, vector<2x8x32xf32>, vector<2x8x8xf32> -> vector<2x8x8xf32>
    "tpu.trace_stop"() : () -> ()
    %281 = vector.broadcast %31 : vector<1x1x8xf32> to vector<2x8x8xf32>
    %282 = arith.addf %280, %281 : vector<2x8x8xf32>
    %cst_136 = arith.constant dense<0xFF800000> : vector<2x8xf32>
    %283 = vector.multi_reduction <maximumf>, %282, %cst_136 [2] : vector<2x8x8xf32> to vector<2x8xf32>
    %284 = vector.shape_cast %283 : vector<2x8xf32> to vector<2x8x1xf32>
    %285 = vector.broadcast %284 : vector<2x8x1xf32> to vector<2x8x8xf32>
    %286 = arith.subf %282, %285 : vector<2x8x8xf32>
    %287 = math.exp %286 : vector<2x8x8xf32>
    %cst_137 = arith.constant dense<0.000000e+00> : vector<2x8xf32>
    %288 = vector.multi_reduction <add>, %287, %cst_137 [2] : vector<2x8x8xf32> to vector<2x8xf32>
    %289 = vector.shape_cast %288 : vector<2x8xf32> to vector<2x8x1xf32>
    %290 = tpu.reciprocal %289 {approx = true} : vector<2x8x1xf32> -> vector<2x8x1xf32>
    %291 = vector.broadcast %290 : vector<2x8x1xf32> to vector<2x8x8xf32>
    %292 = arith.mulf %287, %291 : vector<2x8x8xf32>
    "tpu.trace_start"() <{level = 10 : i32, message = "bqk,bkd->bqd"}> : () -> ()
    %cst_138 = arith.constant dense<0.000000e+00> : vector<2x8x32xf32>
    %293 = tpu.matmul %292, %279, %cst_138 {dimension_numbers = #tpu.dot_dimension_numbers<[2], [1], [1], [2], [0, 0, 0, 1, 1, 2], [0], [0]>} : vector<2x8x8xf32>, vector<2x8x32xf32>, vector<2x8x32xf32> -> vector<2x8x32xf32>
    "tpu.trace_stop"() : () -> ()
    %294 = vector.shape_cast %293 : vector<2x8x32xf32> to vector<16x32xf32>
    %295 = vector.extract_strided_slice %271 {offsets = [0, 0], sizes = [32, 128], strides = [1, 1]} : vector<128x128xf32> to vector<32x128xf32>
    %cst_139 = arith.constant dense<0.000000e+00> : vector<16x128xf32>
    %296 = tpu.matmul %294, %295, %cst_139 {dimension_numbers = #tpu.dot_dimension_numbers<[1], [0], [0], [1], [0, 0, 1, 1], [], []>} : vector<16x32xf32>, vector<32x128xf32>, vector<16x128xf32> -> vector<16x128xf32>
    %297 = vector.extract_strided_slice %269 {offsets = [0, 32], sizes = [16, 32], strides = [1, 1]} : vector<16x384xf32> to vector<16x32xf32>
    %298 = vector.shape_cast %297 : vector<16x32xf32> to vector<2x8x32xf32>
    %cst_140 = arith.constant 0.176776692 : f32
    %299 = vector.broadcast %cst_140 : f32 to vector<2x8x32xf32>
    %300 = arith.mulf %298, %299 : vector<2x8x32xf32>
    %301 = vector.extract_strided_slice %269 {offsets = [0, 160], sizes = [16, 32], strides = [1, 1]} : vector<16x384xf32> to vector<16x32xf32>
    %302 = vector.shape_cast %301 : vector<16x32xf32> to vector<2x8x32xf32>
    %303 = vector.extract_strided_slice %269 {offsets = [0, 288], sizes = [16, 32], strides = [1, 1]} : vector<16x384xf32> to vector<16x32xf32>
    %304 = vector.shape_cast %303 : vector<16x32xf32> to vector<2x8x32xf32>
    "tpu.trace_start"() <{level = 10 : i32, message = "bqd,bkd->bqk"}> : () -> ()
    %cst_141 = arith.constant dense<0.000000e+00> : vector<2x8x8xf32>
    %305 = tpu.matmul %300, %302, %cst_141 {dimension_numbers = #tpu.dot_dimension_numbers<[2], [2], [1], [1], [0, 0, 0, 1, 1, 1], [0], [0]>} : vector<2x8x32xf32>, vector<2x8x32xf32>, vector<2x8x8xf32> -> vector<2x8x8xf32>
    "tpu.trace_stop"() : () -> ()
    %306 = vector.broadcast %31 : vector<1x1x8xf32> to vector<2x8x8xf32>
    %307 = arith.addf %305, %306 : vector<2x8x8xf32>
    %cst_142 = arith.constant dense<0xFF800000> : vector<2x8xf32>
    %308 = vector.multi_reduction <maximumf>, %307, %cst_142 [2] : vector<2x8x8xf32> to vector<2x8xf32>
    %309 = vector.shape_cast %308 : vector<2x8xf32> to vector<2x8x1xf32>
    %310 = vector.broadcast %309 : vector<2x8x1xf32> to vector<2x8x8xf32>
    %311 = arith.subf %307, %310 : vector<2x8x8xf32>
    %312 = math.exp %311 : vector<2x8x8xf32>
    %cst_143 = arith.constant dense<0.000000e+00> : vector<2x8xf32>
    %313 = vector.multi_reduction <add>, %312, %cst_143 [2] : vector<2x8x8xf32> to vector<2x8xf32>
    %314 = vector.shape_cast %313 : vector<2x8xf32> to vector<2x8x1xf32>
    %315 = tpu.reciprocal %314 {approx = true} : vector<2x8x1xf32> -> vector<2x8x1xf32>
    %316 = vector.broadcast %315 : vector<2x8x1xf32> to vector<2x8x8xf32>
    %317 = arith.mulf %312, %316 : vector<2x8x8xf32>
    "tpu.trace_start"() <{level = 10 : i32, message = "bqk,bkd->bqd"}> : () -> ()
    %cst_144 = arith.constant dense<0.000000e+00> : vector<2x8x32xf32>
    %318 = tpu.matmul %317, %304, %cst_144 {dimension_numbers = #tpu.dot_dimension_numbers<[2], [1], [1], [2], [0, 0, 0, 1, 1, 2], [0], [0]>} : vector<2x8x8xf32>, vector<2x8x32xf32>, vector<2x8x32xf32> -> vector<2x8x32xf32>
    "tpu.trace_stop"() : () -> ()
    %319 = vector.shape_cast %318 : vector<2x8x32xf32> to vector<16x32xf32>
    %320 = vector.extract_strided_slice %271 {offsets = [32, 0], sizes = [32, 128], strides = [1, 1]} : vector<128x128xf32> to vector<32x128xf32>
    %cst_145 = arith.constant dense<0.000000e+00> : vector<16x128xf32>
    %321 = tpu.matmul %319, %320, %cst_145 {dimension_numbers = #tpu.dot_dimension_numbers<[1], [0], [0], [1], [0, 0, 1, 1], [], []>} : vector<16x32xf32>, vector<32x128xf32>, vector<16x128xf32> -> vector<16x128xf32>
    %322 = arith.addf %296, %321 : vector<16x128xf32>
    %323 = vector.extract_strided_slice %269 {offsets = [0, 64], sizes = [16, 32], strides = [1, 1]} : vector<16x384xf32> to vector<16x32xf32>
    %324 = vector.shape_cast %323 : vector<16x32xf32> to vector<2x8x32xf32>
    %cst_146 = arith.constant 0.176776692 : f32
    %325 = vector.broadcast %cst_146 : f32 to vector<2x8x32xf32>
    %326 = arith.mulf %324, %325 : vector<2x8x32xf32>
    %327 = vector.extract_strided_slice %269 {offsets = [0, 192], sizes = [16, 32], strides = [1, 1]} : vector<16x384xf32> to vector<16x32xf32>
    %328 = vector.shape_cast %327 : vector<16x32xf32> to vector<2x8x32xf32>
    %329 = vector.extract_strided_slice %269 {offsets = [0, 320], sizes = [16, 32], strides = [1, 1]} : vector<16x384xf32> to vector<16x32xf32>
    %330 = vector.shape_cast %329 : vector<16x32xf32> to vector<2x8x32xf32>
    "tpu.trace_start"() <{level = 10 : i32, message = "bqd,bkd->bqk"}> : () -> ()
    %cst_147 = arith.constant dense<0.000000e+00> : vector<2x8x8xf32>
    %331 = tpu.matmul %326, %328, %cst_147 {dimension_numbers = #tpu.dot_dimension_numbers<[2], [2], [1], [1], [0, 0, 0, 1, 1, 1], [0], [0]>} : vector<2x8x32xf32>, vector<2x8x32xf32>, vector<2x8x8xf32> -> vector<2x8x8xf32>
    "tpu.trace_stop"() : () -> ()
    %332 = vector.broadcast %31 : vector<1x1x8xf32> to vector<2x8x8xf32>
    %333 = arith.addf %331, %332 : vector<2x8x8xf32>
    %cst_148 = arith.constant dense<0xFF800000> : vector<2x8xf32>
    %334 = vector.multi_reduction <maximumf>, %333, %cst_148 [2] : vector<2x8x8xf32> to vector<2x8xf32>
    %335 = vector.shape_cast %334 : vector<2x8xf32> to vector<2x8x1xf32>
    %336 = vector.broadcast %335 : vector<2x8x1xf32> to vector<2x8x8xf32>
    %337 = arith.subf %333, %336 : vector<2x8x8xf32>
    %338 = math.exp %337 : vector<2x8x8xf32>
    %cst_149 = arith.constant dense<0.000000e+00> : vector<2x8xf32>
    %339 = vector.multi_reduction <add>, %338, %cst_149 [2] : vector<2x8x8xf32> to vector<2x8xf32>
    %340 = vector.shape_cast %339 : vector<2x8xf32> to vector<2x8x1xf32>
    %341 = tpu.reciprocal %340 {approx = true} : vector<2x8x1xf32> -> vector<2x8x1xf32>
    %342 = vector.broadcast %341 : vector<2x8x1xf32> to vector<2x8x8xf32>
    %343 = arith.mulf %338, %342 : vector<2x8x8xf32>
    "tpu.trace_start"() <{level = 10 : i32, message = "bqk,bkd->bqd"}> : () -> ()
    %cst_150 = arith.constant dense<0.000000e+00> : vector<2x8x32xf32>
    %344 = tpu.matmul %343, %330, %cst_150 {dimension_numbers = #tpu.dot_dimension_numbers<[2], [1], [1], [2], [0, 0, 0, 1, 1, 2], [0], [0]>} : vector<2x8x8xf32>, vector<2x8x32xf32>, vector<2x8x32xf32> -> vector<2x8x32xf32>
    "tpu.trace_stop"() : () -> ()
    %345 = vector.shape_cast %344 : vector<2x8x32xf32> to vector<16x32xf32>
    %346 = vector.extract_strided_slice %271 {offsets = [64, 0], sizes = [32, 128], strides = [1, 1]} : vector<128x128xf32> to vector<32x128xf32>
    %cst_151 = arith.constant dense<0.000000e+00> : vector<16x128xf32>
    %347 = tpu.matmul %345, %346, %cst_151 {dimension_numbers = #tpu.dot_dimension_numbers<[1], [0], [0], [1], [0, 0, 1, 1], [], []>} : vector<16x32xf32>, vector<32x128xf32>, vector<16x128xf32> -> vector<16x128xf32>
    %348 = arith.addf %322, %347 : vector<16x128xf32>
    %349 = vector.extract_strided_slice %269 {offsets = [0, 96], sizes = [16, 32], strides = [1, 1]} : vector<16x384xf32> to vector<16x32xf32>
    %350 = vector.shape_cast %349 : vector<16x32xf32> to vector<2x8x32xf32>
    %cst_152 = arith.constant 0.176776692 : f32
    %351 = vector.broadcast %cst_152 : f32 to vector<2x8x32xf32>
    %352 = arith.mulf %350, %351 : vector<2x8x32xf32>
    %353 = vector.extract_strided_slice %269 {offsets = [0, 224], sizes = [16, 32], strides = [1, 1]} : vector<16x384xf32> to vector<16x32xf32>
    %354 = vector.shape_cast %353 : vector<16x32xf32> to vector<2x8x32xf32>
    %355 = vector.extract_strided_slice %269 {offsets = [0, 352], sizes = [16, 32], strides = [1, 1]} : vector<16x384xf32> to vector<16x32xf32>
    %356 = vector.shape_cast %355 : vector<16x32xf32> to vector<2x8x32xf32>
    "tpu.trace_start"() <{level = 10 : i32, message = "bqd,bkd->bqk"}> : () -> ()
    %cst_153 = arith.constant dense<0.000000e+00> : vector<2x8x8xf32>
    %357 = tpu.matmul %352, %354, %cst_153 {dimension_numbers = #tpu.dot_dimension_numbers<[2], [2], [1], [1], [0, 0, 0, 1, 1, 1], [0], [0]>} : vector<2x8x32xf32>, vector<2x8x32xf32>, vector<2x8x8xf32> -> vector<2x8x8xf32>
    "tpu.trace_stop"() : () -> ()
    %358 = vector.broadcast %31 : vector<1x1x8xf32> to vector<2x8x8xf32>
    %359 = arith.addf %357, %358 : vector<2x8x8xf32>
    %cst_154 = arith.constant dense<0xFF800000> : vector<2x8xf32>
    %360 = vector.multi_reduction <maximumf>, %359, %cst_154 [2] : vector<2x8x8xf32> to vector<2x8xf32>
    %361 = vector.shape_cast %360 : vector<2x8xf32> to vector<2x8x1xf32>
    %362 = vector.broadcast %361 : vector<2x8x1xf32> to vector<2x8x8xf32>
    %363 = arith.subf %359, %362 : vector<2x8x8xf32>
    %364 = math.exp %363 : vector<2x8x8xf32>
    %cst_155 = arith.constant dense<0.000000e+00> : vector<2x8xf32>
    %365 = vector.multi_reduction <add>, %364, %cst_155 [2] : vector<2x8x8xf32> to vector<2x8xf32>
    %366 = vector.shape_cast %365 : vector<2x8xf32> to vector<2x8x1xf32>
    %367 = tpu.reciprocal %366 {approx = true} : vector<2x8x1xf32> -> vector<2x8x1xf32>
    %368 = vector.broadcast %367 : vector<2x8x1xf32> to vector<2x8x8xf32>
    %369 = arith.mulf %364, %368 : vector<2x8x8xf32>
    "tpu.trace_start"() <{level = 10 : i32, message = "bqk,bkd->bqd"}> : () -> ()
    %cst_156 = arith.constant dense<0.000000e+00> : vector<2x8x32xf32>
    %370 = tpu.matmul %369, %356, %cst_156 {dimension_numbers = #tpu.dot_dimension_numbers<[2], [1], [1], [2], [0, 0, 0, 1, 1, 2], [0], [0]>} : vector<2x8x8xf32>, vector<2x8x32xf32>, vector<2x8x32xf32> -> vector<2x8x32xf32>
    "tpu.trace_stop"() : () -> ()
    %371 = vector.shape_cast %370 : vector<2x8x32xf32> to vector<16x32xf32>
    %372 = vector.extract_strided_slice %271 {offsets = [96, 0], sizes = [32, 128], strides = [1, 1]} : vector<128x128xf32> to vector<32x128xf32>
    %cst_157 = arith.constant dense<0.000000e+00> : vector<16x128xf32>
    %373 = tpu.matmul %371, %372, %cst_157 {dimension_numbers = #tpu.dot_dimension_numbers<[1], [0], [0], [1], [0, 0, 1, 1], [], []>} : vector<16x32xf32>, vector<32x128xf32>, vector<16x128xf32> -> vector<16x128xf32>
    %374 = arith.addf %348, %373 : vector<16x128xf32>
    %c1_158 = arith.constant 1 : index
    %c0_159 = arith.constant 0 : index
    %c0_160 = arith.constant 0 : index
    %375 = vector.load %arg11[%c1_158, %c0_159, %c0_160] : memref<2x1x128xf32, #tpu.memory_space<vmem>>, vector<1x1x128xf32>
    %376 = vector.shape_cast %375 : vector<1x1x128xf32> to vector<1x128xf32>
    %377 = vector.broadcast %376 : vector<1x128xf32> to vector<16x128xf32>
    %378 = arith.addf %374, %377 : vector<16x128xf32>
    %c1_161 = arith.constant 1 : index
    %c0_162 = arith.constant 0 : index
    %c0_163 = arith.constant 0 : index
    %379 = vector.load %arg12[%c1_161, %c0_162, %c0_163] : memref<2x1x128xf32, #tpu.memory_space<vmem>>, vector<1x1x128xf32>
    %380 = vector.shape_cast %379 : vector<1x1x128xf32> to vector<1x128xf32>
    %381 = vector.broadcast %380 : vector<1x128xf32> to vector<16x128xf32>
    %382 = arith.mulf %381, %378 : vector<16x128xf32>
    %383 = arith.addf %236, %382 : vector<16x128xf32>
    %c1_164 = arith.constant 1 : index
    %c0_165 = arith.constant 0 : index
    %c0_166 = arith.constant 0 : index
    %384 = vector.load %arg13[%c1_164, %c0_165, %c0_166] : memref<2x1x128xf32, #tpu.memory_space<vmem>>, vector<1x1x128xf32>
    %385 = vector.shape_cast %384 : vector<1x1x128xf32> to vector<1x128xf32>
    %c1_167 = arith.constant 1 : index
    %c0_168 = arith.constant 0 : index
    %c0_169 = arith.constant 0 : index
    %386 = vector.load %arg14[%c1_167, %c0_168, %c0_169] : memref<2x1x128xf32, #tpu.memory_space<vmem>>, vector<1x1x128xf32>
    %387 = vector.shape_cast %386 : vector<1x1x128xf32> to vector<1x128xf32>
    %cst_170 = arith.constant dense<0.000000e+00> : vector<16xf32>
    %388 = vector.multi_reduction <add>, %383, %cst_170 [1] : vector<16x128xf32> to vector<16xf32>
    %389 = vector.shape_cast %388 : vector<16xf32> to vector<16x1xf32>
    %cst_171 = arith.constant 1.280000e+02 : f32
    %390 = vector.broadcast %cst_171 : f32 to vector<16x1xf32>
    %391 = arith.divf %389, %390 : vector<16x1xf32>
    %392 = vector.broadcast %391 : vector<16x1xf32> to vector<16x128xf32>
    %393 = arith.subf %383, %392 : vector<16x128xf32>
    %394 = arith.mulf %393, %393 : vector<16x128xf32>
    %cst_172 = arith.constant dense<0.000000e+00> : vector<16xf32>
    %395 = vector.multi_reduction <add>, %394, %cst_172 [1] : vector<16x128xf32> to vector<16xf32>
    %396 = vector.shape_cast %395 : vector<16xf32> to vector<16x1xf32>
    %cst_173 = arith.constant 1.280000e+02 : f32
    %397 = vector.broadcast %cst_173 : f32 to vector<16x1xf32>
    %398 = arith.divf %396, %397 : vector<16x1xf32>
    %399 = vector.broadcast %391 : vector<16x1xf32> to vector<16x128xf32>
    %400 = arith.subf %383, %399 : vector<16x128xf32>
    %cst_174 = arith.constant 9.99999997E-7 : f32
    %401 = vector.broadcast %cst_174 : f32 to vector<16x1xf32>
    %402 = arith.addf %398, %401 : vector<16x1xf32>
    %403 = math.rsqrt %402 : vector<16x1xf32>
    %404 = vector.broadcast %403 : vector<16x1xf32> to vector<16x128xf32>
    %405 = arith.mulf %400, %404 : vector<16x128xf32>
    %406 = vector.broadcast %385 : vector<1x128xf32> to vector<16x128xf32>
    %407 = arith.mulf %405, %406 : vector<16x128xf32>
    %408 = vector.broadcast %387 : vector<1x128xf32> to vector<16x128xf32>
    %409 = arith.addf %407, %408 : vector<16x128xf32>
    %c1_175 = arith.constant 1 : index
    %c0_176 = arith.constant 0 : index
    %c0_177 = arith.constant 0 : index
    %410 = vector.load %arg15[%c1_175, %c0_176, %c0_177] : memref<2x128x512xf32, #tpu.memory_space<vmem>>, vector<1x128x512xf32>
    %411 = vector.shape_cast %410 : vector<1x128x512xf32> to vector<128x512xf32>
    %cst_178 = arith.constant dense<0.000000e+00> : vector<16x512xf32>
    %412 = tpu.matmul %409, %411, %cst_178 {dimension_numbers = #tpu.dot_dimension_numbers<[1], [0], [0], [1], [0, 0, 1, 1], [], []>} : vector<16x128xf32>, vector<128x512xf32>, vector<16x512xf32> -> vector<16x512xf32>
    %c1_179 = arith.constant 1 : index
    %c0_180 = arith.constant 0 : index
    %c0_181 = arith.constant 0 : index
    %413 = vector.load %arg16[%c1_179, %c0_180, %c0_181] : memref<2x1x512xf32, #tpu.memory_space<vmem>>, vector<1x1x512xf32>
    %414 = vector.shape_cast %413 : vector<1x1x512xf32> to vector<1x512xf32>
    %415 = vector.broadcast %414 : vector<1x512xf32> to vector<16x512xf32>
    %416 = arith.addf %412, %415 : vector<16x512xf32>
    %417 = arith.mulf %416, %416 : vector<16x512xf32>
    %418 = arith.mulf %416, %417 : vector<16x512xf32>
    %cst_182 = arith.constant 4.471500e-02 : f32
    %419 = vector.broadcast %cst_182 : f32 to vector<16x512xf32>
    %420 = arith.mulf %419, %418 : vector<16x512xf32>
    %421 = arith.addf %416, %420 : vector<16x512xf32>
    %cst_183 = arith.constant 0.797884583 : f32
    %422 = vector.broadcast %cst_183 : f32 to vector<16x512xf32>
    %423 = arith.mulf %422, %421 : vector<16x512xf32>
    %424 = math.tanh %423 : vector<16x512xf32>
    %cst_184 = arith.constant 1.000000e+00 : f32
    %425 = vector.broadcast %cst_184 : f32 to vector<16x512xf32>
    %426 = arith.addf %425, %424 : vector<16x512xf32>
    %cst_185 = arith.constant 5.000000e-01 : f32
    %427 = vector.broadcast %cst_185 : f32 to vector<16x512xf32>
    %428 = arith.mulf %427, %426 : vector<16x512xf32>
    %429 = arith.mulf %416, %428 : vector<16x512xf32>
    %c1_186 = arith.constant 1 : index
    %c0_187 = arith.constant 0 : index
    %c0_188 = arith.constant 0 : index
    %430 = vector.load %arg17[%c1_186, %c0_187, %c0_188] : memref<2x512x128xf32, #tpu.memory_space<vmem>>, vector<1x512x128xf32>
    %431 = vector.shape_cast %430 : vector<1x512x128xf32> to vector<512x128xf32>
    %cst_189 = arith.constant dense<0.000000e+00> : vector<16x128xf32>
    %432 = tpu.matmul %429, %431, %cst_189 {dimension_numbers = #tpu.dot_dimension_numbers<[1], [0], [0], [1], [0, 0, 1, 1], [], []>} : vector<16x512xf32>, vector<512x128xf32>, vector<16x128xf32> -> vector<16x128xf32>
    %c1_190 = arith.constant 1 : index
    %c0_191 = arith.constant 0 : index
    %c0_192 = arith.constant 0 : index
    %433 = vector.load %arg18[%c1_190, %c0_191, %c0_192] : memref<2x1x128xf32, #tpu.memory_space<vmem>>, vector<1x1x128xf32>
    %434 = vector.shape_cast %433 : vector<1x1x128xf32> to vector<1x128xf32>
    %435 = vector.broadcast %434 : vector<1x128xf32> to vector<16x128xf32>
    %436 = arith.addf %432, %435 : vector<16x128xf32>
    %c1_193 = arith.constant 1 : index
    %c0_194 = arith.constant 0 : index
    %c0_195 = arith.constant 0 : index
    %437 = vector.load %arg19[%c1_193, %c0_194, %c0_195] : memref<2x1x128xf32, #tpu.memory_space<vmem>>, vector<1x1x128xf32>
    %438 = vector.shape_cast %437 : vector<1x1x128xf32> to vector<1x128xf32>
    %439 = vector.broadcast %438 : vector<1x128xf32> to vector<16x128xf32>
    %440 = arith.mulf %439, %436 : vector<16x128xf32>
    %441 = arith.addf %383, %440 : vector<16x128xf32>
    %c0_196 = arith.constant 0 : index
    %c0_197 = arith.constant 0 : index
    %442 = vector.load %arg20[%c0_196, %c0_197] : memref<1x128xf32, #tpu.memory_space<vmem>>, vector<1x128xf32>
    %c0_198 = arith.constant 0 : index
    %c0_199 = arith.constant 0 : index
    %443 = vector.load %arg21[%c0_198, %c0_199] : memref<1x128xf32, #tpu.memory_space<vmem>>, vector<1x128xf32>
    %cst_200 = arith.constant dense<0.000000e+00> : vector<16xf32>
    %444 = vector.multi_reduction <add>, %441, %cst_200 [1] : vector<16x128xf32> to vector<16xf32>
    %445 = vector.shape_cast %444 : vector<16xf32> to vector<16x1xf32>
    %cst_201 = arith.constant 1.280000e+02 : f32
    %446 = vector.broadcast %cst_201 : f32 to vector<16x1xf32>
    %447 = arith.divf %445, %446 : vector<16x1xf32>
    %448 = vector.broadcast %447 : vector<16x1xf32> to vector<16x128xf32>
    %449 = arith.subf %441, %448 : vector<16x128xf32>
    %450 = arith.mulf %449, %449 : vector<16x128xf32>
    %cst_202 = arith.constant dense<0.000000e+00> : vector<16xf32>
    %451 = vector.multi_reduction <add>, %450, %cst_202 [1] : vector<16x128xf32> to vector<16xf32>
    %452 = vector.shape_cast %451 : vector<16xf32> to vector<16x1xf32>
    %cst_203 = arith.constant 1.280000e+02 : f32
    %453 = vector.broadcast %cst_203 : f32 to vector<16x1xf32>
    %454 = arith.divf %452, %453 : vector<16x1xf32>
    %455 = vector.broadcast %447 : vector<16x1xf32> to vector<16x128xf32>
    %456 = arith.subf %441, %455 : vector<16x128xf32>
    %cst_204 = arith.constant 9.99999997E-7 : f32
    %457 = vector.broadcast %cst_204 : f32 to vector<16x1xf32>
    %458 = arith.addf %454, %457 : vector<16x1xf32>
    %459 = math.rsqrt %458 : vector<16x1xf32>
    %460 = vector.broadcast %459 : vector<16x1xf32> to vector<16x128xf32>
    %461 = arith.mulf %456, %460 : vector<16x128xf32>
    %462 = vector.broadcast %442 : vector<1x128xf32> to vector<16x128xf32>
    %463 = arith.mulf %461, %462 : vector<16x128xf32>
    %464 = vector.broadcast %443 : vector<1x128xf32> to vector<16x128xf32>
    %465 = arith.addf %463, %464 : vector<16x128xf32>
    %466 = vector.shape_cast %465 : vector<16x128xf32> to vector<2x8x128xf32>
    %c0_205 = arith.constant 0 : index
    %c0_206 = arith.constant 0 : index
    %c0_207 = arith.constant 0 : index
    %467 = vector.load %arg22[%c0_205, %c0_206, %c0_207] : memref<2x8x128xf32, #tpu.memory_space<vmem>>, vector<2x8x128xf32>
    tpu.vector_store %arg22[%c0_205, %c0_206, %c0_207], %466 {strides = array<i32>} : memref<2x8x128xf32, #tpu.memory_space<vmem>>, vector<2x8x128xf32>,
    return
  }
  func.func @transform_0(%arg0: i32) -> (i32, i32, i32) {
    %c0_i32 = arith.constant 0 : i32
    %c0_i32_0 = arith.constant 0 : i32
    %c0_i32_1 = arith.constant 0 : i32
    return %arg0, %c0_i32, %c0_i32_0 : i32, i32, i32
  }
  func.func @transform_1(%arg0: i32) -> (i32, i32) {
    %c0_i32 = arith.constant 0 : i32
    %c0_i32_0 = arith.constant 0 : i32
    %c0_i32_1 = arith.constant 0 : i32
    return %c0_i32, %c0_i32_0 : i32, i32
  }
  func.func @transform_2(%arg0: i32) -> (i32, i32) {
    %c0_i32 = arith.constant 0 : i32
    %c0_i32_0 = arith.constant 0 : i32
    %c0_i32_1 = arith.constant 0 : i32
    return %c0_i32, %c0_i32_0 : i32, i32
  }
  func.func @transform_3(%arg0: i32) -> (i32, i32) {
    %c0_i32 = arith.constant 0 : i32
    %c0_i32_0 = arith.constant 0 : i32
    %c0_i32_1 = arith.constant 0 : i32
    return %c0_i32, %c0_i32_0 : i32, i32
  }
  func.func @transform_4(%arg0: i32) -> (i32, i32) {
    %c0_i32 = arith.constant 0 : i32
    %c0_i32_0 = arith.constant 0 : i32
    %c0_i32_1 = arith.constant 0 : i32
    return %c0_i32, %c0_i32_0 : i32, i32
  }
  func.func @transform_5(%arg0: i32) -> (i32, i32, i32) {
    %c0_i32 = arith.constant 0 : i32
    %c0_i32_0 = arith.constant 0 : i32
    %c0_i32_1 = arith.constant 0 : i32
    %c0_i32_2 = arith.constant 0 : i32
    return %c0_i32, %c0_i32_0, %c0_i32_1 : i32, i32, i32
  }
  func.func @transform_6(%arg0: i32) -> (i32, i32, i32) {
    %c0_i32 = arith.constant 0 : i32
    %c0_i32_0 = arith.constant 0 : i32
    %c0_i32_1 = arith.constant 0 : i32
    %c0_i32_2 = arith.constant 0 : i32
    return %c0_i32, %c0_i32_0, %c0_i32_1 : i32, i32, i32
  }
  func.func @transform_7(%arg0: i32) -> (i32, i32, i32) {
    %c0_i32 = arith.constant 0 : i32
    %c0_i32_0 = arith.constant 0 : i32
    %c0_i32_1 = arith.constant 0 : i32
    %c0_i32_2 = arith.constant 0 : i32
    return %c0_i32, %c0_i32_0, %c0_i32_1 : i32, i32, i32
  }
  func.func @transform_8(%arg0: i32) -> (i32, i32, i32) {
    %c0_i32 = arith.constant 0 : i32
    %c0_i32_0 = arith.constant 0 : i32
    %c0_i32_1 = arith.constant 0 : i32
    %c0_i32_2 = arith.constant 0 : i32
    return %c0_i32, %c0_i32_0, %c0_i32_1 : i32, i32, i32
  }
  func.func @transform_9(%arg0: i32) -> (i32, i32, i32) {
    %c0_i32 = arith.constant 0 : i32
    %c0_i32_0 = arith.constant 0 : i32
    %c0_i32_1 = arith.constant 0 : i32
    %c0_i32_2 = arith.constant 0 : i32
    return %c0_i32, %c0_i32_0, %c0_i32_1 : i32, i32, i32
  }
  func.func @transform_10(%arg0: i32) -> (i32, i32, i32) {
    %c0_i32 = arith.constant 0 : i32
    %c0_i32_0 = arith.constant 0 : i32
    %c0_i32_1 = arith.constant 0 : i32
    %c0_i32_2 = arith.constant 0 : i32
    return %c0_i32, %c0_i32_0, %c0_i32_1 : i32, i32, i32
  }
  func.func @transform_11(%arg0: i32) -> (i32, i32, i32) {
    %c0_i32 = arith.constant 0 : i32
    %c0_i32_0 = arith.constant 0 : i32
    %c0_i32_1 = arith.constant 0 : i32
    %c0_i32_2 = arith.constant 0 : i32
    return %c0_i32, %c0_i32_0, %c0_i32_1 : i32, i32, i32
  }
  func.func @transform_12(%arg0: i32) -> (i32, i32, i32) {
    %c0_i32 = arith.constant 0 : i32
    %c0_i32_0 = arith.constant 0 : i32
    %c0_i32_1 = arith.constant 0 : i32
    %c0_i32_2 = arith.constant 0 : i32
    return %c0_i32, %c0_i32_0, %c0_i32_1 : i32, i32, i32
  }
  func.func @transform_13(%arg0: i32) -> (i32, i32, i32) {
    %c0_i32 = arith.constant 0 : i32
    %c0_i32_0 = arith.constant 0 : i32
    %c0_i32_1 = arith.constant 0 : i32
    %c0_i32_2 = arith.constant 0 : i32
    return %c0_i32, %c0_i32_0, %c0_i32_1 : i32, i32, i32
  }
  func.func @transform_14(%arg0: i32) -> (i32, i32, i32) {
    %c0_i32 = arith.constant 0 : i32
    %c0_i32_0 = arith.constant 0 : i32
    %c0_i32_1 = arith.constant 0 : i32
    %c0_i32_2 = arith.constant 0 : i32
    return %c0_i32, %c0_i32_0, %c0_i32_1 : i32, i32, i32
  }
  func.func @transform_15(%arg0: i32) -> (i32, i32, i32) {
    %c0_i32 = arith.constant 0 : i32
    %c0_i32_0 = arith.constant 0 : i32
    %c0_i32_1 = arith.constant 0 : i32
    %c0_i32_2 = arith.constant 0 : i32
    return %c0_i32, %c0_i32_0, %c0_i32_1 : i32, i32, i32
  }
  func.func @transform_16(%arg0: i32) -> (i32, i32, i32) {
    %c0_i32 = arith.constant 0 : i32
    %c0_i32_0 = arith.constant 0 : i32
    %c0_i32_1 = arith.constant 0 : i32
    %c0_i32_2 = arith.constant 0 : i32
    return %c0_i32, %c0_i32_0, %c0_i32_1 : i32, i32, i32
  }
  func.func @transform_17(%arg0: i32) -> (i32, i32, i32) {
    %c0_i32 = arith.constant 0 : i32
    %c0_i32_0 = arith.constant 0 : i32
    %c0_i32_1 = arith.constant 0 : i32
    %c0_i32_2 = arith.constant 0 : i32
    return %c0_i32, %c0_i32_0, %c0_i32_1 : i32, i32, i32
  }
  func.func @transform_18(%arg0: i32) -> (i32, i32, i32) {
    %c0_i32 = arith.constant 0 : i32
    %c0_i32_0 = arith.constant 0 : i32
    %c0_i32_1 = arith.constant 0 : i32
    %c0_i32_2 = arith.constant 0 : i32
    return %c0_i32, %c0_i32_0, %c0_i32_1 : i32, i32, i32
  }
  func.func @transform_19(%arg0: i32) -> (i32, i32) {
    %c0_i32 = arith.constant 0 : i32
    %c0_i32_0 = arith.constant 0 : i32
    %c0_i32_1 = arith.constant 0 : i32
    return %c0_i32, %c0_i32_0 : i32, i32
  }
  func.func @transform_20(%arg0: i32) -> (i32, i32) {
    %c0_i32 = arith.constant 0 : i32
    %c0_i32_0 = arith.constant 0 : i32
    %c0_i32_1 = arith.constant 0 : i32
    return %c0_i32, %c0_i32_0 : i32, i32
  }
  func.func @transform_21(%arg0: i32) -> (i32, i32, i32) {
    %c0_i32 = arith.constant 0 : i32
    %c0_i32_0 = arith.constant 0 : i32
    %c0_i32_1 = arith.constant 0 : i32
    return %arg0, %c0_i32, %c0_i32_0 : i32, i32, i32
  }
}

</mosaic_0001>

<llo_original>
// kernel: tpu_custom_call.1
$region0: #{tpu_custom_call.1}
  #allocation0 [shape = 'u32[]', space=smem, size = 0x4, offset = 0x4, fixed_abs, tag = 'smem constant byte address 0x4 - core index']
  #allocation1 [shape = 'u32[72,128]{1,0:T(1,128)}', space=vmem, size = 0x9000, scoped, tag = 'internal scratch']
  #allocation2 [shape = 'f32[16,128]{1,0:T(8,128)}', space=vmem, size = 0x2000, scoped, tag = 'scratch operand']
  %s0 = inlined_call_operand.hbm [shape: f32[4,4,768], index: 0, kind: input, shape index: {}]
  %s1 = inlined_call_operand.hbm [shape: f32[1,128], index: 1, kind: input, shape index: {}]
  %s2 = inlined_call_operand.hbm [shape: f32[5,128], index: 2, kind: input, shape index: {}]
  %s3 = inlined_call_operand.hbm [shape: f32[768,128], index: 3, kind: input, shape index: {}]
  %s4 = inlined_call_operand.hbm [shape: f32[1,128], index: 4, kind: input, shape index: {}]
  %s5 = inlined_call_operand.hbm [shape: f32[2,1,128], index: 5, kind: input, shape index: {}]
  %s6 = inlined_call_operand.hbm [shape: f32[2,1,128], index: 6, kind: input, shape index: {}]
  %s7 = inlined_call_operand.hbm [shape: f32[2,128,384], index: 7, kind: input, shape index: {}]
  %s8 = inlined_call_operand.vmem [shape: f32[2,1,384], index: 8, kind: input, shape index: {}]
  %s9 = inlined_call_operand.hbm [shape: f32[2,128,128], index: 9, kind: input, shape index: {}]
  %s10 = inlined_call_operand.hbm [shape: f32[2,1,128], index: 10, kind: input, shape index: {}]
  %s11 = inlined_call_operand.hbm [shape: f32[2,1,128], index: 11, kind: input, shape index: {}]
  %s12 = inlined_call_operand.hbm [shape: f32[2,1,128], index: 12, kind: input, shape index: {}]
  %s13 = inlined_call_operand.hbm [shape: f32[2,1,128], index: 13, kind: input, shape index: {}]
  %s14 = inlined_call_operand.hbm [shape: f32[2,128,512], index: 14, kind: input, shape index: {}]
  %s15 = inlined_call_operand.vmem [shape: f32[2,1,512], index: 15, kind: input, shape index: {}]
  %s16 = inlined_call_operand.hbm [shape: f32[2,512,128], index: 16, kind: input, shape index: {}]
  %s17 = inlined_call_operand.vmem [shape: f32[2,1,128], index: 17, kind: input, shape index: {}]
  %s18 = inlined_call_operand.hbm [shape: f32[2,1,128], index: 18, kind: input, shape index: {}]
  %s19 = inlined_call_operand.vmem [shape: f32[1,128], index: 19, kind: input, shape index: {}]
  %s20 = inlined_call_operand.vmem [shape: f32[1,128], index: 20, kind: input, shape index: {}]
  %s21 = inlined_call_operand.hbm [shape: f32[4,8,128], index: 21, kind: output, shape index: {}]
  %s22 = sld [smem:[#allocation0]]
  $region181: #{tpu_custom_call.1} parent=0
    _
  %s24 = ssub.s32 1, %s22
  %s25 = scalar_select 0, %s24, %s22
  $region1: #{tpu_custom_call.1} parent=0
    #allocation3 [shape = 'u8[49152]{0}', space=vmem, size = 0xc000, scoped, tag = 'input window, operand 0']
    #allocation4 [shape = 's32[2]{0}', space=sflag, size = 0x8, scoped, tag = 'scoped memory for tpu_custom_call.1']
    #allocation5 [shape = 's32[2]{0}', space=sflag, size = 0x8, scoped, tag = 'scoped memory for tpu_custom_call.1']
    #allocation6 [shape = 'u8[512]{0}', space=vmem, size = 0x400, scoped, tag = 'input window, operand 1, single buffered']
    #allocation7 [shape = 's32[1]{0}', space=sflag, size = 0x4, scoped, tag = 'scoped memory for tpu_custom_call.1']
    #allocation8 [shape = 'u8[4096]{0}', space=vmem, size = 0x1000, scoped, tag = 'input window, operand 2, single buffered']
    #allocation9 [shape = 'u8[393216]{0}', space=vmem, size = 0x60000, scoped, tag = 'input window, operand 3, single buffered']
    #allocation10 [shape = 's32[1]{0}', space=sflag, size = 0x4, scoped, tag = 'scoped memory for tpu_custom_call.1']
    #allocation11 [shape = 'u8[512]{0}', space=vmem, size = 0x400, scoped, tag = 'input window, operand 4, single buffered']
    #allocation12 [shape = 'u8[1024]{0}', space=vmem, size = 0x400, scoped, tag = 'input window, operand 5, single buffered']
    #allocation13 [shape = 's32[1]{0}', space=sflag, size = 0x4, scoped, tag = 'scoped memory for tpu_custom_call.1']
    #allocation14 [shape = 'u8[1024]{0}', space=vmem, size = 0x400, scoped, tag = 'input window, operand 6, single buffered']
    #allocation15 [shape = 'u8[393216]{0}', space=vmem, size = 0x60000, scoped, tag = 'input window, operand 7, single buffered']
    #allocation16 [shape = 's32[1]{0}', space=sflag, size = 0x4, scoped, tag = 'scoped memory for tpu_custom_call.1']
    #allocation17 [shape = 'u8[131072]{0}', space=vmem, size = 0x20000, scoped, tag = 'input window, operand 9, single buffered']
    #allocation18 [shape = 'u8[1024]{0}', space=vmem, size = 0x400, scoped, tag = 'input window, operand 10, single buffered']
    #allocation19 [shape = 's32[1]{0}', space=sflag, size = 0x4, scoped, tag = 'scoped memory for tpu_custom_call.1']
    #allocation20 [shape = 'u8[1024]{0}', space=vmem, size = 0x400, scoped, tag = 'input window, operand 11, single buffered']
    #allocation21 [shape = 'u8[1024]{0}', space=vmem, size = 0x400, scoped, tag = 'input window, operand 12, single buffered']
    #allocation22 [shape = 's32[1]{0}', space=sflag, size = 0x4, scoped, tag = 'scoped memory for tpu_custom_call.1']
    #allocation23 [shape = 'u8[1024]{0}', space=vmem, size = 0x400, scoped, tag = 'input window, operand 13, single buffered']
    #allocation24 [shape = 'u8[524288]{0}', space=vmem, size = 0x80000, scoped, tag = 'input window, operand 14, single buffered']
    #allocation25 [shape = 's32[1]{0}', space=sflag, size = 0x4, scoped, tag = 'scoped memory for tpu_custom_call.1']
    #allocation26 [shape = 'u8[524288]{0}', space=vmem, size = 0x80000, scoped, tag = 'input window, operand 16, single buffered']
    #allocation27 [shape = 'u8[1024]{0}', space=vmem, size = 0x400, scoped, tag = 'input window, operand 18, single buffered']
    #allocation28 [shape = 's32[1]{0}', space=sflag, size = 0x4, scoped, tag = 'scoped memory for tpu_custom_call.1']
    #allocation29 [shape = 'u8[16384]{0}', space=vmem, size = 0x4000, scoped, tag = 'output window, operand 0']
    %26 = vsyncpa [#allocation4], 0
    %s27 = scalar_lea.sflag [#allocation4], 1
    %28 = vsyncpa %s27, 0
    %29 = vsyncpa [#allocation7], 0
    %30 = vsyncpa [#allocation10], 0
    %31 = vsyncpa [#allocation13], 0
    %32 = vsyncpa [#allocation16], 0
    %33 = vsyncpa [#allocation19], 0
    %34 = vsyncpa [#allocation22], 0
    %35 = vsyncpa [#allocation25], 0
    %36 = vsyncpa [#allocation28], 0
    %37 = vsyncpa [#allocation5], 0
    %s38 = scalar_lea.sflag [#allocation5], 1
    %39 = vsyncpa %s38, 0
    loop: start=0, step=1, limit=4
    $region2: #{tpu_custom_call.1} parent=1 // loop_pre_header
      _
    $region3: #{tpu_custom_call.1} parent=1 // loop_header
      %s41 = sphi 0, %s45
      %p42 = scmp.ge.s32.totalorder %s41, 4
      %s51 = sphi 0, %s53
      %s54 = sphi 0, %s51
      %s55 = sphi 0, %s54
      %s71 = sphi 0, %s55
      %s75 = sphi 0, %s75
      %s77 = sphi 0, %s75
      %s78 = sphi 0, %s77
      %s92 = sphi 0, %s78
      %s96 = sphi 0, %s96
      %s98 = sphi 0, %s96
      %s99 = sphi 0, %s98
      %s113 = sphi 0, %s99
      %s117 = sphi 0, %s117
      %s119 = sphi 0, %s117
      %s120 = sphi 0, %s119
      %s134 = sphi 0, %s120
      %s138 = sphi 0, %s138
      %s140 = sphi 0, %s138
      %s141 = sphi 0, %s140
      %s155 = sphi 0, %s141
      %s159 = sphi 0, %s159
      %s161 = sphi 0, %s159
      %s162 = sphi 0, %s161
      %s176 = sphi 0, %s162
      %s180 = sphi 0, %s180
      %s182 = sphi 0, %s180
      %s183 = sphi 0, %s182
      %s197 = sphi 0, %s183
      %s201 = sphi 0, %s201
      %s203 = sphi 0, %s201
      %s204 = sphi 0, %s203
      %s218 = sphi 0, %s204
      %s222 = sphi 0, %s222
      %s224 = sphi 0, %s222
      %s225 = sphi 0, %s224
      %s239 = sphi 0, %s225
      %s243 = sphi 0, %s243
      %s245 = sphi 0, %s243
      %s246 = sphi 0, %s245
      %s260 = sphi 0, %s246
      %s264 = sphi 0, %s264
      %s266 = sphi 0, %s264
      %s267 = sphi 0, %s266
      %s281 = sphi 0, %s267
      %s285 = sphi 0, %s285
      %s287 = sphi 0, %s285
      %s288 = sphi 0, %s287
      %s302 = sphi 0, %s288
      %s306 = sphi 0, %s306
      %s308 = sphi 0, %s306
      %s309 = sphi 0, %s308
      %s323 = sphi 0, %s309
      %s327 = sphi 0, %s327
      %s329 = sphi 0, %s327
      %s330 = sphi 0, %s329
      %s344 = sphi 0, %s330
      %s348 = sphi 0, %s348
      %s350 = sphi 0, %s348
      %s351 = sphi 0, %s350
      %s365 = sphi 0, %s351
      %s369 = sphi 0, %s369
      %s371 = sphi 0, %s369
      %s372 = sphi 0, %s371
      %s386 = sphi 0, %s372
      %s390 = sphi 0, %s390
      %s392 = sphi 0, %s390
      %s393 = sphi 0, %s392
      %s407 = sphi 0, %s393
      %s411 = sphi 0, %s411
      %s413 = sphi 0, %s411
      %s414 = sphi 0, %s413
      %s428 = sphi 0, %s414
      %s432 = sphi 0, %s432
      %s434 = sphi 0, %s432
      %s435 = sphi 0, %s434
      %s449 = sphi 0, %s435
      %s453 = sphi 0, %s453
      %s455 = sphi 0, %s453
      %s456 = sphi 0, %s455
      %s470 = sphi 0, %s456
      %s474 = sphi 0, %s474
      %s476 = sphi 0, %s474
      %s477 = sphi 0, %s476
      %s491 = sphi 0, %s477
      %s497 = sphi 0, %s499
      %s500 = sphi 0, %s497
      %s501 = sphi 0, %s500
      %s517 = sphi 0, %s501
    $region4: #{tpu_custom_call.1} parent=1 // loop_header_branch
      %44 = sbr.rel (%p42) target = $region8
    $region5: #{tpu_custom_call.1} parent=1 // loop_body
      %s46 = ssub.s32 %s41, 1
      %s47 = ssub.s32 %s41, 2
      %s48 = sadd.s32 %s41, 1
      %s49 = ssub.s32 %s41, %s48
      %p50 = scmp.eq.s32.totalorder %s49, 0
      %s52 = sadd.s32 %s51, 1
      %s53 = scalar_select %p50, %s51, %s52
      %p56 = pneg %p50
      %p57 = scmp.eq.s32.totalorder %s41, 1
      %p58 = por %p56, %p57
      %p59 = scmp.ne.s32.totalorder %s51, %s54
      %p60 = scmp.eq.s32.totalorder %s41, 0
      %p61 = por %p59, %p60
      %p62 = scmp.ne.s32.totalorder %s51, %s54
      %p63 = scmp.eq.s32.totalorder %s46, 1
      %p64 = por %p62, %p63
      %p65 = scmp.ne.s32.totalorder %s54, %s55
      %p66 = scmp.eq.s32.totalorder %s46, 0
      %p67 = por %p65, %p66
      %p68 = scmp.ne.s32.totalorder %s54, %s55
      %p69 = scmp.eq.s32.totalorder %s47, 1
      %p70 = por %p68, %p69
      %p72 = scmp.ne.s32.totalorder %s55, %s71
      %p73 = scmp.eq.s32.totalorder %s47, 0
      %p74 = por %p72, %p73
      %s76 = sadd.s32 %s75, 1
      %p79 = scmp.eq.s32.totalorder %s41, 1
      %p80 = scmp.ne.s32.totalorder %s75, %s77
      %p81 = scmp.eq.s32.totalorder %s41, 0
      %p82 = por %p80, %p81
      %p83 = scmp.ne.s32.totalorder %s75, %s77
      %p84 = scmp.eq.s32.totalorder %s46, 1
      %p85 = por %p83, %p84
      %p86 = scmp.ne.s32.totalorder %s77, %s78
      %p87 = scmp.eq.s32.totalorder %s46, 0
      %p88 = por %p86, %p87
      %p89 = scmp.ne.s32.totalorder %s77, %s78
      %p90 = scmp.eq.s32.totalorder %s47, 1
      %p91 = por %p89, %p90
      %p93 = scmp.ne.s32.totalorder %s78, %s92
      %p94 = scmp.eq.s32.totalorder %s47, 0
      %p95 = por %p93, %p94
      %s97 = sadd.s32 %s96, 1
      %p100 = scmp.eq.s32.totalorder %s41, 1
      %p101 = scmp.ne.s32.totalorder %s96, %s98
      %p102 = scmp.eq.s32.totalorder %s41, 0
      %p103 = por %p101, %p102
      %p104 = scmp.ne.s32.totalorder %s96, %s98
      %p105 = scmp.eq.s32.totalorder %s46, 1
      %p106 = por %p104, %p105
      %p107 = scmp.ne.s32.totalorder %s98, %s99
      %p108 = scmp.eq.s32.totalorder %s46, 0
      %p109 = por %p107, %p108
      %p110 = scmp.ne.s32.totalorder %s98, %s99
      %p111 = scmp.eq.s32.totalorder %s47, 1
      %p112 = por %p110, %p111
      %p114 = scmp.ne.s32.totalorder %s99, %s113
      %p115 = scmp.eq.s32.totalorder %s47, 0
      %p116 = por %p114, %p115
      %s118 = sadd.s32 %s117, 1
      %p121 = scmp.eq.s32.totalorder %s41, 1
      %p122 = scmp.ne.s32.totalorder %s117, %s119
      %p123 = scmp.eq.s32.totalorder %s41, 0
      %p124 = por %p122, %p123
      %p125 = scmp.ne.s32.totalorder %s117, %s119
      %p126 = scmp.eq.s32.totalorder %s46, 1
      %p127 = por %p125, %p126
      %p128 = scmp.ne.s32.totalorder %s119, %s120
      %p129 = scmp.eq.s32.totalorder %s46, 0
      %p130 = por %p128, %p129
      %p131 = scmp.ne.s32.totalorder %s119, %s120
      %p132 = scmp.eq.s32.totalorder %s47, 1
      %p133 = por %p131, %p132
      %p135 = scmp.ne.s32.totalorder %s120, %s134
      %p136 = scmp.eq.s32.totalorder %s47, 0
      %p137 = por %p135, %p136
      %s139 = sadd.s32 %s138, 1
      %p142 = scmp.eq.s32.totalorder %s41, 1
      %p143 = scmp.ne.s32.totalorder %s138, %s140
      %p144 = scmp.eq.s32.totalorder %s41, 0
      %p145 = por %p143, %p144
      %p146 = scmp.ne.s32.totalorder %s138, %s140
      %p147 = scmp.eq.s32.totalorder %s46, 1
      %p148 = por %p146, %p147
      %p149 = scmp.ne.s32.totalorder %s140, %s141
      %p150 = scmp.eq.s32.totalorder %s46, 0
      %p151 = por %p149, %p150
      %p152 = scmp.ne.s32.totalorder %s140, %s141
      %p153 = scmp.eq.s32.totalorder %s47, 1
      %p154 = por %p152, %p153
      %p156 = scmp.ne.s32.totalorder %s141, %s155
      %p157 = scmp.eq.s32.totalorder %s47, 0
      %p158 = por %p156, %p157
      %s160 = sadd.s32 %s159, 1
      %p163 = scmp.eq.s32.totalorder %s41, 1
      %p164 = scmp.ne.s32.totalorder %s159, %s161
      %p165 = scmp.eq.s32.totalorder %s41, 0
      %p166 = por %p164, %p165
      %p167 = scmp.ne.s32.totalorder %s159, %s161
      %p168 = scmp.eq.s32.totalorder %s46, 1
      %p169 = por %p167, %p168
      %p170 = scmp.ne.s32.totalorder %s161, %s162
      %p171 = scmp.eq.s32.totalorder %s46, 0
      %p172 = por %p170, %p171
      %p173 = scmp.ne.s32.totalorder %s161, %s162
      %p174 = scmp.eq.s32.totalorder %s47, 1
      %p175 = por %p173, %p174
      %p177 = scmp.ne.s32.totalorder %s162, %s176
      %p178 = scmp.eq.s32.totalorder %s47, 0
      %p179 = por %p177, %p178
      %s181 = sadd.s32 %s180, 1
      %p184 = scmp.eq.s32.totalorder %s41, 1
      %p185 = scmp.ne.s32.totalorder %s180, %s182
      %p186 = scmp.eq.s32.totalorder %s41, 0
      %p187 = por %p185, %p186
      %p188 = scmp.ne.s32.totalorder %s180, %s182
      %p189 = scmp.eq.s32.totalorder %s46, 1
      %p190 = por %p188, %p189
      %p191 = scmp.ne.s32.totalorder %s182, %s183
      %p192 = scmp.eq.s32.totalorder %s46, 0
      %p193 = por %p191, %p192
      %p194 = scmp.ne.s32.totalorder %s182, %s183
      %p195 = scmp.eq.s32.totalorder %s47, 1
      %p196 = por %p194, %p195
      %p198 = scmp.ne.s32.totalorder %s183, %s197
      %p199 = scmp.eq.s32.totalorder %s47, 0
      %p200 = por %p198, %p199
      %s202 = sadd.s32 %s201, 1
      %p205 = scmp.eq.s32.totalorder %s41, 1
      %p206 = scmp.ne.s32.totalorder %s201, %s203
      %p207 = scmp.eq.s32.totalorder %s41, 0
      %p208 = por %p206, %p207
      %p209 = scmp.ne.s32.totalorder %s201, %s203
      %p210 = scmp.eq.s32.totalorder %s46, 1
      %p211 = por %p209, %p210
      %p212 = scmp.ne.s32.totalorder %s203, %s204
      %p213 = scmp.eq.s32.totalorder %s46, 0
      %p214 = por %p212, %p213
      %p215 = scmp.ne.s32.totalorder %s203, %s204
      %p216 = scmp.eq.s32.totalorder %s47, 1
      %p217 = por %p215, %p216
      %p219 = scmp.ne.s32.totalorder %s204, %s218
      %p220 = scmp.eq.s32.totalorder %s47, 0
      %p221 = por %p219, %p220
      %s223 = sadd.s32 %s222, 1
      %p226 = scmp.eq.s32.totalorder %s41, 1
      %p227 = scmp.ne.s32.totalorder %s222, %s224
      %p228 = scmp.eq.s32.totalorder %s41, 0
      %p229 = por %p227, %p228
      %p230 = scmp.ne.s32.totalorder %s222, %s224
      %p231 = scmp.eq.s32.totalorder %s46, 1
      %p232 = por %p230, %p231
      %p233 = scmp.ne.s32.totalorder %s224, %s225
      %p234 = scmp.eq.s32.totalorder %s46, 0
      %p235 = por %p233, %p234
      %p236 = scmp.ne.s32.totalorder %s224, %s225
      %p237 = scmp.eq.s32.totalorder %s47, 1
      %p238 = por %p236, %p237
      %p240 = scmp.ne.s32.totalorder %s225, %s239
      %p241 = scmp.eq.s32.totalorder %s47, 0
      %p242 = por %p240, %p241
      %s244 = sadd.s32 %s243, 1
      %p247 = scmp.eq.s32.totalorder %s41, 1
      %p248 = scmp.ne.s32.totalorder %s243, %s245
      %p249 = scmp.eq.s32.totalorder %s41, 0
      %p250 = por %p248, %p249
      %p251 = scmp.ne.s32.totalorder %s243, %s245
      %p252 = scmp.eq.s32.totalorder %s46, 1
      %p253 = por %p251, %p252
      %p254 = scmp.ne.s32.totalorder %s245, %s246
      %p255 = scmp.eq.s32.totalorder %s46, 0
      %p256 = por %p254, %p255
      %p257 = scmp.ne.s32.totalorder %s245, %s246
      %p258 = scmp.eq.s32.totalorder %s47, 1
      %p259 = por %p257, %p258
      %p261 = scmp.ne.s32.totalorder %s246, %s260
      %p262 = scmp.eq.s32.totalorder %s47, 0
      %p263 = por %p261, %p262
      %s265 = sadd.s32 %s264, 1
      %p268 = scmp.eq.s32.totalorder %s41, 1
      %p269 = scmp.ne.s32.totalorder %s264, %s266
      %p270 = scmp.eq.s32.totalorder %s41, 0
      %p271 = por %p269, %p270
      %p272 = scmp.ne.s32.totalorder %s264, %s266
      %p273 = scmp.eq.s32.totalorder %s46, 1
      %p274 = por %p272, %p273
      %p275 = scmp.ne.s32.totalorder %s266, %s267
      %p276 = scmp.eq.s32.totalorder %s46, 0
      %p277 = por %p275, %p276
      %p278 = scmp.ne.s32.totalorder %s266, %s267
      %p279 = scmp.eq.s32.totalorder %s47, 1
      %p280 = por %p278, %p279
      %p282 = scmp.ne.s32.totalorder %s267, %s281
      %p283 = scmp.eq.s32.totalorder %s47, 0
      %p284 = por %p282, %p283
      %s286 = sadd.s32 %s285, 1
      %p289 = scmp.eq.s32.totalorder %s41, 1
      %p290 = scmp.ne.s32.totalorder %s285, %s287
      %p291 = scmp.eq.s32.totalorder %s41, 0
      %p292 = por %p290, %p291
      %p293 = scmp.ne.s32.totalorder %s285, %s287
      %p294 = scmp.eq.s32.totalorder %s46, 1
      %p295 = por %p293, %p294
      %p296 = scmp.ne.s32.totalorder %s287, %s288
      %p297 = scmp.eq.s32.totalorder %s46, 0
      %p298 = por %p296, %p297
      %p299 = scmp.ne.s32.totalorder %s287, %s288
      %p300 = scmp.eq.s32.totalorder %s47, 1
      %p301 = por %p299, %p300
      %p303 = scmp.ne.s32.totalorder %s288, %s302
      %p304 = scmp.eq.s32.totalorder %s47, 0
      %p305 = por %p303, %p304
      %s307 = sadd.s32 %s306, 1
      %p310 = scmp.eq.s32.totalorder %s41, 1
      %p311 = scmp.ne.s32.totalorder %s306, %s308
      %p312 = scmp.eq.s32.totalorder %s41, 0
      %p313 = por %p311, %p312
      %p314 = scmp.ne.s32.totalorder %s306, %s308
      %p315 = scmp.eq.s32.totalorder %s46, 1
      %p316 = por %p314, %p315
      %p317 = scmp.ne.s32.totalorder %s308, %s309
      %p318 = scmp.eq.s32.totalorder %s46, 0
      %p319 = por %p317, %p318
      %p320 = scmp.ne.s32.totalorder %s308, %s309
      %p321 = scmp.eq.s32.totalorder %s47, 1
      %p322 = por %p320, %p321
      %p324 = scmp.ne.s32.totalorder %s309, %s323
      %p325 = scmp.eq.s32.totalorder %s47, 0
      %p326 = por %p324, %p325
      %s328 = sadd.s32 %s327, 1
      %p331 = scmp.eq.s32.totalorder %s41, 1
      %p332 = scmp.ne.s32.totalorder %s327, %s329
      %p333 = scmp.eq.s32.totalorder %s41, 0
      %p334 = por %p332, %p333
      %p335 = scmp.ne.s32.totalorder %s327, %s329
      %p336 = scmp.eq.s32.totalorder %s46, 1
      %p337 = por %p335, %p336
      %p338 = scmp.ne.s32.totalorder %s329, %s330
      %p339 = scmp.eq.s32.totalorder %s46, 0
      %p340 = por %p338, %p339
      %p341 = scmp.ne.s32.totalorder %s329, %s330
      %p342 = scmp.eq.s32.totalorder %s47, 1
      %p343 = por %p341, %p342
      %p345 = scmp.ne.s32.totalorder %s330, %s344
      %p346 = scmp.eq.s32.totalorder %s47, 0
      %p347 = por %p345, %p346
      %s349 = sadd.s32 %s348, 1
      %p352 = scmp.eq.s32.totalorder %s41, 1
      %p353 = scmp.ne.s32.totalorder %s348, %s350
      %p354 = scmp.eq.s32.totalorder %s41, 0
      %p355 = por %p353, %p354
      %p356 = scmp.ne.s32.totalorder %s348, %s350
      %p357 = scmp.eq.s32.totalorder %s46, 1
      %p358 = por %p356, %p357
      %p359 = scmp.ne.s32.totalorder %s350, %s351
      %p360 = scmp.eq.s32.totalorder %s46, 0
      %p361 = por %p359, %p360
      %p362 = scmp.ne.s32.totalorder %s350, %s351
      %p363 = scmp.eq.s32.totalorder %s47, 1
      %p364 = por %p362, %p363
      %p366 = scmp.ne.s32.totalorder %s351, %s365
      %p367 = scmp.eq.s32.totalorder %s47, 0
      %p368 = por %p366, %p367
      %s370 = sadd.s32 %s369, 1
      %p373 = scmp.eq.s32.totalorder %s41, 1
      %p374 = scmp.ne.s32.totalorder %s369, %s371
      %p375 = scmp.eq.s32.totalorder %s41, 0
      %p376 = por %p374, %p375
      %p377 = scmp.ne.s32.totalorder %s369, %s371
      %p378 = scmp.eq.s32.totalorder %s46, 1
      %p379 = por %p377, %p378
      %p380 = scmp.ne.s32.totalorder %s371, %s372
      %p381 = scmp.eq.s32.totalorder %s46, 0
      %p382 = por %p380, %p381
      %p383 = scmp.ne.s32.totalorder %s371, %s372
      %p384 = scmp.eq.s32.totalorder %s47, 1
      %p385 = por %p383, %p384
      %p387 = scmp.ne.s32.totalorder %s372, %s386
      %p388 = scmp.eq.s32.totalorder %s47, 0
      %p389 = por %p387, %p388
      %s391 = sadd.s32 %s390, 1
      %p394 = scmp.eq.s32.totalorder %s41, 1
      %p395 = scmp.ne.s32.totalorder %s390, %s392
      %p396 = scmp.eq.s32.totalorder %s41, 0
      %p397 = por %p395, %p396
      %p398 = scmp.ne.s32.totalorder %s390, %s392
      %p399 = scmp.eq.s32.totalorder %s46, 1
      %p400 = por %p398, %p399
      %p401 = scmp.ne.s32.totalorder %s392, %s393
      %p402 = scmp.eq.s32.totalorder %s46, 0
      %p403 = por %p401, %p402
      %p404 = scmp.ne.s32.totalorder %s392, %s393
      %p405 = scmp.eq.s32.totalorder %s47, 1
      %p406 = por %p404, %p405
      %p408 = scmp.ne.s32.totalorder %s393, %s407
      %p409 = scmp.eq.s32.totalorder %s47, 0
      %p410 = por %p408, %p409
      %s412 = sadd.s32 %s411, 1
      %p415 = scmp.eq.s32.totalorder %s41, 1
      %p416 = scmp.ne.s32.totalorder %s411, %s413
      %p417 = scmp.eq.s32.totalorder %s41, 0
      %p418 = por %p416, %p417
      %p419 = scmp.ne.s32.totalorder %s411, %s413
      %p420 = scmp.eq.s32.totalorder %s46, 1
      %p421 = por %p419, %p420
      %p422 = scmp.ne.s32.totalorder %s413, %s414
      %p423 = scmp.eq.s32.totalorder %s46, 0
      %p424 = por %p422, %p423
      %p425 = scmp.ne.s32.totalorder %s413, %s414
      %p426 = scmp.eq.s32.totalorder %s47, 1
      %p427 = por %p425, %p426
      %p429 = scmp.ne.s32.totalorder %s414, %s428
      %p430 = scmp.eq.s32.totalorder %s47, 0
      %p431 = por %p429, %p430
      %s433 = sadd.s32 %s432, 1
      %p436 = scmp.eq.s32.totalorder %s41, 1
      %p437 = scmp.ne.s32.totalorder %s432, %s434
      %p438 = scmp.eq.s32.totalorder %s41, 0
      %p439 = por %p437, %p438
      %p440 = scmp.ne.s32.totalorder %s432, %s434
      %p441 = scmp.eq.s32.totalorder %s46, 1
      %p442 = por %p440, %p441
      %p443 = scmp.ne.s32.totalorder %s434, %s435
      %p444 = scmp.eq.s32.totalorder %s46, 0
      %p445 = por %p443, %p444
      %p446 = scmp.ne.s32.totalorder %s434, %s435
      %p447 = scmp.eq.s32.totalorder %s47, 1
      %p448 = por %p446, %p447
      %p450 = scmp.ne.s32.totalorder %s435, %s449
      %p451 = scmp.eq.s32.totalorder %s47, 0
      %p452 = por %p450, %p451
      %s454 = sadd.s32 %s453, 1
      %p457 = scmp.eq.s32.totalorder %s41, 1
      %p458 = scmp.ne.s32.totalorder %s453, %s455
      %p459 = scmp.eq.s32.totalorder %s41, 0
      %p460 = por %p458, %p459
      %p461 = scmp.ne.s32.totalorder %s453, %s455
      %p462 = scmp.eq.s32.totalorder %s46, 1
      %p463 = por %p461, %p462
      %p464 = scmp.ne.s32.totalorder %s455, %s456
      %p465 = scmp.eq.s32.totalorder %s46, 0
      %p466 = por %p464, %p465
      %p467 = scmp.ne.s32.totalorder %s455, %s456
      %p468 = scmp.eq.s32.totalorder %s47, 1
      %p469 = por %p467, %p468
      %p471 = scmp.ne.s32.totalorder %s456, %s470
      %p472 = scmp.eq.s32.totalorder %s47, 0
      %p473 = por %p471, %p472
      %s475 = sadd.s32 %s474, 1
      %p478 = scmp.eq.s32.totalorder %s41, 1
      %p479 = scmp.ne.s32.totalorder %s474, %s476
      %p480 = scmp.eq.s32.totalorder %s41, 0
      %p481 = por %p479, %p480
      %p482 = scmp.ne.s32.totalorder %s474, %s476
      %p483 = scmp.eq.s32.totalorder %s46, 1
      %p484 = por %p482, %p483
      %p485 = scmp.ne.s32.totalorder %s476, %s477
      %p486 = scmp.eq.s32.totalorder %s46, 0
      %p487 = por %p485, %p486
      %p488 = scmp.ne.s32.totalorder %s476, %s477
      %p489 = scmp.eq.s32.totalorder %s47, 1
      %p490 = por %p488, %p489
      %p492 = scmp.ne.s32.totalorder %s477, %s491
      %p493 = scmp.eq.s32.totalorder %s47, 0
      %p494 = por %p492, %p493
      %s495 = ssub.s32 %s41, %s48
      %p496 = scmp.eq.s32.totalorder %s495, 0
      %s498 = sadd.s32 %s497, 1
      %s499 = scalar_select %p496, %s497, %s498
      %p502 = pneg %p496
      %p503 = scmp.eq.s32.totalorder %s41, 1
      %p504 = por %p502, %p503
      %p505 = scmp.ne.s32.totalorder %s497, %s500
      %p506 = scmp.eq.s32.totalorder %s41, 0
      %p507 = por %p505, %p506
      %p508 = scmp.ne.s32.totalorder %s497, %s500
      %p509 = scmp.eq.s32.totalorder %s46, 1
      %p510 = por %p508, %p509
      %p511 = scmp.ne.s32.totalorder %s500, %s501
      %p512 = scmp.eq.s32.totalorder %s46, 0
      %p513 = por %p511, %p512
      %p514 = scmp.ne.s32.totalorder %s500, %s501
      %p515 = scmp.eq.s32.totalorder %s47, 1
      %p516 = por %p514, %p515
      %p518 = scmp.ne.s32.totalorder %s501, %s517
      %p519 = scmp.eq.s32.totalorder %s47, 0
      %p520 = por %p518, %p519
      %p521 = scmp.le.s32.totalorder 1, %s41
      %p522 = scmp.lt.s32.totalorder %s41, 3
      %p523 = pnand %p521, %p522
      %p524 = pneg %p523
      // Predicated region
      $region9: #{tpu_custom_call.1} parent=5 // pred_check
        _
      $region10: #{tpu_custom_call.1} parent=5 // pred_check_branch
        %526 = sbr.rel (%p523) target = $region12
      $region11: #{tpu_custom_call.1} parent=5 // pred_region
        %s527 = ssub.s32 %s41, 1
        // Predicated region
        $region13: #{tpu_custom_call.1} parent=11 // pred_check
          %p528 = pneg %p88
        $region14: #{tpu_custom_call.1} parent=11 // pred_check_branch
          %530 = sbr.rel (%p528) target = $region16
        $region15: #{tpu_custom_call.1} parent=11 // pred_region
          %532 = vsyncadd [#allocation7], 0
          %s534 = sshll.u32 %s1, 4
          %s535 = int_to_ptr.hbm [resolvable:$true] %s534
          %s536 = sshll.u32 [#allocation6], 4
          %s537 = int_to_ptr.vmem [resolvable:$true] %s536
          %539 = dma.hbm_to_vmem [thread:$0]  %s535, 16, %s537, [#allocation7]
        $region16: #{tpu_custom_call.1} parent=11 // pred_fallthru
          _
        // Predicated region
        $region17: #{tpu_custom_call.1} parent=11 // pred_check
          %p540 = pneg %p109
        $region18: #{tpu_custom_call.1} parent=11 // pred_check_branch
          %542 = sbr.rel (%p540) target = $region20
        $region19: #{tpu_custom_call.1} parent=11 // pred_region
          %544 = vsyncadd [#allocation7], 0
          %s546 = sshll.u32 %s2, 4
          %s547 = int_to_ptr.hbm [resolvable:$true] %s546
          %s548 = sshll.u32 [#allocation8], 4
          %s549 = int_to_ptr.vmem [resolvable:$true] %s548
          %551 = dma.hbm_to_vmem [thread:$0]  %s547, 128, %s549, [#allocation7]
        $region20: #{tpu_custom_call.1} parent=11 // pred_fallthru
          _
        // Predicated region
        $region21: #{tpu_custom_call.1} parent=11 // pred_check
          %p552 = pneg %p130
        $region22: #{tpu_custom_call.1} parent=11 // pred_check_branch
          %554 = sbr.rel (%p552) target = $region24
        $region23: #{tpu_custom_call.1} parent=11 // pred_region
          %556 = vsyncadd [#allocation10], 0
          %s557 = sshll.u32 %s3, 4
          %s558 = int_to_ptr.hbm [resolvable:$true] %s557
          %s559 = sshll.u32 [#allocation9], 4
          %s560 = int_to_ptr.vmem [resolvable:$true] %s559
          %565 = dma.hbm_to_vmem [thread:$0]  %s558, 12288, %s560, [#allocation10], 128, 128, 8
        $region24: #{tpu_custom_call.1} parent=11 // pred_fallthru
          _
        // Predicated region
        $region25: #{tpu_custom_call.1} parent=11 // pred_check
          %p566 = pneg %p151
        $region26: #{tpu_custom_call.1} parent=11 // pred_check_branch
          %568 = sbr.rel (%p566) target = $region28
        $region27: #{tpu_custom_call.1} parent=11 // pred_region
          %570 = vsyncadd [#allocation10], 0
          %s572 = sshll.u32 %s4, 4
          %s573 = int_to_ptr.hbm [resolvable:$true] %s572
          %s574 = sshll.u32 [#allocation11], 4
          %s575 = int_to_ptr.vmem [resolvable:$true] %s574
          %577 = dma.hbm_to_vmem [thread:$0]  %s573, 16, %s575, [#allocation10]
        $region28: #{tpu_custom_call.1} parent=11 // pred_fallthru
          _
        // Predicated region
        $region29: #{tpu_custom_call.1} parent=11 // pred_check
          %p578 = pneg %p172
        $region30: #{tpu_custom_call.1} parent=11 // pred_check_branch
          %580 = sbr.rel (%p578) target = $region32
        $region31: #{tpu_custom_call.1} parent=11 // pred_region
          %582 = vsyncadd [#allocation13], 0
          %s583 = sshll.u32 %s5, 4
          %s584 = int_to_ptr.hbm [resolvable:$true] %s583
          %s585 = sshll.u32 [#allocation12], 4
          %s586 = int_to_ptr.vmem [resolvable:$true] %s585
          %591 = dma.hbm_to_vmem [thread:$0]  %s584, 32, %s586, [#allocation13], 16, 16, 1
        $region32: #{tpu_custom_call.1} parent=11 // pred_fallthru
          _
        // Predicated region
        $region33: #{tpu_custom_call.1} parent=11 // pred_check
          %p592 = pneg %p193
        $region34: #{tpu_custom_call.1} parent=11 // pred_check_branch
          %594 = sbr.rel (%p592) target = $region36
        $region35: #{tpu_custom_call.1} parent=11 // pred_region
          %596 = vsyncadd [#allocation13], 0
          %s597 = sshll.u32 %s6, 4
          %s598 = int_to_ptr.hbm [resolvable:$true] %s597
          %s599 = sshll.u32 [#allocation14], 4
          %s600 = int_to_ptr.vmem [resolvable:$true] %s599
          %605 = dma.hbm_to_vmem [thread:$0]  %s598, 32, %s600, [#allocation13], 16, 16, 1
        $region36: #{tpu_custom_call.1} parent=11 // pred_fallthru
          _
        // Predicated region
        $region37: #{tpu_custom_call.1} parent=11 // pred_check
          %p606 = pneg %p214
        $region38: #{tpu_custom_call.1} parent=11 // pred_check_branch
          %608 = sbr.rel (%p606) target = $region40
        $region39: #{tpu_custom_call.1} parent=11 // pred_region
          %610 = vsyncadd [#allocation16], 0
          %s611 = sshll.u32 %s7, 4
          %s612 = int_to_ptr.hbm [resolvable:$true] %s611
          %s613 = sshll.u32 [#allocation15], 4
          %s614 = int_to_ptr.vmem [resolvable:$true] %s613
          %619 = dma.hbm_to_vmem [thread:$0]  %s612, 12288, %s614, [#allocation16], 384, 384, 24
        $region40: #{tpu_custom_call.1} parent=11 // pred_fallthru
          _
        // Predicated region
        $region41: #{tpu_custom_call.1} parent=11 // pred_check
          %p620 = pneg %p235
        $region42: #{tpu_custom_call.1} parent=11 // pred_check_branch
          %622 = sbr.rel (%p620) target = $region44
        $region43: #{tpu_custom_call.1} parent=11 // pred_region
          _
        $region44: #{tpu_custom_call.1} parent=11 // pred_fallthru
          _
        // Predicated region
        $region45: #{tpu_custom_call.1} parent=11 // pred_check
          %p623 = pneg %p256
        $region46: #{tpu_custom_call.1} parent=11 // pred_check_branch
          %625 = sbr.rel (%p623) target = $region48
        $region47: #{tpu_custom_call.1} parent=11 // pred_region
          %627 = vsyncadd [#allocation16], 0
          %s628 = sshll.u32 %s9, 4
          %s629 = int_to_ptr.hbm [resolvable:$true] %s628
          %s630 = sshll.u32 [#allocation17], 4
          %s631 = int_to_ptr.vmem [resolvable:$true] %s630
          %636 = dma.hbm_to_vmem [thread:$0]  %s629, 4096, %s631, [#allocation16], 128, 128, 8
        $region48: #{tpu_custom_call.1} parent=11 // pred_fallthru
          _
        // Predicated region
        $region49: #{tpu_custom_call.1} parent=11 // pred_check
          %p637 = pneg %p277
        $region50: #{tpu_custom_call.1} parent=11 // pred_check_branch
          %639 = sbr.rel (%p637) target = $region52
        $region51: #{tpu_custom_call.1} parent=11 // pred_region
          %641 = vsyncadd [#allocation19], 0
          %s642 = sshll.u32 %s10, 4
          %s643 = int_to_ptr.hbm [resolvable:$true] %s642
          %s644 = sshll.u32 [#allocation18], 4
          %s645 = int_to_ptr.vmem [resolvable:$true] %s644
          %650 = dma.hbm_to_vmem [thread:$0]  %s643, 32, %s645, [#allocation19], 16, 16, 1
        $region52: #{tpu_custom_call.1} parent=11 // pred_fallthru
          _
        // Predicated region
        $region53: #{tpu_custom_call.1} parent=11 // pred_check
          %p651 = pneg %p298
        $region54: #{tpu_custom_call.1} parent=11 // pred_check_branch
          %653 = sbr.rel (%p651) target = $region56
        $region55: #{tpu_custom_call.1} parent=11 // pred_region
          %655 = vsyncadd [#allocation19], 0
          %s656 = sshll.u32 %s11, 4
          %s657 = int_to_ptr.hbm [resolvable:$true] %s656
          %s658 = sshll.u32 [#allocation20], 4
          %s659 = int_to_ptr.vmem [resolvable:$true] %s658
          %664 = dma.hbm_to_vmem [thread:$0]  %s657, 32, %s659, [#allocation19], 16, 16, 1
        $region56: #{tpu_custom_call.1} parent=11 // pred_fallthru
          _
        // Predicated region
        $region57: #{tpu_custom_call.1} parent=11 // pred_check
          %p665 = pneg %p319
        $region58: #{tpu_custom_call.1} parent=11 // pred_check_branch
          %667 = sbr.rel (%p665) target = $region60
        $region59: #{tpu_custom_call.1} parent=11 // pred_region
          %669 = vsyncadd [#allocation22], 0
          %s670 = sshll.u32 %s12, 4
          %s671 = int_to_ptr.hbm [resolvable:$true] %s670
          %s672 = sshll.u32 [#allocation21], 4
          %s673 = int_to_ptr.vmem [resolvable:$true] %s672
          %678 = dma.hbm_to_vmem [thread:$0]  %s671, 32, %s673, [#allocation22], 16, 16, 1
        $region60: #{tpu_custom_call.1} parent=11 // pred_fallthru
          _
        // Predicated region
        $region61: #{tpu_custom_call.1} parent=11 // pred_check
          %p679 = pneg %p340
        $region62: #{tpu_custom_call.1} parent=11 // pred_check_branch
          %681 = sbr.rel (%p679) target = $region64
        $region63: #{tpu_custom_call.1} parent=11 // pred_region
          %683 = vsyncadd [#allocation22], 0
          %s684 = sshll.u32 %s13, 4
          %s685 = int_to_ptr.hbm [resolvable:$true] %s684
          %s686 = sshll.u32 [#allocation23], 4
          %s687 = int_to_ptr.vmem [resolvable:$true] %s686
          %692 = dma.hbm_to_vmem [thread:$0]  %s685, 32, %s687, [#allocation22], 16, 16, 1
        $region64: #{tpu_custom_call.1} parent=11 // pred_fallthru
          _
        // Predicated region
        $region65: #{tpu_custom_call.1} parent=11 // pred_check
          %p693 = pneg %p361
        $region66: #{tpu_custom_call.1} parent=11 // pred_check_branch
          %695 = sbr.rel (%p693) target = $region68
        $region67: #{tpu_custom_call.1} parent=11 // pred_region
          %697 = vsyncadd [#allocation25], 0
          %s698 = sshll.u32 %s14, 4
          %s699 = int_to_ptr.hbm [resolvable:$true] %s698
          %s700 = sshll.u32 [#allocation24], 4
          %s701 = int_to_ptr.vmem [resolvable:$true] %s700
          %706 = dma.hbm_to_vmem [thread:$0]  %s699, 16384, %s701, [#allocation25], 512, 512, 32
        $region68: #{tpu_custom_call.1} parent=11 // pred_fallthru
          _
        // Predicated region
        $region69: #{tpu_custom_call.1} parent=11 // pred_check
          %p707 = pneg %p382
        $region70: #{tpu_custom_call.1} parent=11 // pred_check_branch
          %709 = sbr.rel (%p707) target = $region72
        $region71: #{tpu_custom_call.1} parent=11 // pred_region
          _
        $region72: #{tpu_custom_call.1} parent=11 // pred_fallthru
          _
        // Predicated region
        $region73: #{tpu_custom_call.1} parent=11 // pred_check
          %p710 = pneg %p403
        $region74: #{tpu_custom_call.1} parent=11 // pred_check_branch
          %712 = sbr.rel (%p710) target = $region76
        $region75: #{tpu_custom_call.1} parent=11 // pred_region
          %714 = vsyncadd [#allocation25], 0
          %s715 = sshll.u32 %s16, 4
          %s716 = int_to_ptr.hbm [resolvable:$true] %s715
          %s717 = sshll.u32 [#allocation26], 4
          %s718 = int_to_ptr.vmem [resolvable:$true] %s717
          %723 = dma.hbm_to_vmem [thread:$0]  %s716, 16384, %s718, [#allocation25], 128, 128, 8
        $region76: #{tpu_custom_call.1} parent=11 // pred_fallthru
          _
        // Predicated region
        $region77: #{tpu_custom_call.1} parent=11 // pred_check
          %p724 = pneg %p424
        $region78: #{tpu_custom_call.1} parent=11 // pred_check_branch
          %726 = sbr.rel (%p724) target = $region80
        $region79: #{tpu_custom_call.1} parent=11 // pred_region
          _
        $region80: #{tpu_custom_call.1} parent=11 // pred_fallthru
          _
        // Predicated region
        $region81: #{tpu_custom_call.1} parent=11 // pred_check
          %p727 = pneg %p445
        $region82: #{tpu_custom_call.1} parent=11 // pred_check_branch
          %729 = sbr.rel (%p727) target = $region84
        $region83: #{tpu_custom_call.1} parent=11 // pred_region
          %731 = vsyncadd [#allocation28], 0
          %s732 = sshll.u32 %s18, 4
          %s733 = int_to_ptr.hbm [resolvable:$true] %s732
          %s734 = sshll.u32 [#allocation27], 4
          %s735 = int_to_ptr.vmem [resolvable:$true] %s734
          %740 = dma.hbm_to_vmem [thread:$0]  %s733, 32, %s735, [#allocation28], 16, 16, 1
        $region84: #{tpu_custom_call.1} parent=11 // pred_fallthru
          _
        // Predicated region
        $region85: #{tpu_custom_call.1} parent=11 // pred_check
          %p741 = pneg %p466
        $region86: #{tpu_custom_call.1} parent=11 // pred_check_branch
          %743 = sbr.rel (%p741) target = $region88
        $region87: #{tpu_custom_call.1} parent=11 // pred_region
          _
        $region88: #{tpu_custom_call.1} parent=11 // pred_fallthru
          _
        // Predicated region
        $region89: #{tpu_custom_call.1} parent=11 // pred_check
          %p744 = pneg %p487
        $region90: #{tpu_custom_call.1} parent=11 // pred_check_branch
          %746 = sbr.rel (%p744) target = $region92
        $region91: #{tpu_custom_call.1} parent=11 // pred_region
          _
        $region92: #{tpu_custom_call.1} parent=11 // pred_fallthru
          _
      $region12: #{tpu_custom_call.1} parent=5 // pred_fallthru
        _
      %p747 = scmp.lt.s32.totalorder %s41, 2
      // Predicated region
      $region93: #{tpu_custom_call.1} parent=5 // pred_check
        %p748 = pneg %p747
      $region94: #{tpu_custom_call.1} parent=5 // pred_check_branch
        %750 = sbr.rel (%p748) target = $region96
      $region95: #{tpu_custom_call.1} parent=5 // pred_region
        // Predicated region
        $region97: #{tpu_custom_call.1} parent=95 // pred_check
          %p751 = pneg %p61
        $region98: #{tpu_custom_call.1} parent=95 // pred_check_branch
          %753 = sbr.rel (%p751) target = $region100
        $region99: #{tpu_custom_call.1} parent=95 // pred_region
          %s754 = sand.u32 %s51, 1
          %s755 = scalar_lea.sflag [#allocation4], %s754
          %s756 = sand.u32 %s51, 1
          %s757 = smul.addr %s756, 48
          %s758 = scalar_lea.vmem [#allocation3], %s757
          %s759 = smul.u32 2, %s41
          %761 = vsyncadd %s755, 0
          %s762 = smul.addr %s759, 6
          %s763 = smul.addr %s762, 4
          %s764 = scalar_lea.hbm %s0, %s763
          %s765 = sshll.u32 %s764, 4
          %s766 = int_to_ptr.hbm [resolvable:$true] %s765
          %s767 = sshll.u32 %s758, 4
          %s768 = int_to_ptr.vmem [resolvable:$true] %s767
          %773 = dma.hbm_to_vmem [thread:$0]  %s766, 768, %s768, %s755, 384, 384, 24
        $region100: #{tpu_custom_call.1} parent=95 // pred_fallthru
          _
      $region96: #{tpu_custom_call.1} parent=5 // pred_fallthru
        _
      %p774 = scmp.le.s32.totalorder 1, %s41
      %p775 = scmp.lt.s32.totalorder %s41, 3
      %p776 = pnand %p774, %p775
      %p777 = pneg %p776
      // Predicated region
      $region101: #{tpu_custom_call.1} parent=5 // pred_check
        _
      $region102: #{tpu_custom_call.1} parent=5 // pred_check_branch
        %779 = sbr.rel (%p776) target = $region104
      $region103: #{tpu_custom_call.1} parent=5 // pred_region
        %s780 = ssub.s32 %s41, 1
        %s781 = sand.u32 %s54, 1
        %s782 = scalar_lea.sflag [#allocation4], %s781
        %s783 = sand.u32 %s54, 1
        %s784 = smul.addr %s783, 48
        %s785 = scalar_lea.vmem [#allocation3], %s784
        // Predicated region
        $region105: #{tpu_custom_call.1} parent=103 // pred_check
          %p786 = pneg %p67
        $region106: #{tpu_custom_call.1} parent=103 // pred_check_branch
          %788 = sbr.rel (%p786) target = $region108
        $region107: #{tpu_custom_call.1} parent=103 // pred_region
          %790 = dma.done %s782, 768
        $region108: #{tpu_custom_call.1} parent=103 // pred_fallthru
          _
        // Predicated region
        $region109: #{tpu_custom_call.1} parent=103 // pred_check
          %p791 = pneg %p88
        $region110: #{tpu_custom_call.1} parent=103 // pred_check_branch
          %793 = sbr.rel (%p791) target = $region112
        $region111: #{tpu_custom_call.1} parent=103 // pred_region
          %795 = dma.done [#allocation7], 16
        $region112: #{tpu_custom_call.1} parent=103 // pred_fallthru
          _
        // Predicated region
        $region113: #{tpu_custom_call.1} parent=103 // pred_check
          %p796 = pneg %p109
        $region114: #{tpu_custom_call.1} parent=103 // pred_check_branch
          %798 = sbr.rel (%p796) target = $region116
        $region115: #{tpu_custom_call.1} parent=103 // pred_region
          %800 = dma.done [#allocation7], 128
        $region116: #{tpu_custom_call.1} parent=103 // pred_fallthru
          _
        // Predicated region
        $region117: #{tpu_custom_call.1} parent=103 // pred_check
          %p801 = pneg %p130
        $region118: #{tpu_custom_call.1} parent=103 // pred_check_branch
          %803 = sbr.rel (%p801) target = $region120
        $region119: #{tpu_custom_call.1} parent=103 // pred_region
          %805 = dma.done [#allocation10], 12288
        $region120: #{tpu_custom_call.1} parent=103 // pred_fallthru
          _
        // Predicated region
        $region121: #{tpu_custom_call.1} parent=103 // pred_check
          %p806 = pneg %p151
        $region122: #{tpu_custom_call.1} parent=103 // pred_check_branch
          %808 = sbr.rel (%p806) target = $region124
        $region123: #{tpu_custom_call.1} parent=103 // pred_region
          %810 = dma.done [#allocation10], 16
        $region124: #{tpu_custom_call.1} parent=103 // pred_fallthru
          _
        // Predicated region
        $region125: #{tpu_custom_call.1} parent=103 // pred_check
          %p811 = pneg %p172
        $region126: #{tpu_custom_call.1} parent=103 // pred_check_branch
          %813 = sbr.rel (%p811) target = $region128
        $region127: #{tpu_custom_call.1} parent=103 // pred_region
          %815 = dma.done [#allocation13], 32
        $region128: #{tpu_custom_call.1} parent=103 // pred_fallthru
          _
        // Predicated region
        $region129: #{tpu_custom_call.1} parent=103 // pred_check
          %p816 = pneg %p193
        $region130: #{tpu_custom_call.1} parent=103 // pred_check_branch
          %818 = sbr.rel (%p816) target = $region132
        $region131: #{tpu_custom_call.1} parent=103 // pred_region
          %820 = dma.done [#allocation13], 32
        $region132: #{tpu_custom_call.1} parent=103 // pred_fallthru
          _
        // Predicated region
        $region133: #{tpu_custom_call.1} parent=103 // pred_check
          %p821 = pneg %p214
        $region134: #{tpu_custom_call.1} parent=103 // pred_check_branch
          %823 = sbr.rel (%p821) target = $region136
        $region135: #{tpu_custom_call.1} parent=103 // pred_region
          %825 = dma.done [#allocation16], 12288
        $region136: #{tpu_custom_call.1} parent=103 // pred_fallthru
          _
        // Predicated region
        $region137: #{tpu_custom_call.1} parent=103 // pred_check
          %p826 = pneg %p256
        $region138: #{tpu_custom_call.1} parent=103 // pred_check_branch
          %828 = sbr.rel (%p826) target = $region140
        $region139: #{tpu_custom_call.1} parent=103 // pred_region
          %830 = dma.done [#allocation16], 4096
        $region140: #{tpu_custom_call.1} parent=103 // pred_fallthru
          _
        // Predicated region
        $region141: #{tpu_custom_call.1} parent=103 // pred_check
          %p831 = pneg %p277
        $region142: #{tpu_custom_call.1} parent=103 // pred_check_branch
          %833 = sbr.rel (%p831) target = $region144
        $region143: #{tpu_custom_call.1} parent=103 // pred_region
          %835 = dma.done [#allocation19], 32
        $region144: #{tpu_custom_call.1} parent=103 // pred_fallthru
          _
        // Predicated region
        $region145: #{tpu_custom_call.1} parent=103 // pred_check
          %p836 = pneg %p298
        $region146: #{tpu_custom_call.1} parent=103 // pred_check_branch
          %838 = sbr.rel (%p836) target = $region148
        $region147: #{tpu_custom_call.1} parent=103 // pred_region
          %840 = dma.done [#allocation19], 32
        $region148: #{tpu_custom_call.1} parent=103 // pred_fallthru
          _
        // Predicated region
        $region149: #{tpu_custom_call.1} parent=103 // pred_check
          %p841 = pneg %p319
        $region150: #{tpu_custom_call.1} parent=103 // pred_check_branch
          %843 = sbr.rel (%p841) target = $region152
        $region151: #{tpu_custom_call.1} parent=103 // pred_region
          %845 = dma.done [#allocation22], 32
        $region152: #{tpu_custom_call.1} parent=103 // pred_fallthru
          _
        // Predicated region
        $region153: #{tpu_custom_call.1} parent=103 // pred_check
          %p846 = pneg %p340
        $region154: #{tpu_custom_call.1} parent=103 // pred_check_branch
          %848 = sbr.rel (%p846) target = $region156
        $region155: #{tpu_custom_call.1} parent=103 // pred_region
          %850 = dma.done [#allocation22], 32
        $region156: #{tpu_custom_call.1} parent=103 // pred_fallthru
          _
        // Predicated region
        $region157: #{tpu_custom_call.1} parent=103 // pred_check
          %p851 = pneg %p361
        $region158: #{tpu_custom_call.1} parent=103 // pred_check_branch
          %853 = sbr.rel (%p851) target = $region160
        $region159: #{tpu_custom_call.1} parent=103 // pred_region
          %855 = dma.done [#allocation25], 16384
        $region160: #{tpu_custom_call.1} parent=103 // pred_fallthru
          _
        // Predicated region
        $region161: #{tpu_custom_call.1} parent=103 // pred_check
          %p856 = pneg %p403
        $region162: #{tpu_custom_call.1} parent=103 // pred_check_branch
          %858 = sbr.rel (%p856) target = $region164
        $region163: #{tpu_custom_call.1} parent=103 // pred_region
          %860 = dma.done [#allocation25], 16384
        $region164: #{tpu_custom_call.1} parent=103 // pred_fallthru
          _
        // Predicated region
        $region165: #{tpu_custom_call.1} parent=103 // pred_check
          %p861 = pneg %p445
        $region166: #{tpu_custom_call.1} parent=103 // pred_check_branch
          %863 = sbr.rel (%p861) target = $region168
        $region167: #{tpu_custom_call.1} parent=103 // pred_region
          %865 = dma.done [#allocation28], 32
        $region168: #{tpu_custom_call.1} parent=103 // pred_fallthru
          _
        %s866 = sand.u32 %s54, 1
        %s867 = scalar_lea.sflag [#allocation4], %s866
        %s868 = sand.u32 %s54, 1
        %s869 = smul.addr %s868, 48
        %s870 = scalar_lea.vmem [#allocation3], %s869
        %p871 = pneg %p67
        %p872 = pneg %p64
        %p873 = pneg %p88
        %p874 = pneg %p85
        %p875 = pneg %p109
        %p876 = pneg %p106
        %p877 = pneg %p130
        %p878 = pneg %p127
        %p879 = pneg %p151
        %p880 = pneg %p148
        %p881 = pneg %p172
        %p882 = pneg %p169
        %p883 = pneg %p193
        %p884 = pneg %p190
        %p885 = pneg %p214
        %p886 = pneg %p211
        %p887 = pneg %p235
        %p888 = pneg %p232
        %p889 = pneg %p256
        %p890 = pneg %p253
        %p891 = pneg %p277
        %p892 = pneg %p274
        %p893 = pneg %p298
        %p894 = pneg %p295
        %p895 = pneg %p319
        %p896 = pneg %p316
        %p897 = pneg %p340
        %p898 = pneg %p337
        %p899 = pneg %p361
        %p900 = pneg %p358
        %p901 = pneg %p382
        %p902 = pneg %p379
        %p903 = pneg %p403
        %p904 = pneg %p400
        %p905 = pneg %p424
        %p906 = pneg %p421
        %p907 = pneg %p445
        %p908 = pneg %p442
        %p909 = pneg %p466
        %p910 = pneg %p463
        %p911 = pneg %p487
        %p912 = pneg %p484
        %p913 = pneg %p513
        %p914 = pneg %p510
        %s915 = sand.u32 %s500, 1
        %s916 = scalar_lea.sflag [#allocation5], %s915
        %s917 = sand.u32 %s500, 1
        %s918 = smul.addr %s917, 16
        %s919 = scalar_lea.vmem [#allocation29], %s918
        %s920 = smul.u32 2, %s46
        %s921 = smul.u32 2, %s46
        %v922 = vld [vmem:[%s785] sm:$0xff]
        %v923 = vld [vmem:[%s785 + $0x8] sm:$0xff]
        %v924 = vld [vmem:[%s785 + $0x10] sm:$0xff]
        %v925 = vld [vmem:[%s785 + $0x18] sm:$0xff]
        %v926 = vld [vmem:[%s785 + $0x20] sm:$0xff]
        %v927 = vld [vmem:[%s785 + $0x28] sm:$0xff]
        %v928 = vld [vmem:[#allocation9] sm:$0xff]
        %v929 = vld [vmem:[#allocation9 + $0x8] sm:$0xff]
        %v930 = vld [vmem:[#allocation9 + $0x10] sm:$0xff]
        %v931 = vld [vmem:[#allocation9 + $0x18] sm:$0xff]
        %v932 = vld [vmem:[#allocation9 + $0x20] sm:$0xff]
        %v933 = vld [vmem:[#allocation9 + $0x28] sm:$0xff]
        %v934 = vld [vmem:[#allocation9 + $0x30] sm:$0xff]
        %v935 = vld [vmem:[#allocation9 + $0x38] sm:$0xff]
        %v936 = vld [vmem:[#allocation9 + $0x40] sm:$0xff]
        %v937 = vld [vmem:[#allocation9 + $0x48] sm:$0xff]
        %v938 = vld [vmem:[#allocation9 + $0x50] sm:$0xff]
        %v939 = vld [vmem:[#allocation9 + $0x58] sm:$0xff]
        %v940 = vld [vmem:[#allocation9 + $0x60] sm:$0xff]
        %v941 = vld [vmem:[#allocation9 + $0x68] sm:$0xff]
        %v942 = vld [vmem:[#allocation9 + $0x70] sm:$0xff]
        %v943 = vld [vmem:[#allocation9 + $0x78] sm:$0xff]
        %v944 = vld [vmem:[#allocation9 + $0x80] sm:$0xff]
        %v945 = vld [vmem:[#allocation9 + $0x88] sm:$0xff]
        %v946 = vld [vmem:[#allocation9 + $0x90] sm:$0xff]
        %v947 = vld [vmem:[#allocation9 + $0x98] sm:$0xff]
        %v948 = vld [vmem:[#allocation9 + $0xa0] sm:$0xff]
        %v949 = vld [vmem:[#allocation9 + $0xa8] sm:$0xff]
        %v950 = vld [vmem:[#allocation9 + $0xb0] sm:$0xff]
        %v951 = vld [vmem:[#allocation9 + $0xb8] sm:$0xff]
        %v952 = vld [vmem:[#allocation9 + $0xc0] sm:$0xff]
        %v953 = vld [vmem:[#allocation9 + $0xc8] sm:$0xff]
        %v954 = vld [vmem:[#allocation9 + $0xd0] sm:$0xff]
        %v955 = vld [vmem:[#allocation9 + $0xd8] sm:$0xff]
        %v956 = vld [vmem:[#allocation9 + $0xe0] sm:$0xff]
        %v957 = vld [vmem:[#allocation9 + $0xe8] sm:$0xff]
        %v958 = vld [vmem:[#allocation9 + $0xf0] sm:$0xff]
        %v959 = vld [vmem:[#allocation9 + $0xf8] sm:$0xff]
        %v960 = vld [vmem:[#allocation9 + $0x100] sm:$0xff]
        %v961 = vld [vmem:[#allocation9 + $0x108] sm:$0xff]
        %v962 = vld [vmem:[#allocation9 + $0x110] sm:$0xff]
        %v963 = vld [vmem:[#allocation9 + $0x118] sm:$0xff]
        %v964 = vld [vmem:[#allocation9 + $0x120] sm:$0xff]
        %v965 = vld [vmem:[#allocation9 + $0x128] sm:$0xff]
        %v966 = vld [vmem:[#allocation9 + $0x130] sm:$0xff]
        %v967 = vld [vmem:[#allocation9 + $0x138] sm:$0xff]
        %v968 = vld [vmem:[#allocation9 + $0x140] sm:$0xff]
        %v969 = vld [vmem:[#allocation9 + $0x148] sm:$0xff]
        %v970 = vld [vmem:[#allocation9 + $0x150] sm:$0xff]
        %v971 = vld [vmem:[#allocation9 + $0x158] sm:$0xff]
        %v972 = vld [vmem:[#allocation9 + $0x160] sm:$0xff]
        %v973 = vld [vmem:[#allocation9 + $0x168] sm:$0xff]
        %v974 = vld [vmem:[#allocation9 + $0x170] sm:$0xff]
        %v975 = vld [vmem:[#allocation9 + $0x178] sm:$0xff]
        %v976 = vld [vmem:[#allocation9 + $0x180] sm:$0xff]
        %v977 = vld [vmem:[#allocation9 + $0x188] sm:$0xff]
        %v978 = vld [vmem:[#allocation9 + $0x190] sm:$0xff]
        %v979 = vld [vmem:[#allocation9 + $0x198] sm:$0xff]
        %v980 = vld [vmem:[#allocation9 + $0x1a0] sm:$0xff]
        %v981 = vld [vmem:[#allocation9 + $0x1a8] sm:$0xff]
        %v982 = vld [vmem:[#allocation9 + $0x1b0] sm:$0xff]
        %v983 = vld [vmem:[#allocation9 + $0x1b8] sm:$0xff]
        %v984 = vld [vmem:[#allocation9 + $0x1c0] sm:$0xff]
        %v985 = vld [vmem:[#allocation9 + $0x1c8] sm:$0xff]
        %v986 = vld [vmem:[#allocation9 + $0x1d0] sm:$0xff]
        %v987 = vld [vmem:[#allocation9 + $0x1d8] sm:$0xff]
        %v988 = vld [vmem:[#allocation9 + $0x1e0] sm:$0xff]
        %v989 = vld [vmem:[#allocation9 + $0x1e8] sm:$0xff]
        %v990 = vld [vmem:[#allocation9 + $0x1f0] sm:$0xff]
        %v991 = vld [vmem:[#allocation9 + $0x1f8] sm:$0xff]
        %v992 = vld [vmem:[#allocation9 + $0x200] sm:$0xff]
        %v993 = vld [vmem:[#allocation9 + $0x208] sm:$0xff]
        %v994 = vld [vmem:[#allocation9 + $0x210] sm:$0xff]
        %v995 = vld [vmem:[#allocation9 + $0x218] sm:$0xff]
        %v996 = vld [vmem:[#allocation9 + $0x220] sm:$0xff]
        %v997 = vld [vmem:[#allocation9 + $0x228] sm:$0xff]
        %v998 = vld [vmem:[#allocation9 + $0x230] sm:$0xff]
        %v999 = vld [vmem:[#allocation9 + $0x238] sm:$0xff]
        %v1000 = vld [vmem:[#allocation9 + $0x240] sm:$0xff]
        %v1001 = vld [vmem:[#allocation9 + $0x248] sm:$0xff]
        %v1002 = vld [vmem:[#allocation9 + $0x250] sm:$0xff]
        %v1003 = vld [vmem:[#allocation9 + $0x258] sm:$0xff]
        %v1004 = vld [vmem:[#allocation9 + $0x260] sm:$0xff]
        %v1005 = vld [vmem:[#allocation9 + $0x268] sm:$0xff]
        %v1006 = vld [vmem:[#allocation9 + $0x270] sm:$0xff]
        %v1007 = vld [vmem:[#allocation9 + $0x278] sm:$0xff]
        %v1008 = vld [vmem:[#allocation9 + $0x280] sm:$0xff]
        %v1009 = vld [vmem:[#allocation9 + $0x288] sm:$0xff]
        %v1010 = vld [vmem:[#allocation9 + $0x290] sm:$0xff]
        %v1011 = vld [vmem:[#allocation9 + $0x298] sm:$0xff]
        %v1012 = vld [vmem:[#allocation9 + $0x2a0] sm:$0xff]
        %v1013 = vld [vmem:[#allocation9 + $0x2a8] sm:$0xff]
        %v1014 = vld [vmem:[#allocation9 + $0x2b0] sm:$0xff]
        %v1015 = vld [vmem:[#allocation9 + $0x2b8] sm:$0xff]
        %v1016 = vld [vmem:[#allocation9 + $0x2c0] sm:$0xff]
        %v1017 = vld [vmem:[#allocation9 + $0x2c8] sm:$0xff]
        %v1018 = vld [vmem:[#allocation9 + $0x2d0] sm:$0xff]
        %v1019 = vld [vmem:[#allocation9 + $0x2d8] sm:$0xff]
        %v1020 = vld [vmem:[#allocation9 + $0x2e0] sm:$0xff]
        %v1021 = vld [vmem:[#allocation9 + $0x2e8] sm:$0xff]
        %v1022 = vld [vmem:[#allocation9 + $0x2f0] sm:$0xff]
        %v1023 = vld [vmem:[#allocation9 + $0x2f8] sm:$0xff]
        %v1024 = vld [vmem:[#allocation11] sm:$0x1]
        %v1026 = vperm.slane %v1024, 0
        %1034 = vst [vmem:[#allocation1] ss:$2 sm:$0xff] %v922
        %s1035 = scalar_lea.vmem [#allocation1], 1
        %1036 = vst [vmem:[%s1035] ss:$2 sm:$0xff] %v925
        %s1037 = scalar_lea.vmem [#allocation1], 16
        %1038 = vst [vmem:[%s1037] ss:$2 sm:$0xff] %v923
        %s1039 = scalar_lea.vmem [#allocation1], 17
        %1040 = vst [vmem:[%s1039] ss:$2 sm:$0xff] %v926
        %s1041 = scalar_lea.vmem [#allocation1], 32
        %1042 = vst [vmem:[%s1041] ss:$2 sm:$0xff] %v924
        %s1043 = scalar_lea.vmem [#allocation1], 33
        %1044 = vst [vmem:[%s1043] ss:$2 sm:$0xff] %v927
        %v1045 = vld.sshfl [vmem:[#allocation1] sm:$0xff pattern:$0x75316420]
        %v1046 = vld.sshfl [vmem:[#allocation1 + $0x8] sm:$0xff pattern:$0x75316420]
        %v1047 = vld.sshfl [vmem:[#allocation1 + $0x10] sm:$0xff pattern:$0x75316420]
        %v1048 = vld.sshfl [vmem:[#allocation1 + $0x18] sm:$0xff pattern:$0x75316420]
        %v1049 = vld.sshfl [vmem:[#allocation1 + $0x20] sm:$0xff pattern:$0x75316420]
        %v1050 = vld.sshfl [vmem:[#allocation1 + $0x28] sm:$0xff pattern:$0x75316420]
        %1057 = vmatpush.msra.mxu0 %v943
        %1058 = vmatpush.msra.mxu0 %v942
        %1059 = vmatpush.msra.mxu0 %v941
        %1060 = vmatpush.msra.mxu0 %v940
        %1061 = vmatpush.msra.mxu0 %v939
        %1062 = vmatpush.msra.mxu0 %v938
        %1063 = vmatpush.msra.mxu0 %v937
        %1064 = vmatpush.msra.mxu0 %v936
        %1065 = vmatpush.msra.mxu0 %v935
        %1066 = vmatpush.msra.mxu0 %v934
        %1067 = vmatpush.msra.mxu0 %v933
        %1068 = vmatpush.msra.mxu0 %v932
        %1069 = vmatpush.msra.mxu0 %v931
        %1070 = vmatpush.msra.mxu0 %v930
        %1071 = vmatpush.msra.mxu0 %v929
        %1072 = vmatpush.msra.mxu0 %v928
        %1073 = vmatmul.f32.gmra.mxu0 %v1045
        %v1074 = vpop.f32.mrf.mxu0
        %v1075 = vadd.f32 %v1026, %v1074
        %1076 = vdwg.mxu0
        %1077 = vmatpush.msra.mxu0 %v959
        %1078 = vmatpush.msra.mxu0 %v958
        %1079 = vmatpush.msra.mxu0 %v957
        %1080 = vmatpush.msra.mxu0 %v956
        %1081 = vmatpush.msra.mxu0 %v955
        %1082 = vmatpush.msra.mxu0 %v954
        %1083 = vmatpush.msra.mxu0 %v953
        %1084 = vmatpush.msra.mxu0 %v952
        %1085 = vmatpush.msra.mxu0 %v951
        %1086 = vmatpush.msra.mxu0 %v950
        %1087 = vmatpush.msra.mxu0 %v949
        %1088 = vmatpush.msra.mxu0 %v948
        %1089 = vmatpush.msra.mxu0 %v947
        %1090 = vmatpush.msra.mxu0 %v946
        %1091 = vmatpush.msra.mxu0 %v945
        %1092 = vmatpush.msra.mxu0 %v944
        %1093 = vmatmul.f32.gmra.mxu0 %v1046
        %v1094 = vpop.f32.mrf.mxu0
        %v1095 = vadd.f32 %v1075, %v1094
        %1096 = vdwg.mxu0
        %1097 = vmatpush.msra.mxu0 %v975
        %1098 = vmatpush.msra.mxu0 %v974
        %1099 = vmatpush.msra.mxu0 %v973
        %1100 = vmatpush.msra.mxu0 %v972
        %1101 = vmatpush.msra.mxu0 %v971
        %1102 = vmatpush.msra.mxu0 %v970
        %1103 = vmatpush.msra.mxu0 %v969
        %1104 = vmatpush.msra.mxu0 %v968
        %1105 = vmatpush.msra.mxu0 %v967
        %1106 = vmatpush.msra.mxu0 %v966
        %1107 = vmatpush.msra.mxu0 %v965
        %1108 = vmatpush.msra.mxu0 %v964
        %1109 = vmatpush.msra.mxu0 %v963
        %1110 = vmatpush.msra.mxu0 %v962
        %1111 = vmatpush.msra.mxu0 %v961
        %1112 = vmatpush.msra.mxu0 %v960
        %1113 = vmatmul.f32.gmra.mxu0 %v1047
        %v1114 = vpop.f32.mrf.mxu0
        %v1115 = vadd.f32 %v1095, %v1114
        %1116 = vdwg.mxu0
        %1117 = vmatpush.msra.mxu0 %v991
        %1118 = vmatpush.msra.mxu0 %v990
        %1119 = vmatpush.msra.mxu0 %v989
        %1120 = vmatpush.msra.mxu0 %v988
        %1121 = vmatpush.msra.mxu0 %v987
        %1122 = vmatpush.msra.mxu0 %v986
        %1123 = vmatpush.msra.mxu0 %v985
        %1124 = vmatpush.msra.mxu0 %v984
        %1125 = vmatpush.msra.mxu0 %v983
        %1126 = vmatpush.msra.mxu0 %v982
        %1127 = vmatpush.msra.mxu0 %v981
        %1128 = vmatpush.msra.mxu0 %v980
        %1129 = vmatpush.msra.mxu0 %v979
        %1130 = vmatpush.msra.mxu0 %v978
        %1131 = vmatpush.msra.mxu0 %v977
        %1132 = vmatpush.msra.mxu0 %v976
        %1133 = vmatmul.f32.gmra.mxu0 %v1048
        %v1134 = vpop.f32.mrf.mxu0
        %v1135 = vadd.f32 %v1115, %v1134
        %1136 = vdwg.mxu0
        %1137 = vmatpush.msra.mxu0 %v1007
        %1138 = vmatpush.msra.mxu0 %v1006
        %1139 = vmatpush.msra.mxu0 %v1005
        %1140 = vmatpush.msra.mxu0 %v1004
        %1141 = vmatpush.msra.mxu0 %v1003
        %1142 = vmatpush.msra.mxu0 %v1002
        %1143 = vmatpush.msra.mxu0 %v1001
        %1144 = vmatpush.msra.mxu0 %v1000
        %1145 = vmatpush.msra.mxu0 %v999
        %1146 = vmatpush.msra.mxu0 %v998
        %1147 = vmatpush.msra.mxu0 %v997
        %1148 = vmatpush.msra.mxu0 %v996
        %1149 = vmatpush.msra.mxu0 %v995
        %1150 = vmatpush.msra.mxu0 %v994
        %1151 = vmatpush.msra.mxu0 %v993
        %1152 = vmatpush.msra.mxu0 %v992
        %1153 = vmatmul.f32.gmra.mxu0 %v1049
        %v1154 = vpop.f32.mrf.mxu0
        %v1155 = vadd.f32 %v1135, %v1154
        %1156 = vdwg.mxu0
        %1157 = vmatpush.msra.mxu0 %v1023
        %1158 = vmatpush.msra.mxu0 %v1022
        %1159 = vmatpush.msra.mxu0 %v1021
        %1160 = vmatpush.msra.mxu0 %v1020
        %1161 = vmatpush.msra.mxu0 %v1019
        %1162 = vmatpush.msra.mxu0 %v1018
        %1163 = vmatpush.msra.mxu0 %v1017
        %1164 = vmatpush.msra.mxu0 %v1016
        %1165 = vmatpush.msra.mxu0 %v1015
        %1166 = vmatpush.msra.mxu0 %v1014
        %1167 = vmatpush.msra.mxu0 %v1013
        %1168 = vmatpush.msra.mxu0 %v1012
        %1169 = vmatpush.msra.mxu0 %v1011
        %1170 = vmatpush.msra.mxu0 %v1010
        %1171 = vmatpush.msra.mxu0 %v1009
        %1172 = vmatpush.msra.mxu0 %v1008
        %1173 = vmatmul.f32.gmra.mxu0 %v1050
        %v1174 = vpop.f32.mrf.mxu0
        %v1175 = vadd.f32 %v1155, %v1174
        %1176 = vdwg.mxu0
        %1177 = vst [vmem:[#allocation2] sm:$0xff] 0.0
        %1178 = vst [vmem:[#allocation2 + $0x8] sm:$0xff] 0.0
        %v1179 = vld [vmem:[#allocation6] sm:$0x1]
        %v1180 = vld [vmem:[#allocation8] sm:$0x1]
        %v1181 = vadd.f32 %v1179, %v1180
        %1182 = vst [vmem:[#allocation2] sm:$0x1] %v1181
        %v1183 = vld [vmem:[#allocation8 + $0x1] sm:$0xf]
        %v1184 = vadd.f32 %v1175, %v1183
        %1185 = vst [vmem:[#allocation2 + $0x1] sm:$0xf] %v1184
        %v1186 = vld [vmem:[#allocation6] sm:$0x1]
        %v1187 = vld [vmem:[#allocation8] sm:$0x1]
        %v1188 = vadd.f32 %v1186, %v1187
        %1189 = vst [vmem:[#allocation2 + $0x8] sm:$0x1] %v1188
        %v1190 = vld [vmem:[#allocation8 + $0x1] sm:$0xf]
        %v1192 = vrot.slane %v1190, 4
        %v1194 = vadd.f32 %v1175, %v1192
        %1195 = vst [vmem:[#allocation2 + $0x5] sm:$0xf0] %v1194
        %v1196 = vld [vmem:[#allocation2] sm:$0xff]
        %v1197 = vld [vmem:[#allocation2 + $0x8] sm:$0xff]
        %v1198 = vlaneseq
        %v1199 = vand.u32 %v1198, 127
        %vm1200 = vcmp.ge.s32.totalorder %v1199, 5
        %v1201 = vsel %vm1200, -1e+30, 0.0
        %v1202 = vld [vmem:[#allocation12] sm:$0x1]
        %v1203 = vld [vmem:[#allocation14] sm:$0x1]
        %1204 = vadd.xlane.f32.xlu0 %v1196
        %v1205 = vpop.xlane.xlu0 %1204
        %1206 = vadd.xlane.f32.xlu0 %v1197
        %v1207 = vpop.xlane.xlu0 %1206
        %v1208 = vrcp.pop 128.0
        %v1209 = vmul.f32 128.0, %v1208
        %v1210 = vsub.f32 1.0, %v1209
        %v1211 = vmul.f32 %v1208, %v1210
        %v1212 = vadd.f32 %v1208, %v1211
        %vm1213 = vweird.f32 %v1208
        %v1214 = vsel %vm1213, %v1208, %v1212
        %v1215 = vmul.f32 %v1205, %v1214
        %v1216 = vmul.f32 %v1207, %v1214
        %v1217 = vsub.f32 %v1196, %v1215
        %v1218 = vsub.f32 %v1197, %v1216
        %v1219 = vmul.f32 %v1217, %v1217
        %v1220 = vmul.f32 %v1218, %v1218
        %1221 = vadd.xlane.f32.xlu0 %v1219
        %v1222 = vpop.xlane.xlu0 %1221
        %1223 = vadd.xlane.f32.xlu0 %v1220
        %v1224 = vpop.xlane.xlu0 %1223
        %v1225 = vmul.f32 %v1222, %v1214
        %v1226 = vmul.f32 %v1224, %v1214
        %v1227 = vadd.f32 %v1225, 1e-06
        %v1228 = vadd.f32 %v1226, 1e-06
        %v1229 = vrsqrt.pop %v1227
        %v1230 = vmul.f32 %v1229, %v1227
        %v1231 = vmul.f32 %v1230, %v1229
        %v1232 = vmul.f32 0.5, %v1231
        %v1233 = vsub.f32 1.5, %v1232
        %v1234 = vmul.f32 %v1229, %v1233
        %vm1235 = vweird.f32 %v1227
        %vm1236 = vweird.f32 %v1229
        %vm1237 = vmor %vm1235, %vm1236
        %v1238 = vsel %vm1237, %v1229, %v1234
        %v1239 = vrsqrt.pop %v1228
        %v1240 = vmul.f32 %v1239, %v1228
        %v1241 = vmul.f32 %v1240, %v1239
        %v1242 = vmul.f32 0.5, %v1241
        %v1243 = vsub.f32 1.5, %v1242
        %v1244 = vmul.f32 %v1239, %v1243
        %vm1245 = vweird.f32 %v1228
        %vm1246 = vweird.f32 %v1239
        %vm1247 = vmor %vm1245, %vm1246
        %v1248 = vsel %vm1247, %v1239, %v1244
        %v1249 = vmul.f32 %v1217, %v1238
        %v1250 = vmul.f32 %v1218, %v1248
        %v1252 = vperm.slane %v1202, 0
        %v1254 = vmul.f32 %v1249, %v1252
        %v1255 = vmul.f32 %v1250, %v1252
        %v1257 = vperm.slane %v1203, 0
        %v1259 = vadd.f32 %v1254, %v1257
        %v1260 = vadd.f32 %v1255, %v1257
        %v1261 = vld [vmem:[#allocation15] sm:$0xff]
        %v1262 = vld [vmem:[#allocation15 + $0x8] sm:$0xff]
        %v1263 = vld [vmem:[#allocation15 + $0x10] sm:$0xff]
        %v1264 = vld [vmem:[#allocation15 + $0x18] sm:$0xff]
        %v1265 = vld [vmem:[#allocation15 + $0x20] sm:$0xff]
        %v1266 = vld [vmem:[#allocation15 + $0x28] sm:$0xff]
        %v1267 = vld [vmem:[#allocation15 + $0x30] sm:$0xff]
        %v1268 = vld [vmem:[#allocation15 + $0x38] sm:$0xff]
        %v1269 = vld [vmem:[#allocation15 + $0x40] sm:$0xff]
        %v1270 = vld [vmem:[#allocation15 + $0x48] sm:$0xff]
        %v1271 = vld [vmem:[#allocation15 + $0x50] sm:$0xff]
        %v1272 = vld [vmem:[#allocation15 + $0x58] sm:$0xff]
        %v1273 = vld [vmem:[#allocation15 + $0x60] sm:$0xff]
        %v1274 = vld [vmem:[#allocation15 + $0x68] sm:$0xff]
        %v1275 = vld [vmem:[#allocation15 + $0x70] sm:$0xff]
        %v1276 = vld [vmem:[#allocation15 + $0x78] sm:$0xff]
        %v1277 = vld [vmem:[#allocation15 + $0x80] sm:$0xff]
        %v1278 = vld [vmem:[#allocation15 + $0x88] sm:$0xff]
        %v1279 = vld [vmem:[#allocation15 + $0x90] sm:$0xff]
        %v1280 = vld [vmem:[#allocation15 + $0x98] sm:$0xff]
        %v1281 = vld [vmem:[#allocation15 + $0xa0] sm:$0xff]
        %v1282 = vld [vmem:[#allocation15 + $0xa8] sm:$0xff]
        %v1283 = vld [vmem:[#allocation15 + $0xb0] sm:$0xff]
        %v1284 = vld [vmem:[#allocation15 + $0xb8] sm:$0xff]
        %v1285 = vld [vmem:[#allocation15 + $0xc0] sm:$0xff]
        %v1286 = vld [vmem:[#allocation15 + $0xc8] sm:$0xff]
        %v1287 = vld [vmem:[#allocation15 + $0xd0] sm:$0xff]
        %v1288 = vld [vmem:[#allocation15 + $0xd8] sm:$0xff]
        %v1289 = vld [vmem:[#allocation15 + $0xe0] sm:$0xff]
        %v1290 = vld [vmem:[#allocation15 + $0xe8] sm:$0xff]
        %v1291 = vld [vmem:[#allocation15 + $0xf0] sm:$0xff]
        %v1292 = vld [vmem:[#allocation15 + $0xf8] sm:$0xff]
        %v1293 = vld [vmem:[#allocation15 + $0x100] sm:$0xff]
        %v1294 = vld [vmem:[#allocation15 + $0x108] sm:$0xff]
        %v1295 = vld [vmem:[#allocation15 + $0x110] sm:$0xff]
        %v1296 = vld [vmem:[#allocation15 + $0x118] sm:$0xff]
        %v1297 = vld [vmem:[#allocation15 + $0x120] sm:$0xff]
        %v1298 = vld [vmem:[#allocation15 + $0x128] sm:$0xff]
        %v1299 = vld [vmem:[#allocation15 + $0x130] sm:$0xff]
        %v1300 = vld [vmem:[#allocation15 + $0x138] sm:$0xff]
        %v1301 = vld [vmem:[#allocation15 + $0x140] sm:$0xff]
        %v1302 = vld [vmem:[#allocation15 + $0x148] sm:$0xff]
        %v1303 = vld [vmem:[#allocation15 + $0x150] sm:$0xff]
        %v1304 = vld [vmem:[#allocation15 + $0x158] sm:$0xff]
        %v1305 = vld [vmem:[#allocation15 + $0x160] sm:$0xff]
        %v1306 = vld [vmem:[#allocation15 + $0x168] sm:$0xff]
        %v1307 = vld [vmem:[#allocation15 + $0x170] sm:$0xff]
        %v1308 = vld [vmem:[#allocation15 + $0x178] sm:$0xff]
        %v1309 = vld [vmem:[%s8] sm:$0x7]
        %v1311 = vperm.slane %v1309, 0
        %v1312 = vperm.slane %v1309, 1
        %v1313 = vperm.slane %v1309, 2
        %1317 = vmatpush.msra.mxu0 %v1306
        %1318 = vmatpush.msra.mxu0 %v1303
        %1319 = vmatpush.msra.mxu0 %v1300
        %1320 = vmatpush.msra.mxu0 %v1297
        %1321 = vmatpush.msra.mxu0 %v1294
        %1322 = vmatpush.msra.mxu0 %v1291
        %1323 = vmatpush.msra.mxu0 %v1288
        %1324 = vmatpush.msra.mxu0 %v1285
        %1325 = vmatpush.msra.mxu0 %v1282
        %1326 = vmatpush.msra.mxu0 %v1279
        %1327 = vmatpush.msra.mxu0 %v1276
        %1328 = vmatpush.msra.mxu0 %v1273
        %1329 = vmatpush.msra.mxu0 %v1270
        %1330 = vmatpush.msra.mxu0 %v1267
        %1331 = vmatpush.msra.mxu0 %v1264
        %1332 = vmatpush.msra.mxu0 %v1261
        %1333 = vmatmul.f32.gmra.mxu0 %v1259
        %v1334 = vpop.f32.mrf.mxu0
        %v1335 = vadd.f32 %v1311, %v1334
        %1336 = vmatmul.f32.gmra.mxu0 %v1260
        %v1337 = vpop.f32.mrf.mxu0
        %v1338 = vadd.f32 %v1311, %v1337
        %1339 = vdwg.mxu0
        %1340 = vmatpush.msra.mxu0 %v1307
        %1341 = vmatpush.msra.mxu0 %v1304
        %1342 = vmatpush.msra.mxu0 %v1301
        %1343 = vmatpush.msra.mxu0 %v1298
        %1344 = vmatpush.msra.mxu0 %v1295
        %1345 = vmatpush.msra.mxu0 %v1292
        %1346 = vmatpush.msra.mxu0 %v1289
        %1347 = vmatpush.msra.mxu0 %v1286
        %1348 = vmatpush.msra.mxu0 %v1283
        %1349 = vmatpush.msra.mxu0 %v1280
        %1350 = vmatpush.msra.mxu0 %v1277
        %1351 = vmatpush.msra.mxu0 %v1274
        %1352 = vmatpush.msra.mxu0 %v1271
        %1353 = vmatpush.msra.mxu0 %v1268
        %1354 = vmatpush.msra.mxu0 %v1265
        %1355 = vmatpush.msra.mxu0 %v1262
        %1356 = vmatmul.f32.gmra.mxu0 %v1259
        %v1357 = vpop.f32.mrf.mxu0
        %v1358 = vadd.f32 %v1312, %v1357
        %1359 = vmatmul.f32.gmra.mxu0 %v1260
        %v1360 = vpop.f32.mrf.mxu0
        %v1361 = vadd.f32 %v1312, %v1360
        %1362 = vdwg.mxu0
        %1363 = vmatpush.msra.mxu0 %v1308
        %1364 = vmatpush.msra.mxu0 %v1305
        %1365 = vmatpush.msra.mxu0 %v1302
        %1366 = vmatpush.msra.mxu0 %v1299
        %1367 = vmatpush.msra.mxu0 %v1296
        %1368 = vmatpush.msra.mxu0 %v1293
        %1369 = vmatpush.msra.mxu0 %v1290
        %1370 = vmatpush.msra.mxu0 %v1287
        %1371 = vmatpush.msra.mxu0 %v1284
        %1372 = vmatpush.msra.mxu0 %v1281
        %1373 = vmatpush.msra.mxu0 %v1278
        %1374 = vmatpush.msra.mxu0 %v1275
        %1375 = vmatpush.msra.mxu0 %v1272
        %1376 = vmatpush.msra.mxu0 %v1269
        %1377 = vmatpush.msra.mxu0 %v1266
        %1378 = vmatpush.msra.mxu0 %v1263
        %1379 = vmatmul.f32.gmra.mxu0 %v1259
        %v1380 = vpop.f32.mrf.mxu0
        %v1381 = vadd.f32 %v1313, %v1380
        %1382 = vmatmul.f32.gmra.mxu0 %v1260
        %v1383 = vpop.f32.mrf.mxu0
        %v1384 = vadd.f32 %v1313, %v1383
        %1385 = vdwg.mxu0
        %v1386 = vld [vmem:[#allocation17] sm:$0xff]
        %v1387 = vld [vmem:[#allocation17 + $0x8] sm:$0xff]
        %v1388 = vld [vmem:[#allocation17 + $0x10] sm:$0xff]
        %v1389 = vld [vmem:[#allocation17 + $0x18] sm:$0xff]
        %v1390 = vld [vmem:[#allocation17 + $0x20] sm:$0xff]
        %v1391 = vld [vmem:[#allocation17 + $0x28] sm:$0xff]
        %v1392 = vld [vmem:[#allocation17 + $0x30] sm:$0xff]
        %v1393 = vld [vmem:[#allocation17 + $0x38] sm:$0xff]
        %v1394 = vld [vmem:[#allocation17 + $0x40] sm:$0xff]
        %v1395 = vld [vmem:[#allocation17 + $0x48] sm:$0xff]
        %v1396 = vld [vmem:[#allocation17 + $0x50] sm:$0xff]
        %v1397 = vld [vmem:[#allocation17 + $0x58] sm:$0xff]
        %v1398 = vld [vmem:[#allocation17 + $0x60] sm:$0xff]
        %v1399 = vld [vmem:[#allocation17 + $0x68] sm:$0xff]
        %v1400 = vld [vmem:[#allocation17 + $0x70] sm:$0xff]
        %v1401 = vld [vmem:[#allocation17 + $0x78] sm:$0xff]
        %v1402 = vmul.f32 %v1335, 0.17677669
        %v1403 = vmul.f32 %v1338, 0.17677669
        %vm1404 = vcmask 261120
        %v1406 = vsel %vm1404, %v1402, 0
        %v1409 = vsel %vm1404, %v1358, 0
        %1411 = vmatpush.xpose.msra.mxu0 0.0
        %1412 = vmatpush.xpose.msra.mxu0 0.0
        %1413 = vmatpush.xpose.msra.mxu0 0.0
        %1414 = vmatpush.xpose.msra.mxu0 0.0
        %1415 = vmatpush.xpose.msra.mxu0 0.0
        %1416 = vmatpush.xpose.msra.mxu0 0.0
        %1417 = vmatpush.xpose.msra.mxu0 0.0
        %1418 = vmatpush.xpose.msra.mxu0 0.0
        %1419 = vmatpush.xpose.msra.mxu0 0.0
        %1420 = vmatpush.xpose.msra.mxu0 0.0
        %1421 = vmatpush.xpose.msra.mxu0 0.0
        %1422 = vmatpush.xpose.msra.mxu0 0.0
        %1423 = vmatpush.xpose.msra.mxu0 0.0
        %1424 = vmatpush.xpose.msra.mxu0 0.0
        %1425 = vmatpush.xpose.msra.mxu0 0.0
        %1426 = vmatpush.xpose.msra.mxu0 %v1409
        %1427 = vmatmul.f32.gmra.mxu0 %v1406
        %v1428 = vpop.f32.mrf.mxu0
        %v1429 = vadd.f32 %v1201, %v1428
        %1430 = vdwg.mxu0
        %v1432 = vsel %vm1404, %v1403, 0
        %v1435 = vsel %vm1404, %v1361, 0
        %1437 = vmatpush.xpose.msra.mxu0 0.0
        %1438 = vmatpush.xpose.msra.mxu0 0.0
        %1439 = vmatpush.xpose.msra.mxu0 0.0
        %1440 = vmatpush.xpose.msra.mxu0 0.0
        %1441 = vmatpush.xpose.msra.mxu0 0.0
        %1442 = vmatpush.xpose.msra.mxu0 0.0
        %1443 = vmatpush.xpose.msra.mxu0 0.0
        %1444 = vmatpush.xpose.msra.mxu0 0.0
        %1445 = vmatpush.xpose.msra.mxu0 0.0
        %1446 = vmatpush.xpose.msra.mxu0 0.0
        %1447 = vmatpush.xpose.msra.mxu0 0.0
        %1448 = vmatpush.xpose.msra.mxu0 0.0
        %1449 = vmatpush.xpose.msra.mxu0 0.0
        %1450 = vmatpush.xpose.msra.mxu0 0.0
        %1451 = vmatpush.xpose.msra.mxu0 0.0
        %1452 = vmatpush.xpose.msra.mxu0 %v1435
        %1453 = vmatmul.f32.gmra.mxu0 %v1432
        %v1454 = vpop.f32.mrf.mxu0
        %v1455 = vadd.f32 %v1201, %v1454
        %1456 = vdwg.mxu0
        %vm1457 = vcmask 64512
        %v1458 = vsel %vm1457, %v1429, -inf
        %1459 = vmax.xlane.f32.xlu0 %v1458
        %v1460 = vpop.xlane.xlu0 %1459
        %v1461 = vsel %vm1457, %v1455, -inf
        %1462 = vmax.xlane.f32.xlu0 %v1461
        %v1463 = vpop.xlane.xlu0 %1462
        %v1464 = vsub.f32 %v1429, %v1460
        %v1465 = vsub.f32 %v1455, %v1463
        %v1466 = vmul.f32 %v1464, 1.442695
        %v1467 = vpow.pop %v1466
        %v1468 = vmul.f32 %v1465, 1.442695
        %v1469 = vpow.pop %v1468
        %v1470 = vsel %vm1457, %v1467, 0.0
        %1471 = vadd.xlane.f32.xlu0 %v1470
        %v1472 = vpop.xlane.xlu0 %1471
        %v1473 = vsel %vm1457, %v1469, 0.0
        %1474 = vadd.xlane.f32.xlu0 %v1473
        %v1475 = vpop.xlane.xlu0 %1474
        %v1476 = vrcp.pop %v1472
        %v1477 = vrcp.pop %v1475
        %v1478 = vmul.f32 %v1467, %v1476
        %v1479 = vmul.f32 %v1469, %v1477
        %v1481 = vsel %vm1457, %v1478, 0
        %1483 = vmatpush.msra.mxu0 0.0
        %1484 = vmatpush.msra.mxu0 0.0
        %1485 = vmatpush.msra.mxu0 0.0
        %1486 = vmatpush.msra.mxu0 0.0
        %1487 = vmatpush.msra.mxu0 0.0
        %1488 = vmatpush.msra.mxu0 0.0
        %1489 = vmatpush.msra.mxu0 0.0
        %1490 = vmatpush.msra.mxu0 0.0
        %1491 = vmatpush.msra.mxu0 0.0
        %1492 = vmatpush.msra.mxu0 0.0
        %1493 = vmatpush.msra.mxu0 0.0
        %1494 = vmatpush.msra.mxu0 0.0
        %1495 = vmatpush.msra.mxu0 0.0
        %1496 = vmatpush.msra.mxu0 0.0
        %1497 = vmatpush.msra.mxu0 0.0
        %1498 = vmatpush.msra.mxu0 %v1381
        %1499 = vmatmul.f32.gmra.mxu0 %v1481
        %v1500 = vpop.f32.mrf.mxu0
        %v1501 = vadd.f32 0.0, %v1500
        %1502 = vdwg.mxu0
        %v1504 = vsel %vm1457, %v1479, 0
        %1506 = vmatpush.msra.mxu0 0.0
        %1507 = vmatpush.msra.mxu0 0.0
        %1508 = vmatpush.msra.mxu0 0.0
        %1509 = vmatpush.msra.mxu0 0.0
        %1510 = vmatpush.msra.mxu0 0.0
        %1511 = vmatpush.msra.mxu0 0.0
        %1512 = vmatpush.msra.mxu0 0.0
        %1513 = vmatpush.msra.mxu0 0.0
        %1514 = vmatpush.msra.mxu0 0.0
        %1515 = vmatpush.msra.mxu0 0.0
        %1516 = vmatpush.msra.mxu0 0.0
        %1517 = vmatpush.msra.mxu0 0.0
        %1518 = vmatpush.msra.mxu0 0.0
        %1519 = vmatpush.msra.mxu0 0.0
        %1520 = vmatpush.msra.mxu0 0.0
        %1521 = vmatpush.msra.mxu0 %v1384
        %1522 = vmatmul.f32.gmra.mxu0 %v1504
        %v1523 = vpop.f32.mrf.mxu0
        %v1524 = vadd.f32 0.0, %v1523
        %1525 = vdwg.mxu0
        %1526 = vrot.lane.b32.xlu0 %v1402, 96
        %v1527 = vpop.permute.xlu0 %1526
        %1528 = vrot.lane.b32.xlu0 %v1358, 96
        %v1529 = vpop.permute.xlu0 %1528
        %v1530 = vsel %vm1404, %v1527, 0
        %v1532 = vsel %vm1404, %v1529, 0
        %1534 = vmatpush.xpose.msra.mxu0 0.0
        %1535 = vmatpush.xpose.msra.mxu0 0.0
        %1536 = vmatpush.xpose.msra.mxu0 0.0
        %1537 = vmatpush.xpose.msra.mxu0 0.0
        %1538 = vmatpush.xpose.msra.mxu0 0.0
        %1539 = vmatpush.xpose.msra.mxu0 0.0
        %1540 = vmatpush.xpose.msra.mxu0 0.0
        %1541 = vmatpush.xpose.msra.mxu0 0.0
        %1542 = vmatpush.xpose.msra.mxu0 0.0
        %1543 = vmatpush.xpose.msra.mxu0 0.0
        %1544 = vmatpush.xpose.msra.mxu0 0.0
        %1545 = vmatpush.xpose.msra.mxu0 0.0
        %1546 = vmatpush.xpose.msra.mxu0 0.0
        %1547 = vmatpush.xpose.msra.mxu0 0.0
        %1548 = vmatpush.xpose.msra.mxu0 0.0
        %1549 = vmatpush.xpose.msra.mxu0 %v1532
        %1550 = vmatmul.f32.gmra.mxu0 %v1530
        %v1551 = vpop.f32.mrf.mxu0
        %v1552 = vadd.f32 %v1201, %v1551
        %1553 = vdwg.mxu0
        %1554 = vrot.lane.b32.xlu0 %v1403, 96
        %v1555 = vpop.permute.xlu0 %1554
        %1556 = vrot.lane.b32.xlu0 %v1361, 96
        %v1557 = vpop.permute.xlu0 %1556
        %v1558 = vsel %vm1404, %v1555, 0
        %v1560 = vsel %vm1404, %v1557, 0
        %1562 = vmatpush.xpose.msra.mxu0 0.0
        %1563 = vmatpush.xpose.msra.mxu0 0.0
        %1564 = vmatpush.xpose.msra.mxu0 0.0
        %1565 = vmatpush.xpose.msra.mxu0 0.0
        %1566 = vmatpush.xpose.msra.mxu0 0.0
        %1567 = vmatpush.xpose.msra.mxu0 0.0
        %1568 = vmatpush.xpose.msra.mxu0 0.0
        %1569 = vmatpush.xpose.msra.mxu0 0.0
        %1570 = vmatpush.xpose.msra.mxu0 0.0
        %1571 = vmatpush.xpose.msra.mxu0 0.0
        %1572 = vmatpush.xpose.msra.mxu0 0.0
        %1573 = vmatpush.xpose.msra.mxu0 0.0
        %1574 = vmatpush.xpose.msra.mxu0 0.0
        %1575 = vmatpush.xpose.msra.mxu0 0.0
        %1576 = vmatpush.xpose.msra.mxu0 0.0
        %1577 = vmatpush.xpose.msra.mxu0 %v1560
        %1578 = vmatmul.f32.gmra.mxu0 %v1558
        %v1579 = vpop.f32.mrf.mxu0
        %v1580 = vadd.f32 %v1201, %v1579
        %1581 = vdwg.mxu0
        %v1582 = vsel %vm1457, %v1552, -inf
        %1583 = vmax.xlane.f32.xlu0 %v1582
        %v1584 = vpop.xlane.xlu0 %1583
        %v1585 = vsel %vm1457, %v1580, -inf
        %1586 = vmax.xlane.f32.xlu0 %v1585
        %v1587 = vpop.xlane.xlu0 %1586
        %v1588 = vsub.f32 %v1552, %v1584
        %v1589 = vsub.f32 %v1580, %v1587
        %v1590 = vmul.f32 %v1588, 1.442695
        %v1591 = vpow.pop %v1590
        %v1592 = vmul.f32 %v1589, 1.442695
        %v1593 = vpow.pop %v1592
        %v1594 = vsel %vm1457, %v1591, 0.0
        %1595 = vadd.xlane.f32.xlu0 %v1594
        %v1596 = vpop.xlane.xlu0 %1595
        %v1597 = vsel %vm1457, %v1593, 0.0
        %1598 = vadd.xlane.f32.xlu0 %v1597
        %v1599 = vpop.xlane.xlu0 %1598
        %v1600 = vrcp.pop %v1596
        %v1601 = vrcp.pop %v1599
        %v1602 = vmul.f32 %v1591, %v1600
        %v1603 = vmul.f32 %v1593, %v1601
        %1605 = vrot.lane.b32.xlu0 %v1381, 96
        %v1606 = vpop.permute.xlu0 %1605
        %v1609 = vsel %vm1457, %v1602, 0
        %1611 = vmatpush.msra.mxu0 0.0
        %1612 = vmatpush.msra.mxu0 0.0
        %1613 = vmatpush.msra.mxu0 0.0
        %1614 = vmatpush.msra.mxu0 0.0
        %1615 = vmatpush.msra.mxu0 0.0
        %1616 = vmatpush.msra.mxu0 0.0
        %1617 = vmatpush.msra.mxu0 0.0
        %1618 = vmatpush.msra.mxu0 0.0
        %1619 = vmatpush.msra.mxu0 0.0
        %1620 = vmatpush.msra.mxu0 0.0
        %1621 = vmatpush.msra.mxu0 0.0
        %1622 = vmatpush.msra.mxu0 0.0
        %1623 = vmatpush.msra.mxu0 0.0
        %1624 = vmatpush.msra.mxu0 0.0
        %1625 = vmatpush.msra.mxu0 0.0
        %1626 = vmatpush.msra.mxu0 %v1606
        %1627 = vmatmul.f32.gmra.mxu0 %v1609
        %v1628 = vpop.f32.mrf.mxu0
        %v1629 = vadd.f32 0.0, %v1628
        %1630 = vdwg.mxu0
        %1632 = vrot.lane.b32.xlu0 %v1384, 96
        %v1633 = vpop.permute.xlu0 %1632
        %v1636 = vsel %vm1457, %v1603, 0
        %1638 = vmatpush.msra.mxu0 0.0
        %1639 = vmatpush.msra.mxu0 0.0
        %1640 = vmatpush.msra.mxu0 0.0
        %1641 = vmatpush.msra.mxu0 0.0
        %1642 = vmatpush.msra.mxu0 0.0
        %1643 = vmatpush.msra.mxu0 0.0
        %1644 = vmatpush.msra.mxu0 0.0
        %1645 = vmatpush.msra.mxu0 0.0
        %1646 = vmatpush.msra.mxu0 0.0
        %1647 = vmatpush.msra.mxu0 0.0
        %1648 = vmatpush.msra.mxu0 0.0
        %1649 = vmatpush.msra.mxu0 0.0
        %1650 = vmatpush.msra.mxu0 0.0
        %1651 = vmatpush.msra.mxu0 0.0
        %1652 = vmatpush.msra.mxu0 0.0
        %1653 = vmatpush.msra.mxu0 %v1633
        %1654 = vmatmul.f32.gmra.mxu0 %v1636
        %v1655 = vpop.f32.mrf.mxu0
        %v1656 = vadd.f32 0.0, %v1655
        %1657 = vdwg.mxu0
        %v1659 = vsel %vm1404, %v1629, 0
        %v1662 = vsel %vm1404, %v1656, 0
        %1664 = vmatpush.msra.mxu0 0.0
        %1665 = vmatpush.msra.mxu0 0.0
        %1666 = vmatpush.msra.mxu0 0.0
        %1667 = vmatpush.msra.mxu0 0.0
        %1668 = vmatpush.msra.mxu0 0.0
        %1669 = vmatpush.msra.mxu0 0.0
        %1670 = vmatpush.msra.mxu0 0.0
        %1671 = vmatpush.msra.mxu0 0.0
        %1672 = vmatpush.msra.mxu0 0.0
        %1673 = vmatpush.msra.mxu0 0.0
        %1674 = vmatpush.msra.mxu0 0.0
        %1675 = vmatpush.msra.mxu0 0.0
        %1676 = vmatpush.msra.mxu0 %v1393
        %1677 = vmatpush.msra.mxu0 %v1392
        %1678 = vmatpush.msra.mxu0 %v1391
        %1679 = vmatpush.msra.mxu0 %v1390
        %1680 = vmatmul.f32.gmra.mxu0 %v1659
        %v1681 = vpop.f32.mrf.mxu0
        %v1682 = vadd.f32 0.0, %v1681
        %1683 = vmatmul.f32.gmra.mxu0 %v1662
        %v1684 = vpop.f32.mrf.mxu0
        %v1685 = vadd.f32 0.0, %v1684
        %1686 = vdwg.mxu0
        %v1688 = vsel %vm1404, %v1501, 0
        %v1691 = vsel %vm1404, %v1524, 0
        %1693 = vmatpush.msra.mxu0 0.0
        %1694 = vmatpush.msra.mxu0 0.0
        %1695 = vmatpush.msra.mxu0 0.0
        %1696 = vmatpush.msra.mxu0 0.0
        %1697 = vmatpush.msra.mxu0 0.0
        %1698 = vmatpush.msra.mxu0 0.0
        %1699 = vmatpush.msra.mxu0 0.0
        %1700 = vmatpush.msra.mxu0 0.0
        %1701 = vmatpush.msra.mxu0 0.0
        %1702 = vmatpush.msra.mxu0 0.0
        %1703 = vmatpush.msra.mxu0 0.0
        %1704 = vmatpush.msra.mxu0 0.0
        %1705 = vmatpush.msra.mxu0 %v1389
        %1706 = vmatpush.msra.mxu0 %v1388
        %1707 = vmatpush.msra.mxu0 %v1387
        %1708 = vmatpush.msra.mxu0 %v1386
        %1709 = vmatmul.f32.gmra.mxu0 %v1688
        %v1710 = vpop.f32.mrf.mxu0
        %v1711 = vadd.f32 %v1682, %v1710
        %1712 = vmatmul.f32.gmra.mxu0 %v1691
        %v1713 = vpop.f32.mrf.mxu0
        %v1714 = vadd.f32 %v1685, %v1713
        %1715 = vdwg.mxu0
        %1716 = vrot.lane.b32.xlu0 %v1402, 64
        %v1717 = vpop.permute.xlu0 %1716
        %1718 = vrot.lane.b32.xlu0 %v1358, 64
        %v1719 = vpop.permute.xlu0 %1718
        %v1720 = vsel %vm1404, %v1717, 0
        %v1722 = vsel %vm1404, %v1719, 0
        %1724 = vmatpush.xpose.msra.mxu0 0.0
        %1725 = vmatpush.xpose.msra.mxu0 0.0
        %1726 = vmatpush.xpose.msra.mxu0 0.0
        %1727 = vmatpush.xpose.msra.mxu0 0.0
        %1728 = vmatpush.xpose.msra.mxu0 0.0
        %1729 = vmatpush.xpose.msra.mxu0 0.0
        %1730 = vmatpush.xpose.msra.mxu0 0.0
        %1731 = vmatpush.xpose.msra.mxu0 0.0
        %1732 = vmatpush.xpose.msra.mxu0 0.0
        %1733 = vmatpush.xpose.msra.mxu0 0.0
        %1734 = vmatpush.xpose.msra.mxu0 0.0
        %1735 = vmatpush.xpose.msra.mxu0 0.0
        %1736 = vmatpush.xpose.msra.mxu0 0.0
        %1737 = vmatpush.xpose.msra.mxu0 0.0
        %1738 = vmatpush.xpose.msra.mxu0 0.0
        %1739 = vmatpush.xpose.msra.mxu0 %v1722
        %1740 = vmatmul.f32.gmra.mxu0 %v1720
        %v1741 = vpop.f32.mrf.mxu0
        %v1742 = vadd.f32 %v1201, %v1741
        %1743 = vdwg.mxu0
        %1744 = vrot.lane.b32.xlu0 %v1403, 64
        %v1745 = vpop.permute.xlu0 %1744
        %1746 = vrot.lane.b32.xlu0 %v1361, 64
        %v1747 = vpop.permute.xlu0 %1746
        %v1748 = vsel %vm1404, %v1745, 0
        %v1750 = vsel %vm1404, %v1747, 0
        %1752 = vmatpush.xpose.msra.mxu0 0.0
        %1753 = vmatpush.xpose.msra.mxu0 0.0
        %1754 = vmatpush.xpose.msra.mxu0 0.0
        %1755 = vmatpush.xpose.msra.mxu0 0.0
        %1756 = vmatpush.xpose.msra.mxu0 0.0
        %1757 = vmatpush.xpose.msra.mxu0 0.0
        %1758 = vmatpush.xpose.msra.mxu0 0.0
        %1759 = vmatpush.xpose.msra.mxu0 0.0
        %1760 = vmatpush.xpose.msra.mxu0 0.0
        %1761 = vmatpush.xpose.msra.mxu0 0.0
        %1762 = vmatpush.xpose.msra.mxu0 0.0
        %1763 = vmatpush.xpose.msra.mxu0 0.0
        %1764 = vmatpush.xpose.msra.mxu0 0.0
        %1765 = vmatpush.xpose.msra.mxu0 0.0
        %1766 = vmatpush.xpose.msra.mxu0 0.0
        %1767 = vmatpush.xpose.msra.mxu0 %v1750
        %1768 = vmatmul.f32.gmra.mxu0 %v1748
        %v1769 = vpop.f32.mrf.mxu0
        %v1770 = vadd.f32 %v1201, %v1769
        %1771 = vdwg.mxu0
        %v1772 = vsel %vm1457, %v1742, -inf
        %1773 = vmax.xlane.f32.xlu0 %v1772
        %v1774 = vpop.xlane.xlu0 %1773
        %v1775 = vsel %vm1457, %v1770, -inf
        %1776 = vmax.xlane.f32.xlu0 %v1775
        %v1777 = vpop.xlane.xlu0 %1776
        %v1778 = vsub.f32 %v1742, %v1774
        %v1779 = vsub.f32 %v1770, %v1777
        %v1780 = vmul.f32 %v1778, 1.442695
        %v1781 = vpow.pop %v1780
        %v1782 = vmul.f32 %v1779, 1.442695
        %v1783 = vpow.pop %v1782
        %v1784 = vsel %vm1457, %v1781, 0.0
        %1785 = vadd.xlane.f32.xlu0 %v1784
        %v1786 = vpop.xlane.xlu0 %1785
        %v1787 = vsel %vm1457, %v1783, 0.0
        %1788 = vadd.xlane.f32.xlu0 %v1787
        %v1789 = vpop.xlane.xlu0 %1788
        %v1790 = vrcp.pop %v1786
        %v1791 = vrcp.pop %v1789
        %v1792 = vmul.f32 %v1781, %v1790
        %v1793 = vmul.f32 %v1783, %v1791
        %1794 = vrot.lane.b32.xlu0 %v1381, 64
        %v1795 = vpop.permute.xlu0 %1794
        %v1798 = vsel %vm1457, %v1792, 0
        %1800 = vmatpush.msra.mxu0 0.0
        %1801 = vmatpush.msra.mxu0 0.0
        %1802 = vmatpush.msra.mxu0 0.0
        %1803 = vmatpush.msra.mxu0 0.0
        %1804 = vmatpush.msra.mxu0 0.0
        %1805 = vmatpush.msra.mxu0 0.0
        %1806 = vmatpush.msra.mxu0 0.0
        %1807 = vmatpush.msra.mxu0 0.0
        %1808 = vmatpush.msra.mxu0 0.0
        %1809 = vmatpush.msra.mxu0 0.0
        %1810 = vmatpush.msra.mxu0 0.0
        %1811 = vmatpush.msra.mxu0 0.0
        %1812 = vmatpush.msra.mxu0 0.0
        %1813 = vmatpush.msra.mxu0 0.0
        %1814 = vmatpush.msra.mxu0 0.0
        %1815 = vmatpush.msra.mxu0 %v1795
        %1816 = vmatmul.f32.gmra.mxu0 %v1798
        %v1817 = vpop.f32.mrf.mxu0
        %v1818 = vadd.f32 0.0, %v1817
        %1819 = vdwg.mxu0
        %1820 = vrot.lane.b32.xlu0 %v1384, 64
        %v1821 = vpop.permute.xlu0 %1820
        %v1824 = vsel %vm1457, %v1793, 0
        %1826 = vmatpush.msra.mxu0 0.0
        %1827 = vmatpush.msra.mxu0 0.0
        %1828 = vmatpush.msra.mxu0 0.0
        %1829 = vmatpush.msra.mxu0 0.0
        %1830 = vmatpush.msra.mxu0 0.0
        %1831 = vmatpush.msra.mxu0 0.0
        %1832 = vmatpush.msra.mxu0 0.0
        %1833 = vmatpush.msra.mxu0 0.0
        %1834 = vmatpush.msra.mxu0 0.0
        %1835 = vmatpush.msra.mxu0 0.0
        %1836 = vmatpush.msra.mxu0 0.0
        %1837 = vmatpush.msra.mxu0 0.0
        %1838 = vmatpush.msra.mxu0 0.0
        %1839 = vmatpush.msra.mxu0 0.0
        %1840 = vmatpush.msra.mxu0 0.0
        %1841 = vmatpush.msra.mxu0 %v1821
        %1842 = vmatmul.f32.gmra.mxu0 %v1824
        %v1843 = vpop.f32.mrf.mxu0
        %v1844 = vadd.f32 0.0, %v1843
        %1845 = vdwg.mxu0
        %v1847 = vsel %vm1404, %v1818, 0
        %v1850 = vsel %vm1404, %v1844, 0
        %1852 = vmatpush.msra.mxu0 0.0
        %1853 = vmatpush.msra.mxu0 0.0
        %1854 = vmatpush.msra.mxu0 0.0
        %1855 = vmatpush.msra.mxu0 0.0
        %1856 = vmatpush.msra.mxu0 0.0
        %1857 = vmatpush.msra.mxu0 0.0
        %1858 = vmatpush.msra.mxu0 0.0
        %1859 = vmatpush.msra.mxu0 0.0
        %1860 = vmatpush.msra.mxu0 0.0
        %1861 = vmatpush.msra.mxu0 0.0
        %1862 = vmatpush.msra.mxu0 0.0
        %1863 = vmatpush.msra.mxu0 0.0
        %1864 = vmatpush.msra.mxu0 %v1397
        %1865 = vmatpush.msra.mxu0 %v1396
        %1866 = vmatpush.msra.mxu0 %v1395
        %1867 = vmatpush.msra.mxu0 %v1394
        %1868 = vmatmul.f32.gmra.mxu0 %v1847
        %v1869 = vpop.f32.mrf.mxu0
        %v1870 = vadd.f32 0.0, %v1869
        %1871 = vmatmul.f32.gmra.mxu0 %v1850
        %v1872 = vpop.f32.mrf.mxu0
        %v1873 = vadd.f32 0.0, %v1872
        %1874 = vdwg.mxu0
        %v1875 = vadd.f32 %v1711, %v1870
        %v1876 = vadd.f32 %v1714, %v1873
        %1877 = vrot.lane.b32.xlu0 %v1402, 32
        %v1878 = vpop.permute.xlu0 %1877
        %1879 = vrot.lane.b32.xlu0 %v1358, 32
        %v1880 = vpop.permute.xlu0 %1879
        %v1881 = vsel %vm1404, %v1878, 0
        %v1883 = vsel %vm1404, %v1880, 0
        %1885 = vmatpush.xpose.msra.mxu0 0.0
        %1886 = vmatpush.xpose.msra.mxu0 0.0
        %1887 = vmatpush.xpose.msra.mxu0 0.0
        %1888 = vmatpush.xpose.msra.mxu0 0.0
        %1889 = vmatpush.xpose.msra.mxu0 0.0
        %1890 = vmatpush.xpose.msra.mxu0 0.0
        %1891 = vmatpush.xpose.msra.mxu0 0.0
        %1892 = vmatpush.xpose.msra.mxu0 0.0
        %1893 = vmatpush.xpose.msra.mxu0 0.0
        %1894 = vmatpush.xpose.msra.mxu0 0.0
        %1895 = vmatpush.xpose.msra.mxu0 0.0
        %1896 = vmatpush.xpose.msra.mxu0 0.0
        %1897 = vmatpush.xpose.msra.mxu0 0.0
        %1898 = vmatpush.xpose.msra.mxu0 0.0
        %1899 = vmatpush.xpose.msra.mxu0 0.0
        %1900 = vmatpush.xpose.msra.mxu0 %v1883
        %1901 = vmatmul.f32.gmra.mxu0 %v1881
        %v1902 = vpop.f32.mrf.mxu0
        %v1903 = vadd.f32 %v1201, %v1902
        %1904 = vdwg.mxu0
        %1905 = vrot.lane.b32.xlu0 %v1403, 32
        %v1906 = vpop.permute.xlu0 %1905
        %1907 = vrot.lane.b32.xlu0 %v1361, 32
        %v1908 = vpop.permute.xlu0 %1907
        %v1909 = vsel %vm1404, %v1906, 0
        %v1911 = vsel %vm1404, %v1908, 0
        %1913 = vmatpush.xpose.msra.mxu0 0.0
        %1914 = vmatpush.xpose.msra.mxu0 0.0
        %1915 = vmatpush.xpose.msra.mxu0 0.0
        %1916 = vmatpush.xpose.msra.mxu0 0.0
        %1917 = vmatpush.xpose.msra.mxu0 0.0
        %1918 = vmatpush.xpose.msra.mxu0 0.0
        %1919 = vmatpush.xpose.msra.mxu0 0.0
        %1920 = vmatpush.xpose.msra.mxu0 0.0
        %1921 = vmatpush.xpose.msra.mxu0 0.0
        %1922 = vmatpush.xpose.msra.mxu0 0.0
        %1923 = vmatpush.xpose.msra.mxu0 0.0
        %1924 = vmatpush.xpose.msra.mxu0 0.0
        %1925 = vmatpush.xpose.msra.mxu0 0.0
        %1926 = vmatpush.xpose.msra.mxu0 0.0
        %1927 = vmatpush.xpose.msra.mxu0 0.0
        %1928 = vmatpush.xpose.msra.mxu0 %v1911
        %1929 = vmatmul.f32.gmra.mxu0 %v1909
        %v1930 = vpop.f32.mrf.mxu0
        %v1931 = vadd.f32 %v1201, %v1930
        %1932 = vdwg.mxu0
        %v1933 = vsel %vm1457, %v1903, -inf
        %1934 = vmax.xlane.f32.xlu0 %v1933
        %v1935 = vpop.xlane.xlu0 %1934
        %v1936 = vsel %vm1457, %v1931, -inf
        %1937 = vmax.xlane.f32.xlu0 %v1936
        %v1938 = vpop.xlane.xlu0 %1937
        %v1939 = vsub.f32 %v1903, %v1935
        %v1940 = vsub.f32 %v1931, %v1938
        %v1941 = vmul.f32 %v1939, 1.442695
        %v1942 = vpow.pop %v1941
        %v1943 = vmul.f32 %v1940, 1.442695
        %v1944 = vpow.pop %v1943
        %v1945 = vsel %vm1457, %v1942, 0.0
        %1946 = vadd.xlane.f32.xlu0 %v1945
        %v1947 = vpop.xlane.xlu0 %1946
        %v1948 = vsel %vm1457, %v1944, 0.0
        %1949 = vadd.xlane.f32.xlu0 %v1948
        %v1950 = vpop.xlane.xlu0 %1949
        %v1951 = vrcp.pop %v1947
        %v1952 = vrcp.pop %v1950
        %v1953 = vmul.f32 %v1942, %v1951
        %v1954 = vmul.f32 %v1944, %v1952
        %1955 = vrot.lane.b32.xlu0 %v1381, 32
        %v1956 = vpop.permute.xlu0 %1955
        %v1959 = vsel %vm1457, %v1953, 0
        %1961 = vmatpush.msra.mxu0 0.0
        %1962 = vmatpush.msra.mxu0 0.0
        %1963 = vmatpush.msra.mxu0 0.0
        %1964 = vmatpush.msra.mxu0 0.0
        %1965 = vmatpush.msra.mxu0 0.0
        %1966 = vmatpush.msra.mxu0 0.0
        %1967 = vmatpush.msra.mxu0 0.0
        %1968 = vmatpush.msra.mxu0 0.0
        %1969 = vmatpush.msra.mxu0 0.0
        %1970 = vmatpush.msra.mxu0 0.0
        %1971 = vmatpush.msra.mxu0 0.0
        %1972 = vmatpush.msra.mxu0 0.0
        %1973 = vmatpush.msra.mxu0 0.0
        %1974 = vmatpush.msra.mxu0 0.0
        %1975 = vmatpush.msra.mxu0 0.0
        %1976 = vmatpush.msra.mxu0 %v1956
        %1977 = vmatmul.f32.gmra.mxu0 %v1959
        %v1978 = vpop.f32.mrf.mxu0
        %v1979 = vadd.f32 0.0, %v1978
        %1980 = vdwg.mxu0
        %1981 = vrot.lane.b32.xlu0 %v1384, 32
        %v1982 = vpop.permute.xlu0 %1981
        %v1985 = vsel %vm1457, %v1954, 0
        %1987 = vmatpush.msra.mxu0 0.0
        %1988 = vmatpush.msra.mxu0 0.0
        %1989 = vmatpush.msra.mxu0 0.0
        %1990 = vmatpush.msra.mxu0 0.0
        %1991 = vmatpush.msra.mxu0 0.0
        %1992 = vmatpush.msra.mxu0 0.0
        %1993 = vmatpush.msra.mxu0 0.0
        %1994 = vmatpush.msra.mxu0 0.0
        %1995 = vmatpush.msra.mxu0 0.0
        %1996 = vmatpush.msra.mxu0 0.0
        %1997 = vmatpush.msra.mxu0 0.0
        %1998 = vmatpush.msra.mxu0 0.0
        %1999 = vmatpush.msra.mxu0 0.0
        %2000 = vmatpush.msra.mxu0 0.0
        %2001 = vmatpush.msra.mxu0 0.0
        %2002 = vmatpush.msra.mxu0 %v1982
        %2003 = vmatmul.f32.gmra.mxu0 %v1985
        %v2004 = vpop.f32.mrf.mxu0
        %v2005 = vadd.f32 0.0, %v2004
        %2006 = vdwg.mxu0
        %v2008 = vsel %vm1404, %v1979, 0
        %v2011 = vsel %vm1404, %v2005, 0
        %2013 = vmatpush.msra.mxu0 0.0
        %2014 = vmatpush.msra.mxu0 0.0
        %2015 = vmatpush.msra.mxu0 0.0
        %2016 = vmatpush.msra.mxu0 0.0
        %2017 = vmatpush.msra.mxu0 0.0
        %2018 = vmatpush.msra.mxu0 0.0
        %2019 = vmatpush.msra.mxu0 0.0
        %2020 = vmatpush.msra.mxu0 0.0
        %2021 = vmatpush.msra.mxu0 0.0
        %2022 = vmatpush.msra.mxu0 0.0
        %2023 = vmatpush.msra.mxu0 0.0
        %2024 = vmatpush.msra.mxu0 0.0
        %2025 = vmatpush.msra.mxu0 %v1401
        %2026 = vmatpush.msra.mxu0 %v1400
        %2027 = vmatpush.msra.mxu0 %v1399
        %2028 = vmatpush.msra.mxu0 %v1398
        %2029 = vmatmul.f32.gmra.mxu0 %v2008
        %v2030 = vpop.f32.mrf.mxu0
        %v2031 = vadd.f32 0.0, %v2030
        %2032 = vmatmul.f32.gmra.mxu0 %v2011
        %v2033 = vpop.f32.mrf.mxu0
        %v2034 = vadd.f32 0.0, %v2033
        %2035 = vdwg.mxu0
        %v2036 = vadd.f32 %v1875, %v2031
        %v2037 = vadd.f32 %v1876, %v2034
        %v2038 = vld [vmem:[#allocation18] sm:$0x1]
        %v2040 = vperm.slane %v2038, 0
        %v2042 = vadd.f32 %v2036, %v2040
        %v2043 = vadd.f32 %v2037, %v2040
        %v2044 = vld [vmem:[#allocation20] sm:$0x1]
        %v2046 = vperm.slane %v2044, 0
        %v2048 = vmul.f32 %v2046, %v2042
        %v2049 = vmul.f32 %v2046, %v2043
        %v2050 = vadd.f32 %v1196, %v2048
        %v2051 = vadd.f32 %v1197, %v2049
        %v2052 = vld [vmem:[#allocation21] sm:$0x1]
        %v2053 = vld [vmem:[#allocation23] sm:$0x1]
        %2054 = vadd.xlane.f32.xlu0 %v2050
        %v2055 = vpop.xlane.xlu0 %2054
        %2056 = vadd.xlane.f32.xlu0 %v2051
        %v2057 = vpop.xlane.xlu0 %2056
        %v2058 = vmul.f32 %v2055, %v1214
        %v2059 = vmul.f32 %v2057, %v1214
        %v2060 = vsub.f32 %v2050, %v2058
        %v2061 = vsub.f32 %v2051, %v2059
        %v2062 = vmul.f32 %v2060, %v2060
        %v2063 = vmul.f32 %v2061, %v2061
        %2064 = vadd.xlane.f32.xlu0 %v2062
        %v2065 = vpop.xlane.xlu0 %2064
        %2066 = vadd.xlane.f32.xlu0 %v2063
        %v2067 = vpop.xlane.xlu0 %2066
        %v2068 = vmul.f32 %v2065, %v1214
        %v2069 = vmul.f32 %v2067, %v1214
        %v2070 = vadd.f32 %v2068, 1e-06
        %v2071 = vadd.f32 %v2069, 1e-06
        %v2072 = vrsqrt.pop %v2070
        %v2073 = vmul.f32 %v2072, %v2070
        %v2074 = vmul.f32 %v2073, %v2072
        %v2075 = vmul.f32 0.5, %v2074
        %v2076 = vsub.f32 1.5, %v2075
        %v2077 = vmul.f32 %v2072, %v2076
        %vm2078 = vweird.f32 %v2070
        %vm2079 = vweird.f32 %v2072
        %vm2080 = vmor %vm2078, %vm2079
        %v2081 = vsel %vm2080, %v2072, %v2077
        %v2082 = vrsqrt.pop %v2071
        %v2083 = vmul.f32 %v2082, %v2071
        %v2084 = vmul.f32 %v2083, %v2082
        %v2085 = vmul.f32 0.5, %v2084
        %v2086 = vsub.f32 1.5, %v2085
        %v2087 = vmul.f32 %v2082, %v2086
        %vm2088 = vweird.f32 %v2071
        %vm2089 = vweird.f32 %v2082
        %vm2090 = vmor %vm2088, %vm2089
        %v2091 = vsel %vm2090, %v2082, %v2087
        %v2092 = vmul.f32 %v2060, %v2081
        %v2093 = vmul.f32 %v2061, %v2091
        %v2095 = vperm.slane %v2052, 0
        %v2097 = vmul.f32 %v2092, %v2095
        %v2098 = vmul.f32 %v2093, %v2095
        %v2100 = vperm.slane %v2053, 0
        %v2102 = vadd.f32 %v2097, %v2100
        %v2103 = vadd.f32 %v2098, %v2100
        %v2104 = vld [vmem:[#allocation24] sm:$0xff]
        %v2105 = vld [vmem:[#allocation24 + $0x8] sm:$0xff]
        %v2106 = vld [vmem:[#allocation24 + $0x10] sm:$0xff]
        %v2107 = vld [vmem:[#allocation24 + $0x18] sm:$0xff]
        %v2108 = vld [vmem:[#allocation24 + $0x20] sm:$0xff]
        %v2109 = vld [vmem:[#allocation24 + $0x28] sm:$0xff]
        %v2110 = vld [vmem:[#allocation24 + $0x30] sm:$0xff]
        %v2111 = vld [vmem:[#allocation24 + $0x38] sm:$0xff]
        %v2112 = vld [vmem:[#allocation24 + $0x40] sm:$0xff]
        %v2113 = vld [vmem:[#allocation24 + $0x48] sm:$0xff]
        %v2114 = vld [vmem:[#allocation24 + $0x50] sm:$0xff]
        %v2115 = vld [vmem:[#allocation24 + $0x58] sm:$0xff]
        %v2116 = vld [vmem:[#allocation24 + $0x60] sm:$0xff]
        %v2117 = vld [vmem:[#allocation24 + $0x68] sm:$0xff]
        %v2118 = vld [vmem:[#allocation24 + $0x70] sm:$0xff]
        %v2119 = vld [vmem:[#allocation24 + $0x78] sm:$0xff]
        %v2120 = vld [vmem:[#allocation24 + $0x80] sm:$0xff]
        %v2121 = vld [vmem:[#allocation24 + $0x88] sm:$0xff]
        %v2122 = vld [vmem:[#allocation24 + $0x90] sm:$0xff]
        %v2123 = vld [vmem:[#allocation24 + $0x98] sm:$0xff]
        %v2124 = vld [vmem:[#allocation24 + $0xa0] sm:$0xff]
        %v2125 = vld [vmem:[#allocation24 + $0xa8] sm:$0xff]
        %v2126 = vld [vmem:[#allocation24 + $0xb0] sm:$0xff]
        %v2127 = vld [vmem:[#allocation24 + $0xb8] sm:$0xff]
        %v2128 = vld [vmem:[#allocation24 + $0xc0] sm:$0xff]
        %v2129 = vld [vmem:[#allocation24 + $0xc8] sm:$0xff]
        %v2130 = vld [vmem:[#allocation24 + $0xd0] sm:$0xff]
        %v2131 = vld [vmem:[#allocation24 + $0xd8] sm:$0xff]
        %v2132 = vld [vmem:[#allocation24 + $0xe0] sm:$0xff]
        %v2133 = vld [vmem:[#allocation24 + $0xe8] sm:$0xff]
        %v2134 = vld [vmem:[#allocation24 + $0xf0] sm:$0xff]
        %v2135 = vld [vmem:[#allocation24 + $0xf8] sm:$0xff]
        %v2136 = vld [vmem:[#allocation24 + $0x100] sm:$0xff]
        %v2137 = vld [vmem:[#allocation24 + $0x108] sm:$0xff]
        %v2138 = vld [vmem:[#allocation24 + $0x110] sm:$0xff]
        %v2139 = vld [vmem:[#allocation24 + $0x118] sm:$0xff]
        %v2140 = vld [vmem:[#allocation24 + $0x120] sm:$0xff]
        %v2141 = vld [vmem:[#allocation24 + $0x128] sm:$0xff]
        %v2142 = vld [vmem:[#allocation24 + $0x130] sm:$0xff]
        %v2143 = vld [vmem:[#allocation24 + $0x138] sm:$0xff]
        %v2144 = vld [vmem:[#allocation24 + $0x140] sm:$0xff]
        %v2145 = vld [vmem:[#allocation24 + $0x148] sm:$0xff]
        %v2146 = vld [vmem:[#allocation24 + $0x150] sm:$0xff]
        %v2147 = vld [vmem:[#allocation24 + $0x158] sm:$0xff]
        %v2148 = vld [vmem:[#allocation24 + $0x160] sm:$0xff]
        %v2149 = vld [vmem:[#allocation24 + $0x168] sm:$0xff]
        %v2150 = vld [vmem:[#allocation24 + $0x170] sm:$0xff]
        %v2151 = vld [vmem:[#allocation24 + $0x178] sm:$0xff]
        %v2152 = vld [vmem:[#allocation24 + $0x180] sm:$0xff]
        %v2153 = vld [vmem:[#allocation24 + $0x188] sm:$0xff]
        %v2154 = vld [vmem:[#allocation24 + $0x190] sm:$0xff]
        %v2155 = vld [vmem:[#allocation24 + $0x198] sm:$0xff]
        %v2156 = vld [vmem:[#allocation24 + $0x1a0] sm:$0xff]
        %v2157 = vld [vmem:[#allocation24 + $0x1a8] sm:$0xff]
        %v2158 = vld [vmem:[#allocation24 + $0x1b0] sm:$0xff]
        %v2159 = vld [vmem:[#allocation24 + $0x1b8] sm:$0xff]
        %v2160 = vld [vmem:[#allocation24 + $0x1c0] sm:$0xff]
        %v2161 = vld [vmem:[#allocation24 + $0x1c8] sm:$0xff]
        %v2162 = vld [vmem:[#allocation24 + $0x1d0] sm:$0xff]
        %v2163 = vld [vmem:[#allocation24 + $0x1d8] sm:$0xff]
        %v2164 = vld [vmem:[#allocation24 + $0x1e0] sm:$0xff]
        %v2165 = vld [vmem:[#allocation24 + $0x1e8] sm:$0xff]
        %v2166 = vld [vmem:[#allocation24 + $0x1f0] sm:$0xff]
        %v2167 = vld [vmem:[#allocation24 + $0x1f8] sm:$0xff]
        %v2168 = vld [vmem:[%s15] sm:$0xf]
        %v2170 = vperm.slane %v2168, 0
        %v2171 = vperm.slane %v2168, 1
        %v2172 = vperm.slane %v2168, 2
        %v2173 = vperm.slane %v2168, 3
        %2178 = vmatpush.msra.mxu0 %v2164
        %2179 = vmatpush.msra.mxu0 %v2160
        %2180 = vmatpush.msra.mxu0 %v2156
        %2181 = vmatpush.msra.mxu0 %v2152
        %2182 = vmatpush.msra.mxu0 %v2148
        %2183 = vmatpush.msra.mxu0 %v2144
        %2184 = vmatpush.msra.mxu0 %v2140
        %2185 = vmatpush.msra.mxu0 %v2136
        %2186 = vmatpush.msra.mxu0 %v2132
        %2187 = vmatpush.msra.mxu0 %v2128
        %2188 = vmatpush.msra.mxu0 %v2124
        %2189 = vmatpush.msra.mxu0 %v2120
        %2190 = vmatpush.msra.mxu0 %v2116
        %2191 = vmatpush.msra.mxu0 %v2112
        %2192 = vmatpush.msra.mxu0 %v2108
        %2193 = vmatpush.msra.mxu0 %v2104
        %2194 = vmatmul.f32.gmra.mxu0 %v2102
        %v2195 = vpop.f32.mrf.mxu0
        %v2196 = vadd.f32 %v2170, %v2195
        %2197 = vmatmul.f32.gmra.mxu0 %v2103
        %v2198 = vpop.f32.mrf.mxu0
        %v2199 = vadd.f32 %v2170, %v2198
        %2200 = vdwg.mxu0
        %2201 = vmatpush.msra.mxu0 %v2165
        %2202 = vmatpush.msra.mxu0 %v2161
        %2203 = vmatpush.msra.mxu0 %v2157
        %2204 = vmatpush.msra.mxu0 %v2153
        %2205 = vmatpush.msra.mxu0 %v2149
        %2206 = vmatpush.msra.mxu0 %v2145
        %2207 = vmatpush.msra.mxu0 %v2141
        %2208 = vmatpush.msra.mxu0 %v2137
        %2209 = vmatpush.msra.mxu0 %v2133
        %2210 = vmatpush.msra.mxu0 %v2129
        %2211 = vmatpush.msra.mxu0 %v2125
        %2212 = vmatpush.msra.mxu0 %v2121
        %2213 = vmatpush.msra.mxu0 %v2117
        %2214 = vmatpush.msra.mxu0 %v2113
        %2215 = vmatpush.msra.mxu0 %v2109
        %2216 = vmatpush.msra.mxu0 %v2105
        %2217 = vmatmul.f32.gmra.mxu0 %v2102
        %v2218 = vpop.f32.mrf.mxu0
        %v2219 = vadd.f32 %v2171, %v2218
        %2220 = vmatmul.f32.gmra.mxu0 %v2103
        %v2221 = vpop.f32.mrf.mxu0
        %v2222 = vadd.f32 %v2171, %v2221
        %2223 = vdwg.mxu0
        %2224 = vmatpush.msra.mxu0 %v2166
        %2225 = vmatpush.msra.mxu0 %v2162
        %2226 = vmatpush.msra.mxu0 %v2158
        %2227 = vmatpush.msra.mxu0 %v2154
        %2228 = vmatpush.msra.mxu0 %v2150
        %2229 = vmatpush.msra.mxu0 %v2146
        %2230 = vmatpush.msra.mxu0 %v2142
        %2231 = vmatpush.msra.mxu0 %v2138
        %2232 = vmatpush.msra.mxu0 %v2134
        %2233 = vmatpush.msra.mxu0 %v2130
        %2234 = vmatpush.msra.mxu0 %v2126
        %2235 = vmatpush.msra.mxu0 %v2122
        %2236 = vmatpush.msra.mxu0 %v2118
        %2237 = vmatpush.msra.mxu0 %v2114
        %2238 = vmatpush.msra.mxu0 %v2110
        %2239 = vmatpush.msra.mxu0 %v2106
        %2240 = vmatmul.f32.gmra.mxu0 %v2102
        %v2241 = vpop.f32.mrf.mxu0
        %v2242 = vadd.f32 %v2172, %v2241
        %2243 = vmatmul.f32.gmra.mxu0 %v2103
        %v2244 = vpop.f32.mrf.mxu0
        %v2245 = vadd.f32 %v2172, %v2244
        %2246 = vdwg.mxu0
        %2247 = vmatpush.msra.mxu0 %v2167
        %2248 = vmatpush.msra.mxu0 %v2163
        %2249 = vmatpush.msra.mxu0 %v2159
        %2250 = vmatpush.msra.mxu0 %v2155
        %2251 = vmatpush.msra.mxu0 %v2151
        %2252 = vmatpush.msra.mxu0 %v2147
        %2253 = vmatpush.msra.mxu0 %v2143
        %2254 = vmatpush.msra.mxu0 %v2139
        %2255 = vmatpush.msra.mxu0 %v2135
        %2256 = vmatpush.msra.mxu0 %v2131
        %2257 = vmatpush.msra.mxu0 %v2127
        %2258 = vmatpush.msra.mxu0 %v2123
        %2259 = vmatpush.msra.mxu0 %v2119
        %2260 = vmatpush.msra.mxu0 %v2115
        %2261 = vmatpush.msra.mxu0 %v2111
        %2262 = vmatpush.msra.mxu0 %v2107
        %2263 = vmatmul.f32.gmra.mxu0 %v2102
        %v2264 = vpop.f32.mrf.mxu0
        %v2265 = vadd.f32 %v2173, %v2264
        %2266 = vmatmul.f32.gmra.mxu0 %v2103
        %v2267 = vpop.f32.mrf.mxu0
        %v2268 = vadd.f32 %v2173, %v2267
        %2269 = vdwg.mxu0
        %v2270 = vmul.f32 %v2196, %v2196
        %v2271 = vmul.f32 %v2219, %v2219
        %v2272 = vmul.f32 %v2242, %v2242
        %v2273 = vmul.f32 %v2265, %v2265
        %v2274 = vmul.f32 %v2199, %v2199
        %v2275 = vmul.f32 %v2222, %v2222
        %v2276 = vmul.f32 %v2245, %v2245
        %v2277 = vmul.f32 %v2268, %v2268
        %v2278 = vmul.f32 %v2196, %v2270
        %v2279 = vmul.f32 %v2219, %v2271
        %v2280 = vmul.f32 %v2242, %v2272
        %v2281 = vmul.f32 %v2265, %v2273
        %v2282 = vmul.f32 %v2199, %v2274
        %v2283 = vmul.f32 %v2222, %v2275
        %v2284 = vmul.f32 %v2245, %v2276
        %v2285 = vmul.f32 %v2268, %v2277
        %v2286 = vmul.f32 %v2278, 0.044715
        %v2287 = vmul.f32 %v2279, 0.044715
        %v2288 = vmul.f32 %v2280, 0.044715
        %v2289 = vmul.f32 %v2281, 0.044715
        %v2290 = vmul.f32 %v2282, 0.044715
        %v2291 = vmul.f32 %v2283, 0.044715
        %v2292 = vmul.f32 %v2284, 0.044715
        %v2293 = vmul.f32 %v2285, 0.044715
        %v2294 = vadd.f32 %v2196, %v2286
        %v2295 = vadd.f32 %v2219, %v2287
        %v2296 = vadd.f32 %v2242, %v2288
        %v2297 = vadd.f32 %v2265, %v2289
        %v2298 = vadd.f32 %v2199, %v2290
        %v2299 = vadd.f32 %v2222, %v2291
        %v2300 = vadd.f32 %v2245, %v2292
        %v2301 = vadd.f32 %v2268, %v2293
        %v2302 = vmul.f32 %v2294, 0.7978846
        %v2303 = vmul.f32 %v2295, 0.7978846
        %v2304 = vmul.f32 %v2296, 0.7978846
        %v2305 = vmul.f32 %v2297, 0.7978846
        %v2306 = vmul.f32 %v2298, 0.7978846
        %v2307 = vmul.f32 %v2299, 0.7978846
        %v2308 = vmul.f32 %v2300, 0.7978846
        %v2309 = vmul.f32 %v2301, 0.7978846
        %v2310 = vtanh.pop %v2302
        %v2311 = vtanh.pop %v2303
        %v2312 = vtanh.pop %v2304
        %v2313 = vtanh.pop %v2305
        %v2314 = vtanh.pop %v2306
        %v2315 = vtanh.pop %v2307
        %v2316 = vtanh.pop %v2308
        %v2317 = vtanh.pop %v2309
        %v2318 = vadd.f32 %v2310, 1.0
        %v2319 = vadd.f32 %v2311, 1.0
        %v2320 = vadd.f32 %v2312, 1.0
        %v2321 = vadd.f32 %v2313, 1.0
        %v2322 = vadd.f32 %v2314, 1.0
        %v2323 = vadd.f32 %v2315, 1.0
        %v2324 = vadd.f32 %v2316, 1.0
        %v2325 = vadd.f32 %v2317, 1.0
        %v2326 = vmul.f32 %v2318, 0.5
        %v2327 = vmul.f32 %v2319, 0.5
        %v2328 = vmul.f32 %v2320, 0.5
        %v2329 = vmul.f32 %v2321, 0.5
        %v2330 = vmul.f32 %v2322, 0.5
        %v2331 = vmul.f32 %v2323, 0.5
        %v2332 = vmul.f32 %v2324, 0.5
        %v2333 = vmul.f32 %v2325, 0.5
        %v2334 = vmul.f32 %v2196, %v2326
        %v2335 = vmul.f32 %v2219, %v2327
        %v2336 = vmul.f32 %v2242, %v2328
        %v2337 = vmul.f32 %v2265, %v2329
        %v2338 = vmul.f32 %v2199, %v2330
        %v2339 = vmul.f32 %v2222, %v2331
        %v2340 = vmul.f32 %v2245, %v2332
        %v2341 = vmul.f32 %v2268, %v2333
        %v2342 = vld [vmem:[#allocation26] sm:$0xff]
        %v2343 = vld [vmem:[#allocation26 + $0x8] sm:$0xff]
        %v2344 = vld [vmem:[#allocation26 + $0x10] sm:$0xff]
        %v2345 = vld [vmem:[#allocation26 + $0x18] sm:$0xff]
        %v2346 = vld [vmem:[#allocation26 + $0x20] sm:$0xff]
        %v2347 = vld [vmem:[#allocation26 + $0x28] sm:$0xff]
        %v2348 = vld [vmem:[#allocation26 + $0x30] sm:$0xff]
        %v2349 = vld [vmem:[#allocation26 + $0x38] sm:$0xff]
        %v2350 = vld [vmem:[#allocation26 + $0x40] sm:$0xff]
        %v2351 = vld [vmem:[#allocation26 + $0x48] sm:$0xff]
        %v2352 = vld [vmem:[#allocation26 + $0x50] sm:$0xff]
        %v2353 = vld [vmem:[#allocation26 + $0x58] sm:$0xff]
        %v2354 = vld [vmem:[#allocation26 + $0x60] sm:$0xff]
        %v2355 = vld [vmem:[#allocation26 + $0x68] sm:$0xff]
        %v2356 = vld [vmem:[#allocation26 + $0x70] sm:$0xff]
        %v2357 = vld [vmem:[#allocation26 + $0x78] sm:$0xff]
        %v2358 = vld [vmem:[#allocation26 + $0x80] sm:$0xff]
        %v2359 = vld [vmem:[#allocation26 + $0x88] sm:$0xff]
        %v2360 = vld [vmem:[#allocation26 + $0x90] sm:$0xff]
        %v2361 = vld [vmem:[#allocation26 + $0x98] sm:$0xff]
        %v2362 = vld [vmem:[#allocation26 + $0xa0] sm:$0xff]
        %v2363 = vld [vmem:[#allocation26 + $0xa8] sm:$0xff]
        %v2364 = vld [vmem:[#allocation26 + $0xb0] sm:$0xff]
        %v2365 = vld [vmem:[#allocation26 + $0xb8] sm:$0xff]
        %v2366 = vld [vmem:[#allocation26 + $0xc0] sm:$0xff]
        %v2367 = vld [vmem:[#allocation26 + $0xc8] sm:$0xff]
        %v2368 = vld [vmem:[#allocation26 + $0xd0] sm:$0xff]
        %v2369 = vld [vmem:[#allocation26 + $0xd8] sm:$0xff]
        %v2370 = vld [vmem:[#allocation26 + $0xe0] sm:$0xff]
        %v2371 = vld [vmem:[#allocation26 + $0xe8] sm:$0xff]
        %v2372 = vld [vmem:[#allocation26 + $0xf0] sm:$0xff]
        %v2373 = vld [vmem:[#allocation26 + $0xf8] sm:$0xff]
        %v2374 = vld [vmem:[#allocation26 + $0x100] sm:$0xff]
        %v2375 = vld [vmem:[#allocation26 + $0x108] sm:$0xff]
        %v2376 = vld [vmem:[#allocation26 + $0x110] sm:$0xff]
        %v2377 = vld [vmem:[#allocation26 + $0x118] sm:$0xff]
        %v2378 = vld [vmem:[#allocation26 + $0x120] sm:$0xff]
        %v2379 = vld [vmem:[#allocation26 + $0x128] sm:$0xff]
        %v2380 = vld [vmem:[#allocation26 + $0x130] sm:$0xff]
        %v2381 = vld [vmem:[#allocation26 + $0x138] sm:$0xff]
        %v2382 = vld [vmem:[#allocation26 + $0x140] sm:$0xff]
        %v2383 = vld [vmem:[#allocation26 + $0x148] sm:$0xff]
        %v2384 = vld [vmem:[#allocation26 + $0x150] sm:$0xff]
        %v2385 = vld [vmem:[#allocation26 + $0x158] sm:$0xff]
        %v2386 = vld [vmem:[#allocation26 + $0x160] sm:$0xff]
        %v2387 = vld [vmem:[#allocation26 + $0x168] sm:$0xff]
        %v2388 = vld [vmem:[#allocation26 + $0x170] sm:$0xff]
        %v2389 = vld [vmem:[#allocation26 + $0x178] sm:$0xff]
        %v2390 = vld [vmem:[#allocation26 + $0x180] sm:$0xff]
        %v2391 = vld [vmem:[#allocation26 + $0x188] sm:$0xff]
        %v2392 = vld [vmem:[#allocation26 + $0x190] sm:$0xff]
        %v2393 = vld [vmem:[#allocation26 + $0x198] sm:$0xff]
        %v2394 = vld [vmem:[#allocation26 + $0x1a0] sm:$0xff]
        %v2395 = vld [vmem:[#allocation26 + $0x1a8] sm:$0xff]
        %v2396 = vld [vmem:[#allocation26 + $0x1b0] sm:$0xff]
        %v2397 = vld [vmem:[#allocation26 + $0x1b8] sm:$0xff]
        %v2398 = vld [vmem:[#allocation26 + $0x1c0] sm:$0xff]
        %v2399 = vld [vmem:[#allocation26 + $0x1c8] sm:$0xff]
        %v2400 = vld [vmem:[#allocation26 + $0x1d0] sm:$0xff]
        %v2401 = vld [vmem:[#allocation26 + $0x1d8] sm:$0xff]
        %v2402 = vld [vmem:[#allocation26 + $0x1e0] sm:$0xff]
        %v2403 = vld [vmem:[#allocation26 + $0x1e8] sm:$0xff]
        %v2404 = vld [vmem:[#allocation26 + $0x1f0] sm:$0xff]
        %v2405 = vld [vmem:[#allocation26 + $0x1f8] sm:$0xff]
        %v2406 = vld [vmem:[%s17] sm:$0x1]
        %v2408 = vperm.slane %v2406, 0
        %2410 = vmatpush.msra.mxu0 %v2357
        %2411 = vmatpush.msra.mxu0 %v2356
        %2412 = vmatpush.msra.mxu0 %v2355
        %2413 = vmatpush.msra.mxu0 %v2354
        %2414 = vmatpush.msra.mxu0 %v2353
        %2415 = vmatpush.msra.mxu0 %v2352
        %2416 = vmatpush.msra.mxu0 %v2351
        %2417 = vmatpush.msra.mxu0 %v2350
        %2418 = vmatpush.msra.mxu0 %v2349
        %2419 = vmatpush.msra.mxu0 %v2348
        %2420 = vmatpush.msra.mxu0 %v2347
        %2421 = vmatpush.msra.mxu0 %v2346
        %2422 = vmatpush.msra.mxu0 %v2345
        %2423 = vmatpush.msra.mxu0 %v2344
        %2424 = vmatpush.msra.mxu0 %v2343
        %2425 = vmatpush.msra.mxu0 %v2342
        %2426 = vmatmul.f32.gmra.mxu0 %v2334
        %v2427 = vpop.f32.mrf.mxu0
        %v2428 = vadd.f32 %v2408, %v2427
        %2429 = vmatmul.f32.gmra.mxu0 %v2338
        %v2430 = vpop.f32.mrf.mxu0
        %v2431 = vadd.f32 %v2408, %v2430
        %2432 = vdwg.mxu0
        %2433 = vmatpush.msra.mxu0 %v2373
        %2434 = vmatpush.msra.mxu0 %v2372
        %2435 = vmatpush.msra.mxu0 %v2371
        %2436 = vmatpush.msra.mxu0 %v2370
        %2437 = vmatpush.msra.mxu0 %v2369
        %2438 = vmatpush.msra.mxu0 %v2368
        %2439 = vmatpush.msra.mxu0 %v2367
        %2440 = vmatpush.msra.mxu0 %v2366
        %2441 = vmatpush.msra.mxu0 %v2365
        %2442 = vmatpush.msra.mxu0 %v2364
        %2443 = vmatpush.msra.mxu0 %v2363
        %2444 = vmatpush.msra.mxu0 %v2362
        %2445 = vmatpush.msra.mxu0 %v2361
        %2446 = vmatpush.msra.mxu0 %v2360
        %2447 = vmatpush.msra.mxu0 %v2359
        %2448 = vmatpush.msra.mxu0 %v2358
        %2449 = vmatmul.f32.gmra.mxu0 %v2335
        %v2450 = vpop.f32.mrf.mxu0
        %v2451 = vadd.f32 %v2428, %v2450
        %2452 = vmatmul.f32.gmra.mxu0 %v2339
        %v2453 = vpop.f32.mrf.mxu0
        %v2454 = vadd.f32 %v2431, %v2453
        %2455 = vdwg.mxu0
        %2456 = vmatpush.msra.mxu0 %v2389
        %2457 = vmatpush.msra.mxu0 %v2388
        %2458 = vmatpush.msra.mxu0 %v2387
        %2459 = vmatpush.msra.mxu0 %v2386
        %2460 = vmatpush.msra.mxu0 %v2385
        %2461 = vmatpush.msra.mxu0 %v2384
        %2462 = vmatpush.msra.mxu0 %v2383
        %2463 = vmatpush.msra.mxu0 %v2382
        %2464 = vmatpush.msra.mxu0 %v2381
        %2465 = vmatpush.msra.mxu0 %v2380
        %2466 = vmatpush.msra.mxu0 %v2379
        %2467 = vmatpush.msra.mxu0 %v2378
        %2468 = vmatpush.msra.mxu0 %v2377
        %2469 = vmatpush.msra.mxu0 %v2376
        %2470 = vmatpush.msra.mxu0 %v2375
        %2471 = vmatpush.msra.mxu0 %v2374
        %2472 = vmatmul.f32.gmra.mxu0 %v2336
        %v2473 = vpop.f32.mrf.mxu0
        %v2474 = vadd.f32 %v2451, %v2473
        %2475 = vmatmul.f32.gmra.mxu0 %v2340
        %v2476 = vpop.f32.mrf.mxu0
        %v2477 = vadd.f32 %v2454, %v2476
        %2478 = vdwg.mxu0
        %2479 = vmatpush.msra.mxu0 %v2405
        %2480 = vmatpush.msra.mxu0 %v2404
        %2481 = vmatpush.msra.mxu0 %v2403
        %2482 = vmatpush.msra.mxu0 %v2402
        %2483 = vmatpush.msra.mxu0 %v2401
        %2484 = vmatpush.msra.mxu0 %v2400
        %2485 = vmatpush.msra.mxu0 %v2399
        %2486 = vmatpush.msra.mxu0 %v2398
        %2487 = vmatpush.msra.mxu0 %v2397
        %2488 = vmatpush.msra.mxu0 %v2396
        %2489 = vmatpush.msra.mxu0 %v2395
        %2490 = vmatpush.msra.mxu0 %v2394
        %2491 = vmatpush.msra.mxu0 %v2393
        %2492 = vmatpush.msra.mxu0 %v2392
        %2493 = vmatpush.msra.mxu0 %v2391
        %2494 = vmatpush.msra.mxu0 %v2390
        %2495 = vmatmul.f32.gmra.mxu0 %v2337
        %v2496 = vpop.f32.mrf.mxu0
        %v2497 = vadd.f32 %v2474, %v2496
        %2498 = vmatmul.f32.gmra.mxu0 %v2341
        %v2499 = vpop.f32.mrf.mxu0
        %v2500 = vadd.f32 %v2477, %v2499
        %2501 = vdwg.mxu0
        %v2502 = vld [vmem:[#allocation27] sm:$0x1]
        %v2504 = vperm.slane %v2502, 0
        %v2506 = vmul.f32 %v2504, %v2497
        %v2507 = vmul.f32 %v2504, %v2500
        %v2508 = vadd.f32 %v2050, %v2506
        %v2509 = vadd.f32 %v2051, %v2507
        %s2510 = scalar_lea.vmem [#allocation12], 1
        %v2511 = vld [vmem:[%s2510] sm:$0x1]
        %s2512 = scalar_lea.vmem [#allocation14], 1
        %v2513 = vld [vmem:[%s2512] sm:$0x1]
        %2514 = vadd.xlane.f32.xlu0 %v2508
        %v2515 = vpop.xlane.xlu0 %2514
        %2516 = vadd.xlane.f32.xlu0 %v2509
        %v2517 = vpop.xlane.xlu0 %2516
        %v2518 = vmul.f32 %v2515, %v1214
        %v2519 = vmul.f32 %v2517, %v1214
        %v2520 = vsub.f32 %v2508, %v2518
        %v2521 = vsub.f32 %v2509, %v2519
        %v2522 = vmul.f32 %v2520, %v2520
        %v2523 = vmul.f32 %v2521, %v2521
        %2524 = vadd.xlane.f32.xlu0 %v2522
        %v2525 = vpop.xlane.xlu0 %2524
        %2526 = vadd.xlane.f32.xlu0 %v2523
        %v2527 = vpop.xlane.xlu0 %2526
        %v2528 = vmul.f32 %v2525, %v1214
        %v2529 = vmul.f32 %v2527, %v1214
        %v2530 = vadd.f32 %v2528, 1e-06
        %v2531 = vadd.f32 %v2529, 1e-06
        %v2532 = vrsqrt.pop %v2530
        %v2533 = vmul.f32 %v2532, %v2530
        %v2534 = vmul.f32 %v2533, %v2532
        %v2535 = vmul.f32 0.5, %v2534
        %v2536 = vsub.f32 1.5, %v2535
        %v2537 = vmul.f32 %v2532, %v2536
        %vm2538 = vweird.f32 %v2530
        %vm2539 = vweird.f32 %v2532
        %vm2540 = vmor %vm2538, %vm2539
        %v2541 = vsel %vm2540, %v2532, %v2537
        %v2542 = vrsqrt.pop %v2531
        %v2543 = vmul.f32 %v2542, %v2531
        %v2544 = vmul.f32 %v2543, %v2542
        %v2545 = vmul.f32 0.5, %v2544
        %v2546 = vsub.f32 1.5, %v2545
        %v2547 = vmul.f32 %v2542, %v2546
        %vm2548 = vweird.f32 %v2531
        %vm2549 = vweird.f32 %v2542
        %vm2550 = vmor %vm2548, %vm2549
        %v2551 = vsel %vm2550, %v2542, %v2547
        %v2552 = vmul.f32 %v2520, %v2541
        %v2553 = vmul.f32 %v2521, %v2551
        %v2555 = vperm.slane %v2511, 0
        %v2557 = vmul.f32 %v2552, %v2555
        %v2558 = vmul.f32 %v2553, %v2555
        %v2560 = vperm.slane %v2513, 0
        %v2562 = vadd.f32 %v2557, %v2560
        %v2563 = vadd.f32 %v2558, %v2560
        %s2564 = scalar_lea.vmem [#allocation15], 384
        %v2565 = vld [vmem:[%s2564] sm:$0xff]
        %v2566 = vld [vmem:[%s2564 + $0x8] sm:$0xff]
        %v2567 = vld [vmem:[%s2564 + $0x10] sm:$0xff]
        %v2568 = vld [vmem:[%s2564 + $0x18] sm:$0xff]
        %v2569 = vld [vmem:[%s2564 + $0x20] sm:$0xff]
        %v2570 = vld [vmem:[%s2564 + $0x28] sm:$0xff]
        %v2571 = vld [vmem:[%s2564 + $0x30] sm:$0xff]
        %v2572 = vld [vmem:[%s2564 + $0x38] sm:$0xff]
        %v2573 = vld [vmem:[%s2564 + $0x40] sm:$0xff]
        %v2574 = vld [vmem:[%s2564 + $0x48] sm:$0xff]
        %v2575 = vld [vmem:[%s2564 + $0x50] sm:$0xff]
        %v2576 = vld [vmem:[%s2564 + $0x58] sm:$0xff]
        %v2577 = vld [vmem:[%s2564 + $0x60] sm:$0xff]
        %v2578 = vld [vmem:[%s2564 + $0x68] sm:$0xff]
        %v2579 = vld [vmem:[%s2564 + $0x70] sm:$0xff]
        %v2580 = vld [vmem:[%s2564 + $0x78] sm:$0xff]
        %v2581 = vld [vmem:[%s2564 + $0x80] sm:$0xff]
        %v2582 = vld [vmem:[%s2564 + $0x88] sm:$0xff]
        %v2583 = vld [vmem:[%s2564 + $0x90] sm:$0xff]
        %v2584 = vld [vmem:[%s2564 + $0x98] sm:$0xff]
        %v2585 = vld [vmem:[%s2564 + $0xa0] sm:$0xff]
        %v2586 = vld [vmem:[%s2564 + $0xa8] sm:$0xff]
        %v2587 = vld [vmem:[%s2564 + $0xb0] sm:$0xff]
        %v2588 = vld [vmem:[%s2564 + $0xb8] sm:$0xff]
        %v2589 = vld [vmem:[%s2564 + $0xc0] sm:$0xff]
        %v2590 = vld [vmem:[%s2564 + $0xc8] sm:$0xff]
        %v2591 = vld [vmem:[%s2564 + $0xd0] sm:$0xff]
        %v2592 = vld [vmem:[%s2564 + $0xd8] sm:$0xff]
        %v2593 = vld [vmem:[%s2564 + $0xe0] sm:$0xff]
        %v2594 = vld [vmem:[%s2564 + $0xe8] sm:$0xff]
        %v2595 = vld [vmem:[%s2564 + $0xf0] sm:$0xff]
        %v2596 = vld [vmem:[%s2564 + $0xf8] sm:$0xff]
        %v2597 = vld [vmem:[%s2564 + $0x100] sm:$0xff]
        %v2598 = vld [vmem:[%s2564 + $0x108] sm:$0xff]
        %v2599 = vld [vmem:[%s2564 + $0x110] sm:$0xff]
        %v2600 = vld [vmem:[%s2564 + $0x118] sm:$0xff]
        %v2601 = vld [vmem:[%s2564 + $0x120] sm:$0xff]
        %v2602 = vld [vmem:[%s2564 + $0x128] sm:$0xff]
        %v2603 = vld [vmem:[%s2564 + $0x130] sm:$0xff]
        %v2604 = vld [vmem:[%s2564 + $0x138] sm:$0xff]
        %v2605 = vld [vmem:[%s2564 + $0x140] sm:$0xff]
        %v2606 = vld [vmem:[%s2564 + $0x148] sm:$0xff]
        %v2607 = vld [vmem:[%s2564 + $0x150] sm:$0xff]
        %v2608 = vld [vmem:[%s2564 + $0x158] sm:$0xff]
        %v2609 = vld [vmem:[%s2564 + $0x160] sm:$0xff]
        %v2610 = vld [vmem:[%s2564 + $0x168] sm:$0xff]
        %v2611 = vld [vmem:[%s2564 + $0x170] sm:$0xff]
        %v2612 = vld [vmem:[%s2564 + $0x178] sm:$0xff]
        %s2613 = scalar_lea.vmem %s8, 3
        %v2614 = vld [vmem:[%s2613] sm:$0x7]
        %v2616 = vperm.slane %v2614, 0
        %v2617 = vperm.slane %v2614, 1
        %v2618 = vperm.slane %v2614, 2
        %2622 = vmatpush.msra.mxu0 %v2610
        %2623 = vmatpush.msra.mxu0 %v2607
        %2624 = vmatpush.msra.mxu0 %v2604
        %2625 = vmatpush.msra.mxu0 %v2601
        %2626 = vmatpush.msra.mxu0 %v2598
        %2627 = vmatpush.msra.mxu0 %v2595
        %2628 = vmatpush.msra.mxu0 %v2592
        %2629 = vmatpush.msra.mxu0 %v2589
        %2630 = vmatpush.msra.mxu0 %v2586
        %2631 = vmatpush.msra.mxu0 %v2583
        %2632 = vmatpush.msra.mxu0 %v2580
        %2633 = vmatpush.msra.mxu0 %v2577
        %2634 = vmatpush.msra.mxu0 %v2574
        %2635 = vmatpush.msra.mxu0 %v2571
        %2636 = vmatpush.msra.mxu0 %v2568
        %2637 = vmatpush.msra.mxu0 %v2565
        %2638 = vmatmul.f32.gmra.mxu0 %v2562
        %v2639 = vpop.f32.mrf.mxu0
        %v2640 = vadd.f32 %v2616, %v2639
        %2641 = vmatmul.f32.gmra.mxu0 %v2563
        %v2642 = vpop.f32.mrf.mxu0
        %v2643 = vadd.f32 %v2616, %v2642
        %2644 = vdwg.mxu0
        %2645 = vmatpush.msra.mxu0 %v2611
        %2646 = vmatpush.msra.mxu0 %v2608
        %2647 = vmatpush.msra.mxu0 %v2605
        %2648 = vmatpush.msra.mxu0 %v2602
        %2649 = vmatpush.msra.mxu0 %v2599
        %2650 = vmatpush.msra.mxu0 %v2596
        %2651 = vmatpush.msra.mxu0 %v2593
        %2652 = vmatpush.msra.mxu0 %v2590
        %2653 = vmatpush.msra.mxu0 %v2587
        %2654 = vmatpush.msra.mxu0 %v2584
        %2655 = vmatpush.msra.mxu0 %v2581
        %2656 = vmatpush.msra.mxu0 %v2578
        %2657 = vmatpush.msra.mxu0 %v2575
        %2658 = vmatpush.msra.mxu0 %v2572
        %2659 = vmatpush.msra.mxu0 %v2569
        %2660 = vmatpush.msra.mxu0 %v2566
        %2661 = vmatmul.f32.gmra.mxu0 %v2562
        %v2662 = vpop.f32.mrf.mxu0
        %v2663 = vadd.f32 %v2617, %v2662
        %2664 = vmatmul.f32.gmra.mxu0 %v2563
        %v2665 = vpop.f32.mrf.mxu0
        %v2666 = vadd.f32 %v2617, %v2665
        %2667 = vdwg.mxu0
        %2668 = vmatpush.msra.mxu0 %v2612
        %2669 = vmatpush.msra.mxu0 %v2609
        %2670 = vmatpush.msra.mxu0 %v2606
        %2671 = vmatpush.msra.mxu0 %v2603
        %2672 = vmatpush.msra.mxu0 %v2600
        %2673 = vmatpush.msra.mxu0 %v2597
        %2674 = vmatpush.msra.mxu0 %v2594
        %2675 = vmatpush.msra.mxu0 %v2591
        %2676 = vmatpush.msra.mxu0 %v2588
        %2677 = vmatpush.msra.mxu0 %v2585
        %2678 = vmatpush.msra.mxu0 %v2582
        %2679 = vmatpush.msra.mxu0 %v2579
        %2680 = vmatpush.msra.mxu0 %v2576
        %2681 = vmatpush.msra.mxu0 %v2573
        %2682 = vmatpush.msra.mxu0 %v2570
        %2683 = vmatpush.msra.mxu0 %v2567
        %2684 = vmatmul.f32.gmra.mxu0 %v2562
        %v2685 = vpop.f32.mrf.mxu0
        %v2686 = vadd.f32 %v2618, %v2685
        %2687 = vmatmul.f32.gmra.mxu0 %v2563
        %v2688 = vpop.f32.mrf.mxu0
        %v2689 = vadd.f32 %v2618, %v2688
        %2690 = vdwg.mxu0
        %s2691 = scalar_lea.vmem [#allocation17], 128
        %v2692 = vld [vmem:[%s2691] sm:$0xff]
        %v2693 = vld [vmem:[%s2691 + $0x8] sm:$0xff]
        %v2694 = vld [vmem:[%s2691 + $0x10] sm:$0xff]
        %v2695 = vld [vmem:[%s2691 + $0x18] sm:$0xff]
        %v2696 = vld [vmem:[%s2691 + $0x20] sm:$0xff]
        %v2697 = vld [vmem:[%s2691 + $0x28] sm:$0xff]
        %v2698 = vld [vmem:[%s2691 + $0x30] sm:$0xff]
        %v2699 = vld [vmem:[%s2691 + $0x38] sm:$0xff]
        %v2700 = vld [vmem:[%s2691 + $0x40] sm:$0xff]
        %v2701 = vld [vmem:[%s2691 + $0x48] sm:$0xff]
        %v2702 = vld [vmem:[%s2691 + $0x50] sm:$0xff]
        %v2703 = vld [vmem:[%s2691 + $0x58] sm:$0xff]
        %v2704 = vld [vmem:[%s2691 + $0x60] sm:$0xff]
        %v2705 = vld [vmem:[%s2691 + $0x68] sm:$0xff]
        %v2706 = vld [vmem:[%s2691 + $0x70] sm:$0xff]
        %v2707 = vld [vmem:[%s2691 + $0x78] sm:$0xff]
        %v2708 = vmul.f32 %v2640, 0.17677669
        %v2709 = vmul.f32 %v2643, 0.17677669
        %v2711 = vsel %vm1404, %v2708, 0
        %v2714 = vsel %vm1404, %v2663, 0
        %2716 = vmatpush.xpose.msra.mxu0 0.0
        %2717 = vmatpush.xpose.msra.mxu0 0.0
        %2718 = vmatpush.xpose.msra.mxu0 0.0
        %2719 = vmatpush.xpose.msra.mxu0 0.0
        %2720 = vmatpush.xpose.msra.mxu0 0.0
        %2721 = vmatpush.xpose.msra.mxu0 0.0
        %2722 = vmatpush.xpose.msra.mxu0 0.0
        %2723 = vmatpush.xpose.msra.mxu0 0.0
        %2724 = vmatpush.xpose.msra.mxu0 0.0
        %2725 = vmatpush.xpose.msra.mxu0 0.0
        %2726 = vmatpush.xpose.msra.mxu0 0.0
        %2727 = vmatpush.xpose.msra.mxu0 0.0
        %2728 = vmatpush.xpose.msra.mxu0 0.0
        %2729 = vmatpush.xpose.msra.mxu0 0.0
        %2730 = vmatpush.xpose.msra.mxu0 0.0
        %2731 = vmatpush.xpose.msra.mxu0 %v2714
        %2732 = vmatmul.f32.gmra.mxu0 %v2711
        %v2733 = vpop.f32.mrf.mxu0
        %v2734 = vadd.f32 %v1201, %v2733
        %2735 = vdwg.mxu0
        %v2737 = vsel %vm1404, %v2709, 0
        %v2740 = vsel %vm1404, %v2666, 0
        %2742 = vmatpush.xpose.msra.mxu0 0.0
        %2743 = vmatpush.xpose.msra.mxu0 0.0
        %2744 = vmatpush.xpose.msra.mxu0 0.0
        %2745 = vmatpush.xpose.msra.mxu0 0.0
        %2746 = vmatpush.xpose.msra.mxu0 0.0
        %2747 = vmatpush.xpose.msra.mxu0 0.0
        %2748 = vmatpush.xpose.msra.mxu0 0.0
        %2749 = vmatpush.xpose.msra.mxu0 0.0
        %2750 = vmatpush.xpose.msra.mxu0 0.0
        %2751 = vmatpush.xpose.msra.mxu0 0.0
        %2752 = vmatpush.xpose.msra.mxu0 0.0
        %2753 = vmatpush.xpose.msra.mxu0 0.0
        %2754 = vmatpush.xpose.msra.mxu0 0.0
        %2755 = vmatpush.xpose.msra.mxu0 0.0
        %2756 = vmatpush.xpose.msra.mxu0 0.0
        %2757 = vmatpush.xpose.msra.mxu0 %v2740
        %2758 = vmatmul.f32.gmra.mxu0 %v2737
        %v2759 = vpop.f32.mrf.mxu0
        %v2760 = vadd.f32 %v1201, %v2759
        %2761 = vdwg.mxu0
        %v2762 = vsel %vm1457, %v2734, -inf
        %2763 = vmax.xlane.f32.xlu0 %v2762
        %v2764 = vpop.xlane.xlu0 %2763
        %v2765 = vsel %vm1457, %v2760, -inf
        %2766 = vmax.xlane.f32.xlu0 %v2765
        %v2767 = vpop.xlane.xlu0 %2766
        %v2768 = vsub.f32 %v2734, %v2764
        %v2769 = vsub.f32 %v2760, %v2767
        %v2770 = vmul.f32 %v2768, 1.442695
        %v2771 = vpow.pop %v2770
        %v2772 = vmul.f32 %v2769, 1.442695
        %v2773 = vpow.pop %v2772
        %v2774 = vsel %vm1457, %v2771, 0.0
        %2775 = vadd.xlane.f32.xlu0 %v2774
        %v2776 = vpop.xlane.xlu0 %2775
        %v2777 = vsel %vm1457, %v2773, 0.0
        %2778 = vadd.xlane.f32.xlu0 %v2777
        %v2779 = vpop.xlane.xlu0 %2778
        %v2780 = vrcp.pop %v2776
        %v2781 = vrcp.pop %v2779
        %v2782 = vmul.f32 %v2771, %v2780
        %v2783 = vmul.f32 %v2773, %v2781
        %v2785 = vsel %vm1457, %v2782, 0
        %2787 = vmatpush.msra.mxu0 0.0
        %2788 = vmatpush.msra.mxu0 0.0
        %2789 = vmatpush.msra.mxu0 0.0
        %2790 = vmatpush.msra.mxu0 0.0
        %2791 = vmatpush.msra.mxu0 0.0
        %2792 = vmatpush.msra.mxu0 0.0
        %2793 = vmatpush.msra.mxu0 0.0
        %2794 = vmatpush.msra.mxu0 0.0
        %2795 = vmatpush.msra.mxu0 0.0
        %2796 = vmatpush.msra.mxu0 0.0
        %2797 = vmatpush.msra.mxu0 0.0
        %2798 = vmatpush.msra.mxu0 0.0
        %2799 = vmatpush.msra.mxu0 0.0
        %2800 = vmatpush.msra.mxu0 0.0
        %2801 = vmatpush.msra.mxu0 0.0
        %2802 = vmatpush.msra.mxu0 %v2686
        %2803 = vmatmul.f32.gmra.mxu0 %v2785
        %v2804 = vpop.f32.mrf.mxu0
        %v2805 = vadd.f32 0.0, %v2804
        %2806 = vdwg.mxu0
        %v2808 = vsel %vm1457, %v2783, 0
        %2810 = vmatpush.msra.mxu0 0.0
        %2811 = vmatpush.msra.mxu0 0.0
        %2812 = vmatpush.msra.mxu0 0.0
        %2813 = vmatpush.msra.mxu0 0.0
        %2814 = vmatpush.msra.mxu0 0.0
        %2815 = vmatpush.msra.mxu0 0.0
        %2816 = vmatpush.msra.mxu0 0.0
        %2817 = vmatpush.msra.mxu0 0.0
        %2818 = vmatpush.msra.mxu0 0.0
        %2819 = vmatpush.msra.mxu0 0.0
        %2820 = vmatpush.msra.mxu0 0.0
        %2821 = vmatpush.msra.mxu0 0.0
        %2822 = vmatpush.msra.mxu0 0.0
        %2823 = vmatpush.msra.mxu0 0.0
        %2824 = vmatpush.msra.mxu0 0.0
        %2825 = vmatpush.msra.mxu0 %v2689
        %2826 = vmatmul.f32.gmra.mxu0 %v2808
        %v2827 = vpop.f32.mrf.mxu0
        %v2828 = vadd.f32 0.0, %v2827
        %2829 = vdwg.mxu0
        %2830 = vrot.lane.b32.xlu0 %v2708, 96
        %v2831 = vpop.permute.xlu0 %2830
        %2832 = vrot.lane.b32.xlu0 %v2663, 96
        %v2833 = vpop.permute.xlu0 %2832
        %v2834 = vsel %vm1404, %v2831, 0
        %v2836 = vsel %vm1404, %v2833, 0
        %2838 = vmatpush.xpose.msra.mxu0 0.0
        %2839 = vmatpush.xpose.msra.mxu0 0.0
        %2840 = vmatpush.xpose.msra.mxu0 0.0
        %2841 = vmatpush.xpose.msra.mxu0 0.0
        %2842 = vmatpush.xpose.msra.mxu0 0.0
        %2843 = vmatpush.xpose.msra.mxu0 0.0
        %2844 = vmatpush.xpose.msra.mxu0 0.0
        %2845 = vmatpush.xpose.msra.mxu0 0.0
        %2846 = vmatpush.xpose.msra.mxu0 0.0
        %2847 = vmatpush.xpose.msra.mxu0 0.0
        %2848 = vmatpush.xpose.msra.mxu0 0.0
        %2849 = vmatpush.xpose.msra.mxu0 0.0
        %2850 = vmatpush.xpose.msra.mxu0 0.0
        %2851 = vmatpush.xpose.msra.mxu0 0.0
        %2852 = vmatpush.xpose.msra.mxu0 0.0
        %2853 = vmatpush.xpose.msra.mxu0 %v2836
        %2854 = vmatmul.f32.gmra.mxu0 %v2834
        %v2855 = vpop.f32.mrf.mxu0
        %v2856 = vadd.f32 %v1201, %v2855
        %2857 = vdwg.mxu0
        %2858 = vrot.lane.b32.xlu0 %v2709, 96
        %v2859 = vpop.permute.xlu0 %2858
        %2860 = vrot.lane.b32.xlu0 %v2666, 96
        %v2861 = vpop.permute.xlu0 %2860
        %v2862 = vsel %vm1404, %v2859, 0
        %v2864 = vsel %vm1404, %v2861, 0
        %2866 = vmatpush.xpose.msra.mxu0 0.0
        %2867 = vmatpush.xpose.msra.mxu0 0.0
        %2868 = vmatpush.xpose.msra.mxu0 0.0
        %2869 = vmatpush.xpose.msra.mxu0 0.0
        %2870 = vmatpush.xpose.msra.mxu0 0.0
        %2871 = vmatpush.xpose.msra.mxu0 0.0
        %2872 = vmatpush.xpose.msra.mxu0 0.0
        %2873 = vmatpush.xpose.msra.mxu0 0.0
        %2874 = vmatpush.xpose.msra.mxu0 0.0
        %2875 = vmatpush.xpose.msra.mxu0 0.0
        %2876 = vmatpush.xpose.msra.mxu0 0.0
        %2877 = vmatpush.xpose.msra.mxu0 0.0
        %2878 = vmatpush.xpose.msra.mxu0 0.0
        %2879 = vmatpush.xpose.msra.mxu0 0.0
        %2880 = vmatpush.xpose.msra.mxu0 0.0
        %2881 = vmatpush.xpose.msra.mxu0 %v2864
        %2882 = vmatmul.f32.gmra.mxu0 %v2862
        %v2883 = vpop.f32.mrf.mxu0
        %v2884 = vadd.f32 %v1201, %v2883
        %2885 = vdwg.mxu0
        %v2886 = vsel %vm1457, %v2856, -inf
        %2887 = vmax.xlane.f32.xlu0 %v2886
        %v2888 = vpop.xlane.xlu0 %2887
        %v2889 = vsel %vm1457, %v2884, -inf
        %2890 = vmax.xlane.f32.xlu0 %v2889
        %v2891 = vpop.xlane.xlu0 %2890
        %v2892 = vsub.f32 %v2856, %v2888
        %v2893 = vsub.f32 %v2884, %v2891
        %v2894 = vmul.f32 %v2892, 1.442695
        %v2895 = vpow.pop %v2894
        %v2896 = vmul.f32 %v2893, 1.442695
        %v2897 = vpow.pop %v2896
        %v2898 = vsel %vm1457, %v2895, 0.0
        %2899 = vadd.xlane.f32.xlu0 %v2898
        %v2900 = vpop.xlane.xlu0 %2899
        %v2901 = vsel %vm1457, %v2897, 0.0
        %2902 = vadd.xlane.f32.xlu0 %v2901
        %v2903 = vpop.xlane.xlu0 %2902
        %v2904 = vrcp.pop %v2900
        %v2905 = vrcp.pop %v2903
        %v2906 = vmul.f32 %v2895, %v2904
        %v2907 = vmul.f32 %v2897, %v2905
        %2909 = vrot.lane.b32.xlu0 %v2686, 96
        %v2910 = vpop.permute.xlu0 %2909
        %v2913 = vsel %vm1457, %v2906, 0
        %2915 = vmatpush.msra.mxu0 0.0
        %2916 = vmatpush.msra.mxu0 0.0
        %2917 = vmatpush.msra.mxu0 0.0
        %2918 = vmatpush.msra.mxu0 0.0
        %2919 = vmatpush.msra.mxu0 0.0
        %2920 = vmatpush.msra.mxu0 0.0
        %2921 = vmatpush.msra.mxu0 0.0
        %2922 = vmatpush.msra.mxu0 0.0
        %2923 = vmatpush.msra.mxu0 0.0
        %2924 = vmatpush.msra.mxu0 0.0
        %2925 = vmatpush.msra.mxu0 0.0
        %2926 = vmatpush.msra.mxu0 0.0
        %2927 = vmatpush.msra.mxu0 0.0
        %2928 = vmatpush.msra.mxu0 0.0
        %2929 = vmatpush.msra.mxu0 0.0
        %2930 = vmatpush.msra.mxu0 %v2910
        %2931 = vmatmul.f32.gmra.mxu0 %v2913
        %v2932 = vpop.f32.mrf.mxu0
        %v2933 = vadd.f32 0.0, %v2932
        %2934 = vdwg.mxu0
        %2936 = vrot.lane.b32.xlu0 %v2689, 96
        %v2937 = vpop.permute.xlu0 %2936
        %v2940 = vsel %vm1457, %v2907, 0
        %2942 = vmatpush.msra.mxu0 0.0
        %2943 = vmatpush.msra.mxu0 0.0
        %2944 = vmatpush.msra.mxu0 0.0
        %2945 = vmatpush.msra.mxu0 0.0
        %2946 = vmatpush.msra.mxu0 0.0
        %2947 = vmatpush.msra.mxu0 0.0
        %2948 = vmatpush.msra.mxu0 0.0
        %2949 = vmatpush.msra.mxu0 0.0
        %2950 = vmatpush.msra.mxu0 0.0
        %2951 = vmatpush.msra.mxu0 0.0
        %2952 = vmatpush.msra.mxu0 0.0
        %2953 = vmatpush.msra.mxu0 0.0
        %2954 = vmatpush.msra.mxu0 0.0
        %2955 = vmatpush.msra.mxu0 0.0
        %2956 = vmatpush.msra.mxu0 0.0
        %2957 = vmatpush.msra.mxu0 %v2937
        %2958 = vmatmul.f32.gmra.mxu0 %v2940
        %v2959 = vpop.f32.mrf.mxu0
        %v2960 = vadd.f32 0.0, %v2959
        %2961 = vdwg.mxu0
        %v2963 = vsel %vm1404, %v2933, 0
        %v2966 = vsel %vm1404, %v2960, 0
        %2968 = vmatpush.msra.mxu0 0.0
        %2969 = vmatpush.msra.mxu0 0.0
        %2970 = vmatpush.msra.mxu0 0.0
        %2971 = vmatpush.msra.mxu0 0.0
        %2972 = vmatpush.msra.mxu0 0.0
        %2973 = vmatpush.msra.mxu0 0.0
        %2974 = vmatpush.msra.mxu0 0.0
        %2975 = vmatpush.msra.mxu0 0.0
        %2976 = vmatpush.msra.mxu0 0.0
        %2977 = vmatpush.msra.mxu0 0.0
        %2978 = vmatpush.msra.mxu0 0.0
        %2979 = vmatpush.msra.mxu0 0.0
        %2980 = vmatpush.msra.mxu0 %v2699
        %2981 = vmatpush.msra.mxu0 %v2698
        %2982 = vmatpush.msra.mxu0 %v2697
        %2983 = vmatpush.msra.mxu0 %v2696
        %2984 = vmatmul.f32.gmra.mxu0 %v2963
        %v2985 = vpop.f32.mrf.mxu0
        %v2986 = vadd.f32 0.0, %v2985
        %2987 = vmatmul.f32.gmra.mxu0 %v2966
        %v2988 = vpop.f32.mrf.mxu0
        %v2989 = vadd.f32 0.0, %v2988
        %2990 = vdwg.mxu0
        %v2992 = vsel %vm1404, %v2805, 0
        %v2995 = vsel %vm1404, %v2828, 0
        %2997 = vmatpush.msra.mxu0 0.0
        %2998 = vmatpush.msra.mxu0 0.0
        %2999 = vmatpush.msra.mxu0 0.0
        %3000 = vmatpush.msra.mxu0 0.0
        %3001 = vmatpush.msra.mxu0 0.0
        %3002 = vmatpush.msra.mxu0 0.0
        %3003 = vmatpush.msra.mxu0 0.0
        %3004 = vmatpush.msra.mxu0 0.0
        %3005 = vmatpush.msra.mxu0 0.0
        %3006 = vmatpush.msra.mxu0 0.0
        %3007 = vmatpush.msra.mxu0 0.0
        %3008 = vmatpush.msra.mxu0 0.0
        %3009 = vmatpush.msra.mxu0 %v2695
        %3010 = vmatpush.msra.mxu0 %v2694
        %3011 = vmatpush.msra.mxu0 %v2693
        %3012 = vmatpush.msra.mxu0 %v2692
        %3013 = vmatmul.f32.gmra.mxu0 %v2992
        %v3014 = vpop.f32.mrf.mxu0
        %v3015 = vadd.f32 %v2986, %v3014
        %3016 = vmatmul.f32.gmra.mxu0 %v2995
        %v3017 = vpop.f32.mrf.mxu0
        %v3018 = vadd.f32 %v2989, %v3017
        %3019 = vdwg.mxu0
        %3020 = vrot.lane.b32.xlu0 %v2708, 64
        %v3021 = vpop.permute.xlu0 %3020
        %3022 = vrot.lane.b32.xlu0 %v2663, 64
        %v3023 = vpop.permute.xlu0 %3022
        %v3024 = vsel %vm1404, %v3021, 0
        %v3026 = vsel %vm1404, %v3023, 0
        %3028 = vmatpush.xpose.msra.mxu0 0.0
        %3029 = vmatpush.xpose.msra.mxu0 0.0
        %3030 = vmatpush.xpose.msra.mxu0 0.0
        %3031 = vmatpush.xpose.msra.mxu0 0.0
        %3032 = vmatpush.xpose.msra.mxu0 0.0
        %3033 = vmatpush.xpose.msra.mxu0 0.0
        %3034 = vmatpush.xpose.msra.mxu0 0.0
        %3035 = vmatpush.xpose.msra.mxu0 0.0
        %3036 = vmatpush.xpose.msra.mxu0 0.0
        %3037 = vmatpush.xpose.msra.mxu0 0.0
        %3038 = vmatpush.xpose.msra.mxu0 0.0
        %3039 = vmatpush.xpose.msra.mxu0 0.0
        %3040 = vmatpush.xpose.msra.mxu0 0.0
        %3041 = vmatpush.xpose.msra.mxu0 0.0
        %3042 = vmatpush.xpose.msra.mxu0 0.0
        %3043 = vmatpush.xpose.msra.mxu0 %v3026
        %3044 = vmatmul.f32.gmra.mxu0 %v3024
        %v3045 = vpop.f32.mrf.mxu0
        %v3046 = vadd.f32 %v1201, %v3045
        %3047 = vdwg.mxu0
        %3048 = vrot.lane.b32.xlu0 %v2709, 64
        %v3049 = vpop.permute.xlu0 %3048
        %3050 = vrot.lane.b32.xlu0 %v2666, 64
        %v3051 = vpop.permute.xlu0 %3050
        %v3052 = vsel %vm1404, %v3049, 0
        %v3054 = vsel %vm1404, %v3051, 0
        %3056 = vmatpush.xpose.msra.mxu0 0.0
        %3057 = vmatpush.xpose.msra.mxu0 0.0
        %3058 = vmatpush.xpose.msra.mxu0 0.0
        %3059 = vmatpush.xpose.msra.mxu0 0.0
        %3060 = vmatpush.xpose.msra.mxu0 0.0
        %3061 = vmatpush.xpose.msra.mxu0 0.0
        %3062 = vmatpush.xpose.msra.mxu0 0.0
        %3063 = vmatpush.xpose.msra.mxu0 0.0
        %3064 = vmatpush.xpose.msra.mxu0 0.0
        %3065 = vmatpush.xpose.msra.mxu0 0.0
        %3066 = vmatpush.xpose.msra.mxu0 0.0
        %3067 = vmatpush.xpose.msra.mxu0 0.0
        %3068 = vmatpush.xpose.msra.mxu0 0.0
        %3069 = vmatpush.xpose.msra.mxu0 0.0
        %3070 = vmatpush.xpose.msra.mxu0 0.0
        %3071 = vmatpush.xpose.msra.mxu0 %v3054
        %3072 = vmatmul.f32.gmra.mxu0 %v3052
        %v3073 = vpop.f32.mrf.mxu0
        %v3074 = vadd.f32 %v1201, %v3073
        %3075 = vdwg.mxu0
        %v3076 = vsel %vm1457, %v3046, -inf
        %3077 = vmax.xlane.f32.xlu0 %v3076
        %v3078 = vpop.xlane.xlu0 %3077
        %v3079 = vsel %vm1457, %v3074, -inf
        %3080 = vmax.xlane.f32.xlu0 %v3079
        %v3081 = vpop.xlane.xlu0 %3080
        %v3082 = vsub.f32 %v3046, %v3078
        %v3083 = vsub.f32 %v3074, %v3081
        %v3084 = vmul.f32 %v3082, 1.442695
        %v3085 = vpow.pop %v3084
        %v3086 = vmul.f32 %v3083, 1.442695
        %v3087 = vpow.pop %v3086
        %v3088 = vsel %vm1457, %v3085, 0.0
        %3089 = vadd.xlane.f32.xlu0 %v3088
        %v3090 = vpop.xlane.xlu0 %3089
        %v3091 = vsel %vm1457, %v3087, 0.0
        %3092 = vadd.xlane.f32.xlu0 %v3091
        %v3093 = vpop.xlane.xlu0 %3092
        %v3094 = vrcp.pop %v3090
        %v3095 = vrcp.pop %v3093
        %v3096 = vmul.f32 %v3085, %v3094
        %v3097 = vmul.f32 %v3087, %v3095
        %3098 = vrot.lane.b32.xlu0 %v2686, 64
        %v3099 = vpop.permute.xlu0 %3098
        %v3102 = vsel %vm1457, %v3096, 0
        %3104 = vmatpush.msra.mxu0 0.0
        %3105 = vmatpush.msra.mxu0 0.0
        %3106 = vmatpush.msra.mxu0 0.0
        %3107 = vmatpush.msra.mxu0 0.0
        %3108 = vmatpush.msra.mxu0 0.0
        %3109 = vmatpush.msra.mxu0 0.0
        %3110 = vmatpush.msra.mxu0 0.0
        %3111 = vmatpush.msra.mxu0 0.0
        %3112 = vmatpush.msra.mxu0 0.0
        %3113 = vmatpush.msra.mxu0 0.0
        %3114 = vmatpush.msra.mxu0 0.0
        %3115 = vmatpush.msra.mxu0 0.0
        %3116 = vmatpush.msra.mxu0 0.0
        %3117 = vmatpush.msra.mxu0 0.0
        %3118 = vmatpush.msra.mxu0 0.0
        %3119 = vmatpush.msra.mxu0 %v3099
        %3120 = vmatmul.f32.gmra.mxu0 %v3102
        %v3121 = vpop.f32.mrf.mxu0
        %v3122 = vadd.f32 0.0, %v3121
        %3123 = vdwg.mxu0
        %3124 = vrot.lane.b32.xlu0 %v2689, 64
        %v3125 = vpop.permute.xlu0 %3124
        %v3128 = vsel %vm1457, %v3097, 0
        %3130 = vmatpush.msra.mxu0 0.0
        %3131 = vmatpush.msra.mxu0 0.0
        %3132 = vmatpush.msra.mxu0 0.0
        %3133 = vmatpush.msra.mxu0 0.0
        %3134 = vmatpush.msra.mxu0 0.0
        %3135 = vmatpush.msra.mxu0 0.0
        %3136 = vmatpush.msra.mxu0 0.0
        %3137 = vmatpush.msra.mxu0 0.0
        %3138 = vmatpush.msra.mxu0 0.0
        %3139 = vmatpush.msra.mxu0 0.0
        %3140 = vmatpush.msra.mxu0 0.0
        %3141 = vmatpush.msra.mxu0 0.0
        %3142 = vmatpush.msra.mxu0 0.0
        %3143 = vmatpush.msra.mxu0 0.0
        %3144 = vmatpush.msra.mxu0 0.0
        %3145 = vmatpush.msra.mxu0 %v3125
        %3146 = vmatmul.f32.gmra.mxu0 %v3128
        %v3147 = vpop.f32.mrf.mxu0
        %v3148 = vadd.f32 0.0, %v3147
        %3149 = vdwg.mxu0
        %v3151 = vsel %vm1404, %v3122, 0
        %v3154 = vsel %vm1404, %v3148, 0
        %3156 = vmatpush.msra.mxu0 0.0
        %3157 = vmatpush.msra.mxu0 0.0
        %3158 = vmatpush.msra.mxu0 0.0
        %3159 = vmatpush.msra.mxu0 0.0
        %3160 = vmatpush.msra.mxu0 0.0
        %3161 = vmatpush.msra.mxu0 0.0
        %3162 = vmatpush.msra.mxu0 0.0
        %3163 = vmatpush.msra.mxu0 0.0
        %3164 = vmatpush.msra.mxu0 0.0
        %3165 = vmatpush.msra.mxu0 0.0
        %3166 = vmatpush.msra.mxu0 0.0
        %3167 = vmatpush.msra.mxu0 0.0
        %3168 = vmatpush.msra.mxu0 %v2703
        %3169 = vmatpush.msra.mxu0 %v2702
        %3170 = vmatpush.msra.mxu0 %v2701
        %3171 = vmatpush.msra.mxu0 %v2700
        %3172 = vmatmul.f32.gmra.mxu0 %v3151
        %v3173 = vpop.f32.mrf.mxu0
        %v3174 = vadd.f32 0.0, %v3173
        %3175 = vmatmul.f32.gmra.mxu0 %v3154
        %v3176 = vpop.f32.mrf.mxu0
        %v3177 = vadd.f32 0.0, %v3176
        %3178 = vdwg.mxu0
        %v3179 = vadd.f32 %v3015, %v3174
        %v3180 = vadd.f32 %v3018, %v3177
        %3181 = vrot.lane.b32.xlu0 %v2708, 32
        %v3182 = vpop.permute.xlu0 %3181
        %3183 = vrot.lane.b32.xlu0 %v2663, 32
        %v3184 = vpop.permute.xlu0 %3183
        %v3185 = vsel %vm1404, %v3182, 0
        %v3187 = vsel %vm1404, %v3184, 0
        %3189 = vmatpush.xpose.msra.mxu0 0.0
        %3190 = vmatpush.xpose.msra.mxu0 0.0
        %3191 = vmatpush.xpose.msra.mxu0 0.0
        %3192 = vmatpush.xpose.msra.mxu0 0.0
        %3193 = vmatpush.xpose.msra.mxu0 0.0
        %3194 = vmatpush.xpose.msra.mxu0 0.0
        %3195 = vmatpush.xpose.msra.mxu0 0.0
        %3196 = vmatpush.xpose.msra.mxu0 0.0
        %3197 = vmatpush.xpose.msra.mxu0 0.0
        %3198 = vmatpush.xpose.msra.mxu0 0.0
        %3199 = vmatpush.xpose.msra.mxu0 0.0
        %3200 = vmatpush.xpose.msra.mxu0 0.0
        %3201 = vmatpush.xpose.msra.mxu0 0.0
        %3202 = vmatpush.xpose.msra.mxu0 0.0
        %3203 = vmatpush.xpose.msra.mxu0 0.0
        %3204 = vmatpush.xpose.msra.mxu0 %v3187
        %3205 = vmatmul.f32.gmra.mxu0 %v3185
        %v3206 = vpop.f32.mrf.mxu0
        %v3207 = vadd.f32 %v1201, %v3206
        %3208 = vdwg.mxu0
        %3209 = vrot.lane.b32.xlu0 %v2709, 32
        %v3210 = vpop.permute.xlu0 %3209
        %3211 = vrot.lane.b32.xlu0 %v2666, 32
        %v3212 = vpop.permute.xlu0 %3211
        %v3213 = vsel %vm1404, %v3210, 0
        %v3215 = vsel %vm1404, %v3212, 0
        %3217 = vmatpush.xpose.msra.mxu0 0.0
        %3218 = vmatpush.xpose.msra.mxu0 0.0
        %3219 = vmatpush.xpose.msra.mxu0 0.0
        %3220 = vmatpush.xpose.msra.mxu0 0.0
        %3221 = vmatpush.xpose.msra.mxu0 0.0
        %3222 = vmatpush.xpose.msra.mxu0 0.0
        %3223 = vmatpush.xpose.msra.mxu0 0.0
        %3224 = vmatpush.xpose.msra.mxu0 0.0
        %3225 = vmatpush.xpose.msra.mxu0 0.0
        %3226 = vmatpush.xpose.msra.mxu0 0.0
        %3227 = vmatpush.xpose.msra.mxu0 0.0
        %3228 = vmatpush.xpose.msra.mxu0 0.0
        %3229 = vmatpush.xpose.msra.mxu0 0.0
        %3230 = vmatpush.xpose.msra.mxu0 0.0
        %3231 = vmatpush.xpose.msra.mxu0 0.0
        %3232 = vmatpush.xpose.msra.mxu0 %v3215
        %3233 = vmatmul.f32.gmra.mxu0 %v3213
        %v3234 = vpop.f32.mrf.mxu0
        %v3235 = vadd.f32 %v1201, %v3234
        %3236 = vdwg.mxu0
        %v3237 = vsel %vm1457, %v3207, -inf
        %3238 = vmax.xlane.f32.xlu0 %v3237
        %v3239 = vpop.xlane.xlu0 %3238
        %v3240 = vsel %vm1457, %v3235, -inf
        %3241 = vmax.xlane.f32.xlu0 %v3240
        %v3242 = vpop.xlane.xlu0 %3241
        %v3243 = vsub.f32 %v3207, %v3239
        %v3244 = vsub.f32 %v3235, %v3242
        %v3245 = vmul.f32 %v3243, 1.442695
        %v3246 = vpow.pop %v3245
        %v3247 = vmul.f32 %v3244, 1.442695
        %v3248 = vpow.pop %v3247
        %v3249 = vsel %vm1457, %v3246, 0.0
        %3250 = vadd.xlane.f32.xlu0 %v3249
        %v3251 = vpop.xlane.xlu0 %3250
        %v3252 = vsel %vm1457, %v3248, 0.0
        %3253 = vadd.xlane.f32.xlu0 %v3252
        %v3254 = vpop.xlane.xlu0 %3253
        %v3255 = vrcp.pop %v3251
        %v3256 = vrcp.pop %v3254
        %v3257 = vmul.f32 %v3246, %v3255
        %v3258 = vmul.f32 %v3248, %v3256
        %3259 = vrot.lane.b32.xlu0 %v2686, 32
        %v3260 = vpop.permute.xlu0 %3259
        %v3263 = vsel %vm1457, %v3257, 0
        %3265 = vmatpush.msra.mxu0 0.0
        %3266 = vmatpush.msra.mxu0 0.0
        %3267 = vmatpush.msra.mxu0 0.0
        %3268 = vmatpush.msra.mxu0 0.0
        %3269 = vmatpush.msra.mxu0 0.0
        %3270 = vmatpush.msra.mxu0 0.0
        %3271 = vmatpush.msra.mxu0 0.0
        %3272 = vmatpush.msra.mxu0 0.0
        %3273 = vmatpush.msra.mxu0 0.0
        %3274 = vmatpush.msra.mxu0 0.0
        %3275 = vmatpush.msra.mxu0 0.0
        %3276 = vmatpush.msra.mxu0 0.0
        %3277 = vmatpush.msra.mxu0 0.0
        %3278 = vmatpush.msra.mxu0 0.0
        %3279 = vmatpush.msra.mxu0 0.0
        %3280 = vmatpush.msra.mxu0 %v3260
        %3281 = vmatmul.f32.gmra.mxu0 %v3263
        %v3282 = vpop.f32.mrf.mxu0
        %v3283 = vadd.f32 0.0, %v3282
        %3284 = vdwg.mxu0
        %3285 = vrot.lane.b32.xlu0 %v2689, 32
        %v3286 = vpop.permute.xlu0 %3285
        %v3289 = vsel %vm1457, %v3258, 0
        %3291 = vmatpush.msra.mxu0 0.0
        %3292 = vmatpush.msra.mxu0 0.0
        %3293 = vmatpush.msra.mxu0 0.0
        %3294 = vmatpush.msra.mxu0 0.0
        %3295 = vmatpush.msra.mxu0 0.0
        %3296 = vmatpush.msra.mxu0 0.0
        %3297 = vmatpush.msra.mxu0 0.0
        %3298 = vmatpush.msra.mxu0 0.0
        %3299 = vmatpush.msra.mxu0 0.0
        %3300 = vmatpush.msra.mxu0 0.0
        %3301 = vmatpush.msra.mxu0 0.0
        %3302 = vmatpush.msra.mxu0 0.0
        %3303 = vmatpush.msra.mxu0 0.0
        %3304 = vmatpush.msra.mxu0 0.0
        %3305 = vmatpush.msra.mxu0 0.0
        %3306 = vmatpush.msra.mxu0 %v3286
        %3307 = vmatmul.f32.gmra.mxu0 %v3289
        %v3308 = vpop.f32.mrf.mxu0
        %v3309 = vadd.f32 0.0, %v3308
        %3310 = vdwg.mxu0
        %v3312 = vsel %vm1404, %v3283, 0
        %v3315 = vsel %vm1404, %v3309, 0
        %3317 = vmatpush.msra.mxu0 0.0
        %3318 = vmatpush.msra.mxu0 0.0
        %3319 = vmatpush.msra.mxu0 0.0
        %3320 = vmatpush.msra.mxu0 0.0
        %3321 = vmatpush.msra.mxu0 0.0
        %3322 = vmatpush.msra.mxu0 0.0
        %3323 = vmatpush.msra.mxu0 0.0
        %3324 = vmatpush.msra.mxu0 0.0
        %3325 = vmatpush.msra.mxu0 0.0
        %3326 = vmatpush.msra.mxu0 0.0
        %3327 = vmatpush.msra.mxu0 0.0
        %3328 = vmatpush.msra.mxu0 0.0
        %3329 = vmatpush.msra.mxu0 %v2707
        %3330 = vmatpush.msra.mxu0 %v2706
        %3331 = vmatpush.msra.mxu0 %v2705
        %3332 = vmatpush.msra.mxu0 %v2704
        %3333 = vmatmul.f32.gmra.mxu0 %v3312
        %v3334 = vpop.f32.mrf.mxu0
        %v3335 = vadd.f32 0.0, %v3334
        %3336 = vmatmul.f32.gmra.mxu0 %v3315
        %v3337 = vpop.f32.mrf.mxu0
        %v3338 = vadd.f32 0.0, %v3337
        %3339 = vdwg.mxu0
        %v3340 = vadd.f32 %v3179, %v3335
        %v3341 = vadd.f32 %v3180, %v3338
        %s3342 = scalar_lea.vmem [#allocation18], 1
        %v3343 = vld [vmem:[%s3342] sm:$0x1]
        %v3345 = vperm.slane %v3343, 0
        %v3347 = vadd.f32 %v3340, %v3345
        %v3348 = vadd.f32 %v3341, %v3345
        %s3349 = scalar_lea.vmem [#allocation20], 1
        %v3350 = vld [vmem:[%s3349] sm:$0x1]
        %v3352 = vperm.slane %v3350, 0
        %v3354 = vmul.f32 %v3352, %v3347
        %v3355 = vmul.f32 %v3352, %v3348
        %v3356 = vadd.f32 %v2508, %v3354
        %v3357 = vadd.f32 %v2509, %v3355
        %s3358 = scalar_lea.vmem [#allocation21], 1
        %v3359 = vld [vmem:[%s3358] sm:$0x1]
        %s3360 = scalar_lea.vmem [#allocation23], 1
        %v3361 = vld [vmem:[%s3360] sm:$0x1]
        %3362 = vadd.xlane.f32.xlu0 %v3356
        %v3363 = vpop.xlane.xlu0 %3362
        %3364 = vadd.xlane.f32.xlu0 %v3357
        %v3365 = vpop.xlane.xlu0 %3364
        %v3366 = vmul.f32 %v3363, %v1214
        %v3367 = vmul.f32 %v3365, %v1214
        %v3368 = vsub.f32 %v3356, %v3366
        %v3369 = vsub.f32 %v3357, %v3367
        %v3370 = vmul.f32 %v3368, %v3368
        %v3371 = vmul.f32 %v3369, %v3369
        %3372 = vadd.xlane.f32.xlu0 %v3370
        %v3373 = vpop.xlane.xlu0 %3372
        %3374 = vadd.xlane.f32.xlu0 %v3371
        %v3375 = vpop.xlane.xlu0 %3374
        %v3376 = vmul.f32 %v3373, %v1214
        %v3377 = vmul.f32 %v3375, %v1214
        %v3378 = vadd.f32 %v3376, 1e-06
        %v3379 = vadd.f32 %v3377, 1e-06
        %v3380 = vrsqrt.pop %v3378
        %v3381 = vmul.f32 %v3380, %v3378
        %v3382 = vmul.f32 %v3381, %v3380
        %v3383 = vmul.f32 0.5, %v3382
        %v3384 = vsub.f32 1.5, %v3383
        %v3385 = vmul.f32 %v3380, %v3384
        %vm3386 = vweird.f32 %v3378
        %vm3387 = vweird.f32 %v3380
        %vm3388 = vmor %vm3386, %vm3387
        %v3389 = vsel %vm3388, %v3380, %v3385
        %v3390 = vrsqrt.pop %v3379
        %v3391 = vmul.f32 %v3390, %v3379
        %v3392 = vmul.f32 %v3391, %v3390
        %v3393 = vmul.f32 0.5, %v3392
        %v3394 = vsub.f32 1.5, %v3393
        %v3395 = vmul.f32 %v3390, %v3394
        %vm3396 = vweird.f32 %v3379
        %vm3397 = vweird.f32 %v3390
        %vm3398 = vmor %vm3396, %vm3397
        %v3399 = vsel %vm3398, %v3390, %v3395
        %v3400 = vmul.f32 %v3368, %v3389
        %v3401 = vmul.f32 %v3369, %v3399
        %v3403 = vperm.slane %v3359, 0
        %v3405 = vmul.f32 %v3400, %v3403
        %v3406 = vmul.f32 %v3401, %v3403
        %v3408 = vperm.slane %v3361, 0
        %v3410 = vadd.f32 %v3405, %v3408
        %v3411 = vadd.f32 %v3406, %v3408
        %s3412 = scalar_lea.vmem [#allocation24], 512
        %v3413 = vld [vmem:[%s3412] sm:$0xff]
        %v3414 = vld [vmem:[%s3412 + $0x8] sm:$0xff]
        %v3415 = vld [vmem:[%s3412 + $0x10] sm:$0xff]
        %v3416 = vld [vmem:[%s3412 + $0x18] sm:$0xff]
        %v3417 = vld [vmem:[%s3412 + $0x20] sm:$0xff]
        %v3418 = vld [vmem:[%s3412 + $0x28] sm:$0xff]
        %v3419 = vld [vmem:[%s3412 + $0x30] sm:$0xff]
        %v3420 = vld [vmem:[%s3412 + $0x38] sm:$0xff]
        %v3421 = vld [vmem:[%s3412 + $0x40] sm:$0xff]
        %v3422 = vld [vmem:[%s3412 + $0x48] sm:$0xff]
        %v3423 = vld [vmem:[%s3412 + $0x50] sm:$0xff]
        %v3424 = vld [vmem:[%s3412 + $0x58] sm:$0xff]
        %v3425 = vld [vmem:[%s3412 + $0x60] sm:$0xff]
        %v3426 = vld [vmem:[%s3412 + $0x68] sm:$0xff]
        %v3427 = vld [vmem:[%s3412 + $0x70] sm:$0xff]
        %v3428 = vld [vmem:[%s3412 + $0x78] sm:$0xff]
        %v3429 = vld [vmem:[%s3412 + $0x80] sm:$0xff]
        %v3430 = vld [vmem:[%s3412 + $0x88] sm:$0xff]
        %v3431 = vld [vmem:[%s3412 + $0x90] sm:$0xff]
        %v3432 = vld [vmem:[%s3412 + $0x98] sm:$0xff]
        %v3433 = vld [vmem:[%s3412 + $0xa0] sm:$0xff]
        %v3434 = vld [vmem:[%s3412 + $0xa8] sm:$0xff]
        %v3435 = vld [vmem:[%s3412 + $0xb0] sm:$0xff]
        %v3436 = vld [vmem:[%s3412 + $0xb8] sm:$0xff]
        %v3437 = vld [vmem:[%s3412 + $0xc0] sm:$0xff]
        %v3438 = vld [vmem:[%s3412 + $0xc8] sm:$0xff]
        %v3439 = vld [vmem:[%s3412 + $0xd0] sm:$0xff]
        %v3440 = vld [vmem:[%s3412 + $0xd8] sm:$0xff]
        %v3441 = vld [vmem:[%s3412 + $0xe0] sm:$0xff]
        %v3442 = vld [vmem:[%s3412 + $0xe8] sm:$0xff]
        %v3443 = vld [vmem:[%s3412 + $0xf0] sm:$0xff]
        %v3444 = vld [vmem:[%s3412 + $0xf8] sm:$0xff]
        %v3445 = vld [vmem:[%s3412 + $0x100] sm:$0xff]
        %v3446 = vld [vmem:[%s3412 + $0x108] sm:$0xff]
        %v3447 = vld [vmem:[%s3412 + $0x110] sm:$0xff]
        %v3448 = vld [vmem:[%s3412 + $0x118] sm:$0xff]
        %v3449 = vld [vmem:[%s3412 + $0x120] sm:$0xff]
        %v3450 = vld [vmem:[%s3412 + $0x128] sm:$0xff]
        %v3451 = vld [vmem:[%s3412 + $0x130] sm:$0xff]
        %v3452 = vld [vmem:[%s3412 + $0x138] sm:$0xff]
        %v3453 = vld [vmem:[%s3412 + $0x140] sm:$0xff]
        %v3454 = vld [vmem:[%s3412 + $0x148] sm:$0xff]
        %v3455 = vld [vmem:[%s3412 + $0x150] sm:$0xff]
        %v3456 = vld [vmem:[%s3412 + $0x158] sm:$0xff]
        %v3457 = vld [vmem:[%s3412 + $0x160] sm:$0xff]
        %v3458 = vld [vmem:[%s3412 + $0x168] sm:$0xff]
        %v3459 = vld [vmem:[%s3412 + $0x170] sm:$0xff]
        %v3460 = vld [vmem:[%s3412 + $0x178] sm:$0xff]
        %v3461 = vld [vmem:[%s3412 + $0x180] sm:$0xff]
        %v3462 = vld [vmem:[%s3412 + $0x188] sm:$0xff]
        %v3463 = vld [vmem:[%s3412 + $0x190] sm:$0xff]
        %v3464 = vld [vmem:[%s3412 + $0x198] sm:$0xff]
        %v3465 = vld [vmem:[%s3412 + $0x1a0] sm:$0xff]
        %v3466 = vld [vmem:[%s3412 + $0x1a8] sm:$0xff]
        %v3467 = vld [vmem:[%s3412 + $0x1b0] sm:$0xff]
        %v3468 = vld [vmem:[%s3412 + $0x1b8] sm:$0xff]
        %v3469 = vld [vmem:[%s3412 + $0x1c0] sm:$0xff]
        %v3470 = vld [vmem:[%s3412 + $0x1c8] sm:$0xff]
        %v3471 = vld [vmem:[%s3412 + $0x1d0] sm:$0xff]
        %v3472 = vld [vmem:[%s3412 + $0x1d8] sm:$0xff]
        %v3473 = vld [vmem:[%s3412 + $0x1e0] sm:$0xff]
        %v3474 = vld [vmem:[%s3412 + $0x1e8] sm:$0xff]
        %v3475 = vld [vmem:[%s3412 + $0x1f0] sm:$0xff]
        %v3476 = vld [vmem:[%s3412 + $0x1f8] sm:$0xff]
        %s3477 = scalar_lea.vmem %s15, 4
        %v3478 = vld [vmem:[%s3477] sm:$0xf]
        %v3480 = vperm.slane %v3478, 0
        %v3481 = vperm.slane %v3478, 1
        %v3482 = vperm.slane %v3478, 2
        %v3483 = vperm.slane %v3478, 3
        %3488 = vmatpush.msra.mxu0 %v3473
        %3489 = vmatpush.msra.mxu0 %v3469
        %3490 = vmatpush.msra.mxu0 %v3465
        %3491 = vmatpush.msra.mxu0 %v3461
        %3492 = vmatpush.msra.mxu0 %v3457
        %3493 = vmatpush.msra.mxu0 %v3453
        %3494 = vmatpush.msra.mxu0 %v3449
        %3495 = vmatpush.msra.mxu0 %v3445
        %3496 = vmatpush.msra.mxu0 %v3441
        %3497 = vmatpush.msra.mxu0 %v3437
        %3498 = vmatpush.msra.mxu0 %v3433
        %3499 = vmatpush.msra.mxu0 %v3429
        %3500 = vmatpush.msra.mxu0 %v3425
        %3501 = vmatpush.msra.mxu0 %v3421
        %3502 = vmatpush.msra.mxu0 %v3417
        %3503 = vmatpush.msra.mxu0 %v3413
        %3504 = vmatmul.f32.gmra.mxu0 %v3410
        %v3505 = vpop.f32.mrf.mxu0
        %v3506 = vadd.f32 %v3480, %v3505
        %3507 = vmatmul.f32.gmra.mxu0 %v3411
        %v3508 = vpop.f32.mrf.mxu0
        %v3509 = vadd.f32 %v3480, %v3508
        %3510 = vdwg.mxu0
        %3511 = vmatpush.msra.mxu0 %v3474
        %3512 = vmatpush.msra.mxu0 %v3470
        %3513 = vmatpush.msra.mxu0 %v3466
        %3514 = vmatpush.msra.mxu0 %v3462
        %3515 = vmatpush.msra.mxu0 %v3458
        %3516 = vmatpush.msra.mxu0 %v3454
        %3517 = vmatpush.msra.mxu0 %v3450
        %3518 = vmatpush.msra.mxu0 %v3446
        %3519 = vmatpush.msra.mxu0 %v3442
        %3520 = vmatpush.msra.mxu0 %v3438
        %3521 = vmatpush.msra.mxu0 %v3434
        %3522 = vmatpush.msra.mxu0 %v3430
        %3523 = vmatpush.msra.mxu0 %v3426
        %3524 = vmatpush.msra.mxu0 %v3422
        %3525 = vmatpush.msra.mxu0 %v3418
        %3526 = vmatpush.msra.mxu0 %v3414
        %3527 = vmatmul.f32.gmra.mxu0 %v3410
        %v3528 = vpop.f32.mrf.mxu0
        %v3529 = vadd.f32 %v3481, %v3528
        %3530 = vmatmul.f32.gmra.mxu0 %v3411
        %v3531 = vpop.f32.mrf.mxu0
        %v3532 = vadd.f32 %v3481, %v3531
        %3533 = vdwg.mxu0
        %3534 = vmatpush.msra.mxu0 %v3475
        %3535 = vmatpush.msra.mxu0 %v3471
        %3536 = vmatpush.msra.mxu0 %v3467
        %3537 = vmatpush.msra.mxu0 %v3463
        %3538 = vmatpush.msra.mxu0 %v3459
        %3539 = vmatpush.msra.mxu0 %v3455
        %3540 = vmatpush.msra.mxu0 %v3451
        %3541 = vmatpush.msra.mxu0 %v3447
        %3542 = vmatpush.msra.mxu0 %v3443
        %3543 = vmatpush.msra.mxu0 %v3439
        %3544 = vmatpush.msra.mxu0 %v3435
        %3545 = vmatpush.msra.mxu0 %v3431
        %3546 = vmatpush.msra.mxu0 %v3427
        %3547 = vmatpush.msra.mxu0 %v3423
        %3548 = vmatpush.msra.mxu0 %v3419
        %3549 = vmatpush.msra.mxu0 %v3415
        %3550 = vmatmul.f32.gmra.mxu0 %v3410
        %v3551 = vpop.f32.mrf.mxu0
        %v3552 = vadd.f32 %v3482, %v3551
        %3553 = vmatmul.f32.gmra.mxu0 %v3411
        %v3554 = vpop.f32.mrf.mxu0
        %v3555 = vadd.f32 %v3482, %v3554
        %3556 = vdwg.mxu0
        %3557 = vmatpush.msra.mxu0 %v3476
        %3558 = vmatpush.msra.mxu0 %v3472
        %3559 = vmatpush.msra.mxu0 %v3468
        %3560 = vmatpush.msra.mxu0 %v3464
        %3561 = vmatpush.msra.mxu0 %v3460
        %3562 = vmatpush.msra.mxu0 %v3456
        %3563 = vmatpush.msra.mxu0 %v3452
        %3564 = vmatpush.msra.mxu0 %v3448
        %3565 = vmatpush.msra.mxu0 %v3444
        %3566 = vmatpush.msra.mxu0 %v3440
        %3567 = vmatpush.msra.mxu0 %v3436
        %3568 = vmatpush.msra.mxu0 %v3432
        %3569 = vmatpush.msra.mxu0 %v3428
        %3570 = vmatpush.msra.mxu0 %v3424
        %3571 = vmatpush.msra.mxu0 %v3420
        %3572 = vmatpush.msra.mxu0 %v3416
        %3573 = vmatmul.f32.gmra.mxu0 %v3410
        %v3574 = vpop.f32.mrf.mxu0
        %v3575 = vadd.f32 %v3483, %v3574
        %3576 = vmatmul.f32.gmra.mxu0 %v3411
        %v3577 = vpop.f32.mrf.mxu0
        %v3578 = vadd.f32 %v3483, %v3577
        %3579 = vdwg.mxu0
        %v3580 = vmul.f32 %v3506, %v3506
        %v3581 = vmul.f32 %v3529, %v3529
        %v3582 = vmul.f32 %v3552, %v3552
        %v3583 = vmul.f32 %v3575, %v3575
        %v3584 = vmul.f32 %v3509, %v3509
        %v3585 = vmul.f32 %v3532, %v3532
        %v3586 = vmul.f32 %v3555, %v3555
        %v3587 = vmul.f32 %v3578, %v3578
        %v3588 = vmul.f32 %v3506, %v3580
        %v3589 = vmul.f32 %v3529, %v3581
        %v3590 = vmul.f32 %v3552, %v3582
        %v3591 = vmul.f32 %v3575, %v3583
        %v3592 = vmul.f32 %v3509, %v3584
        %v3593 = vmul.f32 %v3532, %v3585
        %v3594 = vmul.f32 %v3555, %v3586
        %v3595 = vmul.f32 %v3578, %v3587
        %v3596 = vmul.f32 %v3588, 0.044715
        %v3597 = vmul.f32 %v3589, 0.044715
        %v3598 = vmul.f32 %v3590, 0.044715
        %v3599 = vmul.f32 %v3591, 0.044715
        %v3600 = vmul.f32 %v3592, 0.044715
        %v3601 = vmul.f32 %v3593, 0.044715
        %v3602 = vmul.f32 %v3594, 0.044715
        %v3603 = vmul.f32 %v3595, 0.044715
        %v3604 = vadd.f32 %v3506, %v3596
        %v3605 = vadd.f32 %v3529, %v3597
        %v3606 = vadd.f32 %v3552, %v3598
        %v3607 = vadd.f32 %v3575, %v3599
        %v3608 = vadd.f32 %v3509, %v3600
        %v3609 = vadd.f32 %v3532, %v3601
        %v3610 = vadd.f32 %v3555, %v3602
        %v3611 = vadd.f32 %v3578, %v3603
        %v3612 = vmul.f32 %v3604, 0.7978846
        %v3613 = vmul.f32 %v3605, 0.7978846
        %v3614 = vmul.f32 %v3606, 0.7978846
        %v3615 = vmul.f32 %v3607, 0.7978846
        %v3616 = vmul.f32 %v3608, 0.7978846
        %v3617 = vmul.f32 %v3609, 0.7978846
        %v3618 = vmul.f32 %v3610, 0.7978846
        %v3619 = vmul.f32 %v3611, 0.7978846
        %v3620 = vtanh.pop %v3612
        %v3621 = vtanh.pop %v3613
        %v3622 = vtanh.pop %v3614
        %v3623 = vtanh.pop %v3615
        %v3624 = vtanh.pop %v3616
        %v3625 = vtanh.pop %v3617
        %v3626 = vtanh.pop %v3618
        %v3627 = vtanh.pop %v3619
        %v3628 = vadd.f32 %v3620, 1.0
        %v3629 = vadd.f32 %v3621, 1.0
        %v3630 = vadd.f32 %v3622, 1.0
        %v3631 = vadd.f32 %v3623, 1.0
        %v3632 = vadd.f32 %v3624, 1.0
        %v3633 = vadd.f32 %v3625, 1.0
        %v3634 = vadd.f32 %v3626, 1.0
        %v3635 = vadd.f32 %v3627, 1.0
        %v3636 = vmul.f32 %v3628, 0.5
        %v3637 = vmul.f32 %v3629, 0.5
        %v3638 = vmul.f32 %v3630, 0.5
        %v3639 = vmul.f32 %v3631, 0.5
        %v3640 = vmul.f32 %v3632, 0.5
        %v3641 = vmul.f32 %v3633, 0.5
        %v3642 = vmul.f32 %v3634, 0.5
        %v3643 = vmul.f32 %v3635, 0.5
        %v3644 = vmul.f32 %v3506, %v3636
        %v3645 = vmul.f32 %v3529, %v3637
        %v3646 = vmul.f32 %v3552, %v3638
        %v3647 = vmul.f32 %v3575, %v3639
        %v3648 = vmul.f32 %v3509, %v3640
        %v3649 = vmul.f32 %v3532, %v3641
        %v3650 = vmul.f32 %v3555, %v3642
        %v3651 = vmul.f32 %v3578, %v3643
        %s3652 = scalar_lea.vmem [#allocation26], 512
        %v3653 = vld [vmem:[%s3652] sm:$0xff]
        %v3654 = vld [vmem:[%s3652 + $0x8] sm:$0xff]
        %v3655 = vld [vmem:[%s3652 + $0x10] sm:$0xff]
        %v3656 = vld [vmem:[%s3652 + $0x18] sm:$0xff]
        %v3657 = vld [vmem:[%s3652 + $0x20] sm:$0xff]
        %v3658 = vld [vmem:[%s3652 + $0x28] sm:$0xff]
        %v3659 = vld [vmem:[%s3652 + $0x30] sm:$0xff]
        %v3660 = vld [vmem:[%s3652 + $0x38] sm:$0xff]
        %v3661 = vld [vmem:[%s3652 + $0x40] sm:$0xff]
        %v3662 = vld [vmem:[%s3652 + $0x48] sm:$0xff]
        %v3663 = vld [vmem:[%s3652 + $0x50] sm:$0xff]
        %v3664 = vld [vmem:[%s3652 + $0x58] sm:$0xff]
        %v3665 = vld [vmem:[%s3652 + $0x60] sm:$0xff]
        %v3666 = vld [vmem:[%s3652 + $0x68] sm:$0xff]
        %v3667 = vld [vmem:[%s3652 + $0x70] sm:$0xff]
        %v3668 = vld [vmem:[%s3652 + $0x78] sm:$0xff]
        %v3669 = vld [vmem:[%s3652 + $0x80] sm:$0xff]
        %v3670 = vld [vmem:[%s3652 + $0x88] sm:$0xff]
        %v3671 = vld [vmem:[%s3652 + $0x90] sm:$0xff]
        %v3672 = vld [vmem:[%s3652 + $0x98] sm:$0xff]
        %v3673 = vld [vmem:[%s3652 + $0xa0] sm:$0xff]
        %v3674 = vld [vmem:[%s3652 + $0xa8] sm:$0xff]
        %v3675 = vld [vmem:[%s3652 + $0xb0] sm:$0xff]
        %v3676 = vld [vmem:[%s3652 + $0xb8] sm:$0xff]
        %v3677 = vld [vmem:[%s3652 + $0xc0] sm:$0xff]
        %v3678 = vld [vmem:[%s3652 + $0xc8] sm:$0xff]
        %v3679 = vld [vmem:[%s3652 + $0xd0] sm:$0xff]
        %v3680 = vld [vmem:[%s3652 + $0xd8] sm:$0xff]
        %v3681 = vld [vmem:[%s3652 + $0xe0] sm:$0xff]
        %v3682 = vld [vmem:[%s3652 + $0xe8] sm:$0xff]
        %v3683 = vld [vmem:[%s3652 + $0xf0] sm:$0xff]
        %v3684 = vld [vmem:[%s3652 + $0xf8] sm:$0xff]
        %v3685 = vld [vmem:[%s3652 + $0x100] sm:$0xff]
        %v3686 = vld [vmem:[%s3652 + $0x108] sm:$0xff]
        %v3687 = vld [vmem:[%s3652 + $0x110] sm:$0xff]
        %v3688 = vld [vmem:[%s3652 + $0x118] sm:$0xff]
        %v3689 = vld [vmem:[%s3652 + $0x120] sm:$0xff]
        %v3690 = vld [vmem:[%s3652 + $0x128] sm:$0xff]
        %v3691 = vld [vmem:[%s3652 + $0x130] sm:$0xff]
        %v3692 = vld [vmem:[%s3652 + $0x138] sm:$0xff]
        %v3693 = vld [vmem:[%s3652 + $0x140] sm:$0xff]
        %v3694 = vld [vmem:[%s3652 + $0x148] sm:$0xff]
        %v3695 = vld [vmem:[%s3652 + $0x150] sm:$0xff]
        %v3696 = vld [vmem:[%s3652 + $0x158] sm:$0xff]
        %v3697 = vld [vmem:[%s3652 + $0x160] sm:$0xff]
        %v3698 = vld [vmem:[%s3652 + $0x168] sm:$0xff]
        %v3699 = vld [vmem:[%s3652 + $0x170] sm:$0xff]
        %v3700 = vld [vmem:[%s3652 + $0x178] sm:$0xff]
        %v3701 = vld [vmem:[%s3652 + $0x180] sm:$0xff]
        %v3702 = vld [vmem:[%s3652 + $0x188] sm:$0xff]
        %v3703 = vld [vmem:[%s3652 + $0x190] sm:$0xff]
        %v3704 = vld [vmem:[%s3652 + $0x198] sm:$0xff]
        %v3705 = vld [vmem:[%s3652 + $0x1a0] sm:$0xff]
        %v3706 = vld [vmem:[%s3652 + $0x1a8] sm:$0xff]
        %v3707 = vld [vmem:[%s3652 + $0x1b0] sm:$0xff]
        %v3708 = vld [vmem:[%s3652 + $0x1b8] sm:$0xff]
        %v3709 = vld [vmem:[%s3652 + $0x1c0] sm:$0xff]
        %v3710 = vld [vmem:[%s3652 + $0x1c8] sm:$0xff]
        %v3711 = vld [vmem:[%s3652 + $0x1d0] sm:$0xff]
        %v3712 = vld [vmem:[%s3652 + $0x1d8] sm:$0xff]
        %v3713 = vld [vmem:[%s3652 + $0x1e0] sm:$0xff]
        %v3714 = vld [vmem:[%s3652 + $0x1e8] sm:$0xff]
        %v3715 = vld [vmem:[%s3652 + $0x1f0] sm:$0xff]
        %v3716 = vld [vmem:[%s3652 + $0x1f8] sm:$0xff]
        %s3717 = scalar_lea.vmem %s17, 1
        %v3718 = vld [vmem:[%s3717] sm:$0x1]
        %v3720 = vperm.slane %v3718, 0
        %3722 = vmatpush.msra.mxu0 %v3668
        %3723 = vmatpush.msra.mxu0 %v3667
        %3724 = vmatpush.msra.mxu0 %v3666
        %3725 = vmatpush.msra.mxu0 %v3665
        %3726 = vmatpush.msra.mxu0 %v3664
        %3727 = vmatpush.msra.mxu0 %v3663
        %3728 = vmatpush.msra.mxu0 %v3662
        %3729 = vmatpush.msra.mxu0 %v3661
        %3730 = vmatpush.msra.mxu0 %v3660
        %3731 = vmatpush.msra.mxu0 %v3659
        %3732 = vmatpush.msra.mxu0 %v3658
        %3733 = vmatpush.msra.mxu0 %v3657
        %3734 = vmatpush.msra.mxu0 %v3656
        %3735 = vmatpush.msra.mxu0 %v3655
        %3736 = vmatpush.msra.mxu0 %v3654
        %3737 = vmatpush.msra.mxu0 %v3653
        %3738 = vmatmul.f32.gmra.mxu0 %v3644
        %v3739 = vpop.f32.mrf.mxu0
        %v3740 = vadd.f32 %v3720, %v3739
        %3741 = vmatmul.f32.gmra.mxu0 %v3648
        %v3742 = vpop.f32.mrf.mxu0
        %v3743 = vadd.f32 %v3720, %v3742
        %3744 = vdwg.mxu0
        %3745 = vmatpush.msra.mxu0 %v3684
        %3746 = vmatpush.msra.mxu0 %v3683
        %3747 = vmatpush.msra.mxu0 %v3682
        %3748 = vmatpush.msra.mxu0 %v3681
        %3749 = vmatpush.msra.mxu0 %v3680
        %3750 = vmatpush.msra.mxu0 %v3679
        %3751 = vmatpush.msra.mxu0 %v3678
        %3752 = vmatpush.msra.mxu0 %v3677
        %3753 = vmatpush.msra.mxu0 %v3676
        %3754 = vmatpush.msra.mxu0 %v3675
        %3755 = vmatpush.msra.mxu0 %v3674
        %3756 = vmatpush.msra.mxu0 %v3673
        %3757 = vmatpush.msra.mxu0 %v3672
        %3758 = vmatpush.msra.mxu0 %v3671
        %3759 = vmatpush.msra.mxu0 %v3670
        %3760 = vmatpush.msra.mxu0 %v3669
        %3761 = vmatmul.f32.gmra.mxu0 %v3645
        %v3762 = vpop.f32.mrf.mxu0
        %v3763 = vadd.f32 %v3740, %v3762
        %3764 = vmatmul.f32.gmra.mxu0 %v3649
        %v3765 = vpop.f32.mrf.mxu0
        %v3766 = vadd.f32 %v3743, %v3765
        %3767 = vdwg.mxu0
        %3768 = vmatpush.msra.mxu0 %v3700
        %3769 = vmatpush.msra.mxu0 %v3699
        %3770 = vmatpush.msra.mxu0 %v3698
        %3771 = vmatpush.msra.mxu0 %v3697
        %3772 = vmatpush.msra.mxu0 %v3696
        %3773 = vmatpush.msra.mxu0 %v3695
        %3774 = vmatpush.msra.mxu0 %v3694
        %3775 = vmatpush.msra.mxu0 %v3693
        %3776 = vmatpush.msra.mxu0 %v3692
        %3777 = vmatpush.msra.mxu0 %v3691
        %3778 = vmatpush.msra.mxu0 %v3690
        %3779 = vmatpush.msra.mxu0 %v3689
        %3780 = vmatpush.msra.mxu0 %v3688
        %3781 = vmatpush.msra.mxu0 %v3687
        %3782 = vmatpush.msra.mxu0 %v3686
        %3783 = vmatpush.msra.mxu0 %v3685
        %3784 = vmatmul.f32.gmra.mxu0 %v3646
        %v3785 = vpop.f32.mrf.mxu0
        %v3786 = vadd.f32 %v3763, %v3785
        %3787 = vmatmul.f32.gmra.mxu0 %v3650
        %v3788 = vpop.f32.mrf.mxu0
        %v3789 = vadd.f32 %v3766, %v3788
        %3790 = vdwg.mxu0
        %3791 = vmatpush.msra.mxu0 %v3716
        %3792 = vmatpush.msra.mxu0 %v3715
        %3793 = vmatpush.msra.mxu0 %v3714
        %3794 = vmatpush.msra.mxu0 %v3713
        %3795 = vmatpush.msra.mxu0 %v3712
        %3796 = vmatpush.msra.mxu0 %v3711
        %3797 = vmatpush.msra.mxu0 %v3710
        %3798 = vmatpush.msra.mxu0 %v3709
        %3799 = vmatpush.msra.mxu0 %v3708
        %3800 = vmatpush.msra.mxu0 %v3707
        %3801 = vmatpush.msra.mxu0 %v3706
        %3802 = vmatpush.msra.mxu0 %v3705
        %3803 = vmatpush.msra.mxu0 %v3704
        %3804 = vmatpush.msra.mxu0 %v3703
        %3805 = vmatpush.msra.mxu0 %v3702
        %3806 = vmatpush.msra.mxu0 %v3701
        %3807 = vmatmul.f32.gmra.mxu0 %v3647
        %v3808 = vpop.f32.mrf.mxu0
        %v3809 = vadd.f32 %v3786, %v3808
        %3810 = vmatmul.f32.gmra.mxu0 %v3651
        %v3811 = vpop.f32.mrf.mxu0
        %v3812 = vadd.f32 %v3789, %v3811
        %3813 = vdwg.mxu0
        %s3814 = scalar_lea.vmem [#allocation27], 1
        %v3815 = vld [vmem:[%s3814] sm:$0x1]
        %v3817 = vperm.slane %v3815, 0
        %v3819 = vmul.f32 %v3817, %v3809
        %v3820 = vmul.f32 %v3817, %v3812
        %v3821 = vadd.f32 %v3356, %v3819
        %v3822 = vadd.f32 %v3357, %v3820
        %v3823 = vld [vmem:[%s19] sm:$0x1]
        %v3824 = vld [vmem:[%s20] sm:$0x1]
        %3825 = vadd.xlane.f32.xlu0 %v3821
        %v3826 = vpop.xlane.xlu0 %3825
        %3827 = vadd.xlane.f32.xlu0 %v3822
        %v3828 = vpop.xlane.xlu0 %3827
        %v3829 = vmul.f32 %v3826, %v1214
        %v3830 = vmul.f32 %v3828, %v1214
        %v3831 = vsub.f32 %v3821, %v3829
        %v3832 = vsub.f32 %v3822, %v3830
        %v3833 = vmul.f32 %v3831, %v3831
        %v3834 = vmul.f32 %v3832, %v3832
        %3835 = vadd.xlane.f32.xlu0 %v3833
        %v3836 = vpop.xlane.xlu0 %3835
        %3837 = vadd.xlane.f32.xlu0 %v3834
        %v3838 = vpop.xlane.xlu0 %3837
        %v3839 = vmul.f32 %v3836, %v1214
        %v3840 = vmul.f32 %v3838, %v1214
        %v3841 = vadd.f32 %v3839, 1e-06
        %v3842 = vadd.f32 %v3840, 1e-06
        %v3843 = vrsqrt.pop %v3841
        %v3844 = vmul.f32 %v3843, %v3841
        %v3845 = vmul.f32 %v3844, %v3843
        %v3846 = vmul.f32 0.5, %v3845
        %v3847 = vsub.f32 1.5, %v3846
        %v3848 = vmul.f32 %v3843, %v3847
        %vm3849 = vweird.f32 %v3841
        %vm3850 = vweird.f32 %v3843
        %vm3851 = vmor %vm3849, %vm3850
        %v3852 = vsel %vm3851, %v3843, %v3848
        %v3853 = vrsqrt.pop %v3842
        %v3854 = vmul.f32 %v3853, %v3842
        %v3855 = vmul.f32 %v3854, %v3853
        %v3856 = vmul.f32 0.5, %v3855
        %v3857 = vsub.f32 1.5, %v3856
        %v3858 = vmul.f32 %v3853, %v3857
        %vm3859 = vweird.f32 %v3842
        %vm3860 = vweird.f32 %v3853
        %vm3861 = vmor %vm3859, %vm3860
        %v3862 = vsel %vm3861, %v3853, %v3858
        %v3863 = vmul.f32 %v3831, %v3852
        %v3864 = vmul.f32 %v3832, %v3862
        %v3866 = vperm.slane %v3823, 0
        %v3868 = vmul.f32 %v3863, %v3866
        %v3869 = vmul.f32 %v3864, %v3866
        %v3871 = vperm.slane %v3824, 0
        %v3873 = vadd.f32 %v3868, %v3871
        %v3874 = vadd.f32 %v3869, %v3871
        %3875 = vst [vmem:[%s919] sm:$0xff] %v3873
        %3876 = vst [vmem:[%s919 + $0x8] sm:$0xff] %v3874
        %s3877 = sand.u32 %s500, 1
        %s3878 = scalar_lea.sflag [#allocation5], %s3877
        %s3879 = sand.u32 %s500, 1
        %s3880 = smul.addr %s3879, 16
        %s3881 = scalar_lea.vmem [#allocation29], %s3880
        // Predicated region
        $region169: #{tpu_custom_call.1} parent=103 // pred_check
          %p3882 = pneg %p510
        $region170: #{tpu_custom_call.1} parent=103 // pred_check_branch
          %3884 = sbr.rel (%p3882) target = $region172
        $region171: #{tpu_custom_call.1} parent=103 // pred_region
          %s3885 = smul.u32 2, %s46
          %3887 = vsyncadd %s3878, 0
          %s3888 = smul.addr %s3885, 8
          %s3889 = scalar_lea.hbm %s21, %s3888
          %s3890 = sshll.u32 %s3881, 4
          %s3891 = int_to_ptr.vmem [resolvable:$true] %s3890
          %s3892 = sshll.u32 %s3889, 4
          %s3893 = int_to_ptr.hbm [resolvable:$true] %s3892
          %3898 = dma.vmem_to_hbm [thread:$0]  %s3891, 256, %s3893, %s3878, 128, 128, 8
        $region172: #{tpu_custom_call.1} parent=103 // pred_fallthru
          _
      $region104: #{tpu_custom_call.1} parent=5 // pred_fallthru
        _
      %p3899 = scmp.le.s32.totalorder 2, %s41
      // Predicated region
      $region173: #{tpu_custom_call.1} parent=5 // pred_check
        %p3900 = pneg %p3899
      $region174: #{tpu_custom_call.1} parent=5 // pred_check_branch
        %3902 = sbr.rel (%p3900) target = $region176
      $region175: #{tpu_custom_call.1} parent=5 // pred_region
        %s3903 = ssub.s32 %s41, 2
        // Predicated region
        $region177: #{tpu_custom_call.1} parent=175 // pred_check
          %p3904 = pneg %p516
        $region178: #{tpu_custom_call.1} parent=175 // pred_check_branch
          %3906 = sbr.rel (%p3904) target = $region180
        $region179: #{tpu_custom_call.1} parent=175 // pred_region
          %s3907 = sand.u32 %s501, 1
          %s3908 = scalar_lea.sflag [#allocation5], %s3907
          %s3909 = sand.u32 %s501, 1
          %s3910 = smul.addr %s3909, 16
          %s3911 = scalar_lea.vmem [#allocation29], %s3910
          %3913 = dma.done %s3908, 256
        $region180: #{tpu_custom_call.1} parent=175 // pred_fallthru
          _
      $region176: #{tpu_custom_call.1} parent=5 // pred_fallthru
        _
    $region6: #{tpu_custom_call.1} parent=1 // loop_footer
      %s45 = sadd.s32 1, %s41
    $region7: #{tpu_custom_call.1} parent=1 // loop_footer_branch
      %40 = sbr.rel target = $region3
    $region8: #{tpu_custom_call.1} parent=1 // loop_exit
      _
    %3914 = vsyncpa [#allocation4], 1
    %s3915 = scalar_lea.sflag [#allocation4], 1
    %3916 = vsyncpa %s3915, 1
    %3917 = vsyncpa [#allocation7], 1
    %3918 = vsyncpa [#allocation10], 1
    %3919 = vsyncpa [#allocation13], 1
    %3920 = vsyncpa [#allocation16], 1
    %3921 = vsyncpa [#allocation19], 1
    %3922 = vsyncpa [#allocation22], 1
    %3923 = vsyncpa [#allocation25], 1
    %3924 = vsyncpa [#allocation28], 1
    %3925 = vsyncpa [#allocation5], 1
    %s3926 = scalar_lea.sflag [#allocation5], 1
    %3927 = vsyncpa %s3926, 1

</llo_original>
